<compile_context>
chip_gen: v6e
topology: v6e:2x2x1
jax: 0.10.0
libtpu: 0.0.40
codegen_flags: <defaults>
</compile_context>

<pallas_src>
import jax
import jax.numpy as jnp
import numpy as np
from jax.experimental import pallas as pl
from jax.experimental.pallas import tpu as pltpu

_ROW_PAD = 8  # sublane-aligned row offset of the activation inside the padded scratch


# ---------------------------------------------------------------------------
# Fused Pallas kernel (one grid step = one batch element)
# ---------------------------------------------------------------------------
def _encode_kernel(x_ref, w1_ref, r1_ref, b1_ref,
                   w2_ref, r2_ref, b2_ref,
                   w3_ref, b3_ref,
                   o_ref,
                   ap1_ref, ap2_ref, ap3_ref):
    f32 = jnp.float32

    def load_padded(ap_ref, act):
        # Zero-fill, then store the activation at a sublane-aligned offset so the
        # interior store is unmasked. Rows _ROW_PAD-1 and _ROW_PAD+h are the SAME
        # zero-pad rows; column padding is already folded into the banded weights.
        ap_ref[...] = jnp.zeros(ap_ref.shape, f32)
        ap_ref[_ROW_PAD:_ROW_PAD + act.shape[0], :] = act

    def conv_pool_relu(ap_ref, h, w_ref, r_ref, b_ref):
        # 3x3 conv (banded matmuls, even/odd output columns) + fused 2x2 max-pool
        # + folded-BN bias + ReLU.  Returns the packed pooled activation.
        ncols = w_ref.shape[3]
        acc_e = jnp.zeros((h, ncols), f32)
        acc_o = jnp.zeros((h, ncols), f32)
        for dy in range(3):
            rows = ap_ref[_ROW_PAD - 1 + dy:_ROW_PAD - 1 + dy + h, :]
            acc_e = acc_e + jnp.dot(rows, w_ref[dy, 0], preferred_element_type=f32)
            acc_o = acc_o + jnp.dot(rows, w_ref[dy, 1], preferred_element_type=f32)
        hmax = jnp.maximum(acc_e, acc_o)                 # horizontal half of the pool
        pooled = jnp.maximum(                            # vertical half (row select)
            jnp.dot(r_ref[0], hmax, preferred_element_type=f32),
            jnp.dot(r_ref[1], hmax, preferred_element_type=f32))
        return jnp.maximum(pooled + b_ref[...], 0.0)     # bias + ReLU (post-pool OK)

    def conv_relu(ap_ref, h, w_ref, b_ref):
        # Final layer: 3x3 conv + bias + ReLU, no pooling.
        acc = jnp.zeros((h, w_ref.shape[3]), f32)
        for dy in range(3):
            rows = ap_ref[_ROW_PAD - 1 + dy:_ROW_PAD - 1 + dy + h, :]
            acc = acc + jnp.dot(rows, w_ref[dy, 0], preferred_element_type=f32)
        return jnp.maximum(acc + b_ref[...], 0.0)

    h1 = x_ref.shape[1]       # 32
    h2 = r1_ref.shape[1]      # 16
    h3 = r2_ref.shape[1]      # 8

    # stage 1: inc = Conv(1,16); the down1 max-pool is fused into its epilogue.
    load_padded(ap1_ref, x_ref[0])
    a2 = conv_pool_relu(ap1_ref, h1, w1_ref, r1_ref, b1_ref)   # = maxpool(x1)

    # stage 2: down1 conv = Conv(16,32); the down2 max-pool is fused.
    load_padded(ap2_ref, a2)
    a3 = conv_pool_relu(ap2_ref, h2, w2_ref, r2_ref, b2_ref)   # = maxpool(x2)

    # stage 3: down2 conv = Conv(32,64).  Output is lane-dense (h3, W3*64 = 512).
    load_padded(ap3_ref, a3)
    o_ref[0] = conv_relu(ap3_ref, h3, w3_ref, b3_ref).astype(o_ref.dtype)


# ---------------------------------------------------------------------------
# Wrapper (single pallas_call, NCHW in / NCHW out)
# ---------------------------------------------------------------------------
def encode_net_forward(x_nchw, params):
    """Encode_Net.forward: x -> inc -> down1 -> down2, fully fused."""
    N, cin, H, W = x_nchw.shape
    assert cin == 1 and H % 4 == 0 and W % 4 == 0

    w1, r1, b1 = params["inc"]
    w2, r2, b2 = params["down1"]
    w3, b3 = params["down2"]

    h3 = H // 4
    w3cols = b3.shape[1]               # (W//4) * 64
    c3 = w3cols // (W // 4)

    x = x_nchw.reshape(N, H, W)        # Cin == 1 -> packed (H, W*Cin) layout

    def full(a):
        return pl.BlockSpec(a.shape, lambda n: (0,) * a.ndim)

    out = pl.pallas_call(
        _encode_kernel,
        out_shape=jax.ShapeDtypeStruct((N, h3, w3cols), jnp.float32),
        grid=(N,),
        in_specs=[
            pl.BlockSpec((1, H, W), lambda n: (n, 0, 0)),
            full(w1), full(r1), full(b1),
            full(w2), full(r2), full(b2),
            full(w3), full(b3),
        ],
        out_specs=pl.BlockSpec((1, h3, w3cols), lambda n: (n, 0, 0)),
        scratch_shapes=[
            pltpu.VMEM((H + _ROW_PAD + 1, W), jnp.float32),                 # padded x
            pltpu.VMEM((H // 2 + _ROW_PAD + 1, b1.shape[1]), jnp.float32),  # padded pool(x1)
            pltpu.VMEM((H // 4 + _ROW_PAD + 1, b2.shape[1]), jnp.float32),  # padded pool(x2)
        ],
        compiler_params=pltpu.CompilerParams(dimension_semantics=("parallel",)),
    )(x, w1, r1, b1, w2, r2, b2, w3, b3)

    # (N, H/4, (W/4)*64) -> NHWC -> NCHW (free reshapes/transposes in XLA).
    return out.reshape(N, h3, W // 4, c3).transpose(0, 3, 1, 2)


# ---------------------------------------------------------------------------
# Parameter construction (glue)
# ---------------------------------------------------------------------------
def make_conv_bn_params(key, cin, cout):
    kw, kb, kg, kbe, km, kv = jax.random.split(key, 6)
    fan_in = cin * 9
    w = jax.random.normal(kw, (cout, cin, 3, 3), jnp.float32) / jnp.sqrt(fan_in)
    b = 0.05 * jax.random.normal(kb, (cout,), jnp.float32)
    gamma = 1.0 + 0.1 * jax.random.normal(kg, (cout,), jnp.float32)
    beta = 0.1 * jax.random.normal(kbe, (cout,), jnp.float32)
    mean = 0.05 * jax.random.normal(km, (cout,), jnp.float32)
    var = jax.random.uniform(kv, (cout,), jnp.float32, minval=0.5, maxval=1.5)
    return w, b, gamma, beta, mean, var


def fold_bn(w, b, gamma, beta, mean, var, eps=1e-5):
    """Fold inference-mode BatchNorm into the conv weight/bias."""
    scale = gamma / jnp.sqrt(var + eps)
    wf = w * scale[:, None, None, None]          # (cout, cin, 3, 3)
    bf = (b - mean) * scale + beta               # (cout,)
    return wf, bf


def _banded_weights(wf, W, pool):
    """Fold im2col + (optionally) even/odd output-column selection into the
    weights.  Returns B of shape (3, P, W*Cin, Wout*Cout) with P=2 if pool else 1,
    such that conv(x)[h, stride*pw + parity, co] = sum_dy xrows[h+dy, :] @ B[dy, parity]."""
    wf = np.asarray(wf)
    cout, cin = wf.shape[0], wf.shape[1]
    stride = 2 if pool else 1
    npar = 2 if pool else 1
    wout = W // stride
    B = np.zeros((3, npar, W * cin, wout * cout), np.float32)
    for ky in range(3):
        for par in range(npar):
            for pw in range(wout):
                for kx in range(3):
                    wi = stride * pw + par + kx - 1
                    if 0 <= wi < W:
                        B[ky, par, wi * cin:(wi + 1) * cin,
                          pw * cout:(pw + 1) * cout] = wf[:, :, ky, kx].T
    return jnp.asarray(B)


def _row_selectors(H):
    """One-hot (H//2, H) matrices selecting even / odd rows (vertical pool phases)."""
    R = np.zeros((2, H // 2, H), np.float32)
    idx = np.arange(H // 2)
    R[0, idx, 2 * idx] = 1.0
    R[1, idx, 2 * idx + 1] = 1.0
    return jnp.asarray(R)


def _packed_bias(bf, wout):
    return jnp.asarray(np.tile(np.asarray(bf), wout)[None, :].astype(np.float32))


def build_layer_params(wf, bf, H, W, pool):
    B = _banded_weights(wf, W, pool)
    bias = _packed_bias(bf, W // 2 if pool else W)
    if pool:
        return B, _row_selectors(H), bias
    return B, bias


# ---------------------------------------------------------------------------
# Pure-JAX reference for the numerical check
# ---------------------------------------------------------------------------
def _ref_forward(x_nchw, folded):
    def conv_bn_relu(x, wf, bf):
        w_hwio = jnp.transpose(wf, (2, 3, 1, 0))
        y = jax.lax.conv_general_dilated(
            x, w_hwio, (1, 1), "SAME",
            dimension_numbers=("NHWC", "HWIO", "NHWC"))
        return jnp.maximum(y + bf[None, None, None, :], 0.0)

    def pool(x):
        n, h, w, c = x.shape
        return x.reshape(n, h // 2, 2, w // 2, 2, c).max(axis=(2, 4))

    x = jnp.transpose(x_nchw, (0, 2, 3, 1))
    x1 = conv_bn_relu(x, *folded[0])
    x2 = conv_bn_relu(pool(x1), *folded[1])
    x3 = conv_bn_relu(pool(x2), *folded[2])
    return jnp.transpose(x3, (0, 3, 1, 2))


if __name__ == "__main__":
    key = jax.random.PRNGKey(0)
    kx, k1, k2, k3 = jax.random.split(key, 4)

    # Small shapes consistent with Encode_Net: batch=2, 1 input channel, 32x32.
    N, H, W = 2, 32, 32
    x = jax.random.normal(kx, (N, 1, H, W), jnp.float32)    # NCHW, like PyTorch

    folded = [
        fold_bn(*make_conv_bn_params(k1, 1, 16)),
        fold_bn(*make_conv_bn_params(k2, 16, 32)),
        fold_bn(*make_conv_bn_params(k3, 32, 64)),
    ]
    params = {
        "inc":   build_layer_params(*folded[0], H,      W,      pool=True),
        "down1": build_layer_params(*folded[1], H // 2, W // 2, pool=True),
        "down2": build_layer_params(*folded[2], H // 4, W // 4, pool=False),
    }

    out = jax.block_until_ready(jax.jit(encode_net_forward)(x, params))
    assert out.shape == (N, 64, H // 4, W // 4), out.shape

    ref = jax.block_until_ready(_ref_forward(x, folded))
    err = float(jnp.max(jnp.abs(out - ref)))
    assert err < 1e-3, f"max abs err vs reference: {err}"

    print("KERNEL_OK")
</pallas_src>

<mosaic_0001>
module attributes {stable_mosaic.version = 11 : i64} {
  func.func @_encode_kernel(%arg0: i32, %arg1: memref<1x32x32xf32, #tpu.memory_space<vmem>>, %arg2: memref<3x2x32x256xf32, #tpu.memory_space<vmem>>, %arg3: memref<2x16x32xf32, #tpu.memory_space<vmem>>, %arg4: memref<1x256xf32, #tpu.memory_space<vmem>>, %arg5: memref<3x2x256x256xf32, #tpu.memory_space<vmem>>, %arg6: memref<2x8x16xf32, #tpu.memory_space<vmem>>, %arg7: memref<1x256xf32, #tpu.memory_space<vmem>>, %arg8: memref<3x1x256x512xf32, #tpu.memory_space<vmem>>, %arg9: memref<1x512xf32, #tpu.memory_space<vmem>>, %arg10: memref<1x8x512xf32, #tpu.memory_space<vmem>>, %arg11: memref<41x32xf32, #tpu.memory_space<vmem>>, %arg12: memref<25x256xf32, #tpu.memory_space<vmem>>, %arg13: memref<17x256xf32, #tpu.memory_space<vmem>>) attributes {dimension_semantics = [#tpu.dimension_semantics<parallel>], iteration_bounds = array<i64: 2>, scalar_prefetch = 0 : i64, scratch_operands = 3 : i64, tpu.core_type = #tpu.core_type<tc>, window_params = [{transform_indices = @transform_0, window_bounds = array<i64: 1, 32, 32>}, {pipeline_mode = #tpu.pipeline_mode<synchronous>, transform_indices = @transform_1, window_bounds = array<i64: 3, 2, 32, 256>}, {pipeline_mode = #tpu.pipeline_mode<synchronous>, transform_indices = @transform_2, window_bounds = array<i64: 2, 16, 32>}, {pipeline_mode = #tpu.pipeline_mode<synchronous>, transform_indices = @transform_3, window_bounds = array<i64: 1, 256>}, {pipeline_mode = #tpu.pipeline_mode<synchronous>, transform_indices = @transform_4, window_bounds = array<i64: 3, 2, 256, 256>}, {pipeline_mode = #tpu.pipeline_mode<synchronous>, transform_indices = @transform_5, window_bounds = array<i64: 2, 8, 16>}, {pipeline_mode = #tpu.pipeline_mode<synchronous>, transform_indices = @transform_6, window_bounds = array<i64: 1, 256>}, {pipeline_mode = #tpu.pipeline_mode<synchronous>, transform_indices = @transform_7, window_bounds = array<i64: 3, 1, 256, 512>}, {pipeline_mode = #tpu.pipeline_mode<synchronous>, transform_indices = @transform_8, window_bounds = array<i64: 1, 512>}, {transform_indices = @transform_9, window_bounds = array<i64: 1, 8, 512>}]} {
    %c0 = arith.constant 0 : index
    %c0_0 = arith.constant 0 : index
    %c0_1 = arith.constant 0 : index
    %0 = vector.load %arg1[%c0, %c0_0, %c0_1] : memref<1x32x32xf32, #tpu.memory_space<vmem>>, vector<1x32x32xf32>
    %1 = vector.shape_cast %0 : vector<1x32x32xf32> to vector<32x32xf32>
    %cst = arith.constant 0.000000e+00 : f32
    %2 = vector.broadcast %cst : f32 to vector<41x32xf32>
    %c0_2 = arith.constant 0 : index
    %c0_3 = arith.constant 0 : index
    %3 = vector.load %arg11[%c0_2, %c0_3] : memref<41x32xf32, #tpu.memory_space<vmem>>, vector<41x32xf32>
    tpu.vector_store %arg11[%c0_2, %c0_3], %2 {strides = array<i32>} : memref<41x32xf32, #tpu.memory_space<vmem>>, vector<41x32xf32>,
    %c8 = arith.constant 8 : index
    %c0_4 = arith.constant 0 : index
    %4 = vector.load %arg11[%c8, %c0_4] : memref<41x32xf32, #tpu.memory_space<vmem>>, vector<32x32xf32>
    tpu.vector_store %arg11[%c8, %c0_4], %1 {strides = array<i32>} : memref<41x32xf32, #tpu.memory_space<vmem>>, vector<32x32xf32>,
    %cst_5 = arith.constant 0.000000e+00 : f32
    %5 = vector.broadcast %cst_5 : f32 to vector<32x256xf32>
    %cst_6 = arith.constant 0.000000e+00 : f32
    %6 = vector.broadcast %cst_6 : f32 to vector<32x256xf32>
    %c7 = arith.constant 7 : index
    %c0_7 = arith.constant 0 : index
    %7 = vector.load %arg11[%c7, %c0_7] : memref<41x32xf32, #tpu.memory_space<vmem>>, vector<32x32xf32>
    %c0_8 = arith.constant 0 : index
    %c0_9 = arith.constant 0 : index
    %c0_10 = arith.constant 0 : index
    %c0_11 = arith.constant 0 : index
    %8 = vector.load %arg2[%c0_8, %c0_9, %c0_10, %c0_11] : memref<3x2x32x256xf32, #tpu.memory_space<vmem>>, vector<1x1x32x256xf32>
    %9 = vector.shape_cast %8 : vector<1x1x32x256xf32> to vector<32x256xf32>
    %cst_12 = arith.constant dense<0.000000e+00> : vector<32x256xf32>
    %10 = tpu.matmul %7, %9, %cst_12 {dimension_numbers = #tpu.dot_dimension_numbers<[1], [0], [0], [1], [0, 0, 1, 1], [], []>} : vector<32x32xf32>, vector<32x256xf32>, vector<32x256xf32> -> vector<32x256xf32>
    %11 = arith.addf %5, %10 : vector<32x256xf32>
    %c0_13 = arith.constant 0 : index
    %c1 = arith.constant 1 : index
    %c0_14 = arith.constant 0 : index
    %c0_15 = arith.constant 0 : index
    %12 = vector.load %arg2[%c0_13, %c1, %c0_14, %c0_15] : memref<3x2x32x256xf32, #tpu.memory_space<vmem>>, vector<1x1x32x256xf32>
    %13 = vector.shape_cast %12 : vector<1x1x32x256xf32> to vector<32x256xf32>
    %cst_16 = arith.constant dense<0.000000e+00> : vector<32x256xf32>
    %14 = tpu.matmul %7, %13, %cst_16 {dimension_numbers = #tpu.dot_dimension_numbers<[1], [0], [0], [1], [0, 0, 1, 1], [], []>} : vector<32x32xf32>, vector<32x256xf32>, vector<32x256xf32> -> vector<32x256xf32>
    %15 = arith.addf %6, %14 : vector<32x256xf32>
    %c8_17 = arith.constant 8 : index
    %c0_18 = arith.constant 0 : index
    %16 = vector.load %arg11[%c8_17, %c0_18] : memref<41x32xf32, #tpu.memory_space<vmem>>, vector<32x32xf32>
    %c1_19 = arith.constant 1 : index
    %c0_20 = arith.constant 0 : index
    %c0_21 = arith.constant 0 : index
    %c0_22 = arith.constant 0 : index
    %17 = vector.load %arg2[%c1_19, %c0_20, %c0_21, %c0_22] : memref<3x2x32x256xf32, #tpu.memory_space<vmem>>, vector<1x1x32x256xf32>
    %18 = vector.shape_cast %17 : vector<1x1x32x256xf32> to vector<32x256xf32>
    %cst_23 = arith.constant dense<0.000000e+00> : vector<32x256xf32>
    %19 = tpu.matmul %16, %18, %cst_23 {dimension_numbers = #tpu.dot_dimension_numbers<[1], [0], [0], [1], [0, 0, 1, 1], [], []>} : vector<32x32xf32>, vector<32x256xf32>, vector<32x256xf32> -> vector<32x256xf32>
    %20 = arith.addf %11, %19 : vector<32x256xf32>
    %c1_24 = arith.constant 1 : index
    %c1_25 = arith.constant 1 : index
    %c0_26 = arith.constant 0 : index
    %c0_27 = arith.constant 0 : index
    %21 = vector.load %arg2[%c1_24, %c1_25, %c0_26, %c0_27] : memref<3x2x32x256xf32, #tpu.memory_space<vmem>>, vector<1x1x32x256xf32>
    %22 = vector.shape_cast %21 : vector<1x1x32x256xf32> to vector<32x256xf32>
    %cst_28 = arith.constant dense<0.000000e+00> : vector<32x256xf32>
    %23 = tpu.matmul %16, %22, %cst_28 {dimension_numbers = #tpu.dot_dimension_numbers<[1], [0], [0], [1], [0, 0, 1, 1], [], []>} : vector<32x32xf32>, vector<32x256xf32>, vector<32x256xf32> -> vector<32x256xf32>
    %24 = arith.addf %15, %23 : vector<32x256xf32>
    %c9 = arith.constant 9 : index
    %c0_29 = arith.constant 0 : index
    %25 = vector.load %arg11[%c9, %c0_29] : memref<41x32xf32, #tpu.memory_space<vmem>>, vector<32x32xf32>
    %c2 = arith.constant 2 : index
    %c0_30 = arith.constant 0 : index
    %c0_31 = arith.constant 0 : index
    %c0_32 = arith.constant 0 : index
    %26 = vector.load %arg2[%c2, %c0_30, %c0_31, %c0_32] : memref<3x2x32x256xf32, #tpu.memory_space<vmem>>, vector<1x1x32x256xf32>
    %27 = vector.shape_cast %26 : vector<1x1x32x256xf32> to vector<32x256xf32>
    %cst_33 = arith.constant dense<0.000000e+00> : vector<32x256xf32>
    %28 = tpu.matmul %25, %27, %cst_33 {dimension_numbers = #tpu.dot_dimension_numbers<[1], [0], [0], [1], [0, 0, 1, 1], [], []>} : vector<32x32xf32>, vector<32x256xf32>, vector<32x256xf32> -> vector<32x256xf32>
    %29 = arith.addf %20, %28 : vector<32x256xf32>
    %c2_34 = arith.constant 2 : index
    %c1_35 = arith.constant 1 : index
    %c0_36 = arith.constant 0 : index
    %c0_37 = arith.constant 0 : index
    %30 = vector.load %arg2[%c2_34, %c1_35, %c0_36, %c0_37] : memref<3x2x32x256xf32, #tpu.memory_space<vmem>>, vector<1x1x32x256xf32>
    %31 = vector.shape_cast %30 : vector<1x1x32x256xf32> to vector<32x256xf32>
    %cst_38 = arith.constant dense<0.000000e+00> : vector<32x256xf32>
    %32 = tpu.matmul %25, %31, %cst_38 {dimension_numbers = #tpu.dot_dimension_numbers<[1], [0], [0], [1], [0, 0, 1, 1], [], []>} : vector<32x32xf32>, vector<32x256xf32>, vector<32x256xf32> -> vector<32x256xf32>
    %33 = arith.addf %24, %32 : vector<32x256xf32>
    %34 = arith.maximumf %29, %33 : vector<32x256xf32>
    %c0_39 = arith.constant 0 : index
    %c0_40 = arith.constant 0 : index
    %c0_41 = arith.constant 0 : index
    %35 = vector.load %arg3[%c0_39, %c0_40, %c0_41] : memref<2x16x32xf32, #tpu.memory_space<vmem>>, vector<1x16x32xf32>
    %36 = vector.shape_cast %35 : vector<1x16x32xf32> to vector<16x32xf32>
    %cst_42 = arith.constant dense<0.000000e+00> : vector<16x256xf32>
    %37 = tpu.matmul %36, %34, %cst_42 {dimension_numbers = #tpu.dot_dimension_numbers<[1], [0], [0], [1], [0, 0, 1, 1], [], []>} : vector<16x32xf32>, vector<32x256xf32>, vector<16x256xf32> -> vector<16x256xf32>
    %c1_43 = arith.constant 1 : index
    %c0_44 = arith.constant 0 : index
    %c0_45 = arith.constant 0 : index
    %38 = vector.load %arg3[%c1_43, %c0_44, %c0_45] : memref<2x16x32xf32, #tpu.memory_space<vmem>>, vector<1x16x32xf32>
    %39 = vector.shape_cast %38 : vector<1x16x32xf32> to vector<16x32xf32>
    %cst_46 = arith.constant dense<0.000000e+00> : vector<16x256xf32>
    %40 = tpu.matmul %39, %34, %cst_46 {dimension_numbers = #tpu.dot_dimension_numbers<[1], [0], [0], [1], [0, 0, 1, 1], [], []>} : vector<16x32xf32>, vector<32x256xf32>, vector<16x256xf32> -> vector<16x256xf32>
    %41 = arith.maximumf %37, %40 : vector<16x256xf32>
    %c0_47 = arith.constant 0 : index
    %c0_48 = arith.constant 0 : index
    %42 = vector.load %arg4[%c0_47, %c0_48] : memref<1x256xf32, #tpu.memory_space<vmem>>, vector<1x256xf32>
    %43 = vector.broadcast %42 : vector<1x256xf32> to vector<16x256xf32>
    %44 = arith.addf %41, %43 : vector<16x256xf32>
    %cst_49 = arith.constant 0.000000e+00 : f32
    %45 = vector.broadcast %cst_49 : f32 to vector<16x256xf32>
    %46 = arith.maximumf %44, %45 : vector<16x256xf32>
    %cst_50 = arith.constant 0.000000e+00 : f32
    %47 = vector.broadcast %cst_50 : f32 to vector<25x256xf32>
    %c0_51 = arith.constant 0 : index
    %c0_52 = arith.constant 0 : index
    %48 = vector.load %arg12[%c0_51, %c0_52] : memref<25x256xf32, #tpu.memory_space<vmem>>, vector<25x256xf32>
    tpu.vector_store %arg12[%c0_51, %c0_52], %47 {strides = array<i32>} : memref<25x256xf32, #tpu.memory_space<vmem>>, vector<25x256xf32>,
    %c8_53 = arith.constant 8 : index
    %c0_54 = arith.constant 0 : index
    %49 = vector.load %arg12[%c8_53, %c0_54] : memref<25x256xf32, #tpu.memory_space<vmem>>, vector<16x256xf32>
    tpu.vector_store %arg12[%c8_53, %c0_54], %46 {strides = array<i32>} : memref<25x256xf32, #tpu.memory_space<vmem>>, vector<16x256xf32>,
    %cst_55 = arith.constant 0.000000e+00 : f32
    %50 = vector.broadcast %cst_55 : f32 to vector<16x256xf32>
    %cst_56 = arith.constant 0.000000e+00 : f32
    %51 = vector.broadcast %cst_56 : f32 to vector<16x256xf32>
    %c7_57 = arith.constant 7 : index
    %c0_58 = arith.constant 0 : index
    %52 = vector.load %arg12[%c7_57, %c0_58] : memref<25x256xf32, #tpu.memory_space<vmem>>, vector<16x256xf32>
    %c0_59 = arith.constant 0 : index
    %c0_60 = arith.constant 0 : index
    %c0_61 = arith.constant 0 : index
    %c0_62 = arith.constant 0 : index
    %53 = vector.load %arg5[%c0_59, %c0_60, %c0_61, %c0_62] : memref<3x2x256x256xf32, #tpu.memory_space<vmem>>, vector<1x1x256x256xf32>
    %54 = vector.shape_cast %53 : vector<1x1x256x256xf32> to vector<256x256xf32>
    %cst_63 = arith.constant dense<0.000000e+00> : vector<16x256xf32>
    %55 = tpu.matmul %52, %54, %cst_63 {dimension_numbers = #tpu.dot_dimension_numbers<[1], [0], [0], [1], [0, 0, 1, 1], [], []>} : vector<16x256xf32>, vector<256x256xf32>, vector<16x256xf32> -> vector<16x256xf32>
    %56 = arith.addf %50, %55 : vector<16x256xf32>
    %c0_64 = arith.constant 0 : index
    %c1_65 = arith.constant 1 : index
    %c0_66 = arith.constant 0 : index
    %c0_67 = arith.constant 0 : index
    %57 = vector.load %arg5[%c0_64, %c1_65, %c0_66, %c0_67] : memref<3x2x256x256xf32, #tpu.memory_space<vmem>>, vector<1x1x256x256xf32>
    %58 = vector.shape_cast %57 : vector<1x1x256x256xf32> to vector<256x256xf32>
    %cst_68 = arith.constant dense<0.000000e+00> : vector<16x256xf32>
    %59 = tpu.matmul %52, %58, %cst_68 {dimension_numbers = #tpu.dot_dimension_numbers<[1], [0], [0], [1], [0, 0, 1, 1], [], []>} : vector<16x256xf32>, vector<256x256xf32>, vector<16x256xf32> -> vector<16x256xf32>
    %60 = arith.addf %51, %59 : vector<16x256xf32>
    %c8_69 = arith.constant 8 : index
    %c0_70 = arith.constant 0 : index
    %61 = vector.load %arg12[%c8_69, %c0_70] : memref<25x256xf32, #tpu.memory_space<vmem>>, vector<16x256xf32>
    %c1_71 = arith.constant 1 : index
    %c0_72 = arith.constant 0 : index
    %c0_73 = arith.constant 0 : index
    %c0_74 = arith.constant 0 : index
    %62 = vector.load %arg5[%c1_71, %c0_72, %c0_73, %c0_74] : memref<3x2x256x256xf32, #tpu.memory_space<vmem>>, vector<1x1x256x256xf32>
    %63 = vector.shape_cast %62 : vector<1x1x256x256xf32> to vector<256x256xf32>
    %cst_75 = arith.constant dense<0.000000e+00> : vector<16x256xf32>
    %64 = tpu.matmul %61, %63, %cst_75 {dimension_numbers = #tpu.dot_dimension_numbers<[1], [0], [0], [1], [0, 0, 1, 1], [], []>} : vector<16x256xf32>, vector<256x256xf32>, vector<16x256xf32> -> vector<16x256xf32>
    %65 = arith.addf %56, %64 : vector<16x256xf32>
    %c1_76 = arith.constant 1 : index
    %c1_77 = arith.constant 1 : index
    %c0_78 = arith.constant 0 : index
    %c0_79 = arith.constant 0 : index
    %66 = vector.load %arg5[%c1_76, %c1_77, %c0_78, %c0_79] : memref<3x2x256x256xf32, #tpu.memory_space<vmem>>, vector<1x1x256x256xf32>
    %67 = vector.shape_cast %66 : vector<1x1x256x256xf32> to vector<256x256xf32>
    %cst_80 = arith.constant dense<0.000000e+00> : vector<16x256xf32>
    %68 = tpu.matmul %61, %67, %cst_80 {dimension_numbers = #tpu.dot_dimension_numbers<[1], [0], [0], [1], [0, 0, 1, 1], [], []>} : vector<16x256xf32>, vector<256x256xf32>, vector<16x256xf32> -> vector<16x256xf32>
    %69 = arith.addf %60, %68 : vector<16x256xf32>
    %c9_81 = arith.constant 9 : index
    %c0_82 = arith.constant 0 : index
    %70 = vector.load %arg12[%c9_81, %c0_82] : memref<25x256xf32, #tpu.memory_space<vmem>>, vector<16x256xf32>
    %c2_83 = arith.constant 2 : index
    %c0_84 = arith.constant 0 : index
    %c0_85 = arith.constant 0 : index
    %c0_86 = arith.constant 0 : index
    %71 = vector.load %arg5[%c2_83, %c0_84, %c0_85, %c0_86] : memref<3x2x256x256xf32, #tpu.memory_space<vmem>>, vector<1x1x256x256xf32>
    %72 = vector.shape_cast %71 : vector<1x1x256x256xf32> to vector<256x256xf32>
    %cst_87 = arith.constant dense<0.000000e+00> : vector<16x256xf32>
    %73 = tpu.matmul %70, %72, %cst_87 {dimension_numbers = #tpu.dot_dimension_numbers<[1], [0], [0], [1], [0, 0, 1, 1], [], []>} : vector<16x256xf32>, vector<256x256xf32>, vector<16x256xf32> -> vector<16x256xf32>
    %74 = arith.addf %65, %73 : vector<16x256xf32>
    %c2_88 = arith.constant 2 : index
    %c1_89 = arith.constant 1 : index
    %c0_90 = arith.constant 0 : index
    %c0_91 = arith.constant 0 : index
    %75 = vector.load %arg5[%c2_88, %c1_89, %c0_90, %c0_91] : memref<3x2x256x256xf32, #tpu.memory_space<vmem>>, vector<1x1x256x256xf32>
    %76 = vector.shape_cast %75 : vector<1x1x256x256xf32> to vector<256x256xf32>
    %cst_92 = arith.constant dense<0.000000e+00> : vector<16x256xf32>
    %77 = tpu.matmul %70, %76, %cst_92 {dimension_numbers = #tpu.dot_dimension_numbers<[1], [0], [0], [1], [0, 0, 1, 1], [], []>} : vector<16x256xf32>, vector<256x256xf32>, vector<16x256xf32> -> vector<16x256xf32>
    %78 = arith.addf %69, %77 : vector<16x256xf32>
    %79 = arith.maximumf %74, %78 : vector<16x256xf32>
    %c0_93 = arith.constant 0 : index
    %c0_94 = arith.constant 0 : index
    %c0_95 = arith.constant 0 : index
    %80 = vector.load %arg6[%c0_93, %c0_94, %c0_95] : memref<2x8x16xf32, #tpu.memory_space<vmem>>, vector<1x8x16xf32>
    %81 = vector.shape_cast %80 : vector<1x8x16xf32> to vector<8x16xf32>
    %cst_96 = arith.constant dense<0.000000e+00> : vector<8x256xf32>
    %82 = tpu.matmul %81, %79, %cst_96 {dimension_numbers = #tpu.dot_dimension_numbers<[1], [0], [0], [1], [0, 0, 1, 1], [], []>} : vector<8x16xf32>, vector<16x256xf32>, vector<8x256xf32> -> vector<8x256xf32>
    %c1_97 = arith.constant 1 : index
    %c0_98 = arith.constant 0 : index
    %c0_99 = arith.constant 0 : index
    %83 = vector.load %arg6[%c1_97, %c0_98, %c0_99] : memref<2x8x16xf32, #tpu.memory_space<vmem>>, vector<1x8x16xf32>
    %84 = vector.shape_cast %83 : vector<1x8x16xf32> to vector<8x16xf32>
    %cst_100 = arith.constant dense<0.000000e+00> : vector<8x256xf32>
    %85 = tpu.matmul %84, %79, %cst_100 {dimension_numbers = #tpu.dot_dimension_numbers<[1], [0], [0], [1], [0, 0, 1, 1], [], []>} : vector<8x16xf32>, vector<16x256xf32>, vector<8x256xf32> -> vector<8x256xf32>
    %86 = arith.maximumf %82, %85 : vector<8x256xf32>
    %c0_101 = arith.constant 0 : index
    %c0_102 = arith.constant 0 : index
    %87 = vector.load %arg7[%c0_101, %c0_102] : memref<1x256xf32, #tpu.memory_space<vmem>>, vector<1x256xf32>
    %88 = vector.broadcast %87 : vector<1x256xf32> to vector<8x256xf32>
    %89 = arith.addf %86, %88 : vector<8x256xf32>
    %cst_103 = arith.constant 0.000000e+00 : f32
    %90 = vector.broadcast %cst_103 : f32 to vector<8x256xf32>
    %91 = arith.maximumf %89, %90 : vector<8x256xf32>
    %cst_104 = arith.constant 0.000000e+00 : f32
    %92 = vector.broadcast %cst_104 : f32 to vector<17x256xf32>
    %c0_105 = arith.constant 0 : index
    %c0_106 = arith.constant 0 : index
    %93 = vector.load %arg13[%c0_105, %c0_106] : memref<17x256xf32, #tpu.memory_space<vmem>>, vector<17x256xf32>
    tpu.vector_store %arg13[%c0_105, %c0_106], %92 {strides = array<i32>} : memref<17x256xf32, #tpu.memory_space<vmem>>, vector<17x256xf32>,
    %c8_107 = arith.constant 8 : index
    %c0_108 = arith.constant 0 : index
    %94 = vector.load %arg13[%c8_107, %c0_108] : memref<17x256xf32, #tpu.memory_space<vmem>>, vector<8x256xf32>
    tpu.vector_store %arg13[%c8_107, %c0_108], %91 {strides = array<i32>} : memref<17x256xf32, #tpu.memory_space<vmem>>, vector<8x256xf32>,
    %cst_109 = arith.constant 0.000000e+00 : f32
    %95 = vector.broadcast %cst_109 : f32 to vector<8x512xf32>
    %c7_110 = arith.constant 7 : index
    %c0_111 = arith.constant 0 : index
    %96 = vector.load %arg13[%c7_110, %c0_111] : memref<17x256xf32, #tpu.memory_space<vmem>>, vector<8x256xf32>
    %c0_112 = arith.constant 0 : index
    %c0_113 = arith.constant 0 : index
    %c0_114 = arith.constant 0 : index
    %c0_115 = arith.constant 0 : index
    %97 = vector.load %arg8[%c0_112, %c0_113, %c0_114, %c0_115] : memref<3x1x256x512xf32, #tpu.memory_space<vmem>>, vector<1x1x256x512xf32>
    %98 = vector.shape_cast %97 : vector<1x1x256x512xf32> to vector<256x512xf32>
    %cst_116 = arith.constant dense<0.000000e+00> : vector<8x512xf32>
    %99 = tpu.matmul %96, %98, %cst_116 {dimension_numbers = #tpu.dot_dimension_numbers<[1], [0], [0], [1], [0, 0, 1, 1], [], []>} : vector<8x256xf32>, vector<256x512xf32>, vector<8x512xf32> -> vector<8x512xf32>
    %100 = arith.addf %95, %99 : vector<8x512xf32>
    %c8_117 = arith.constant 8 : index
    %c0_118 = arith.constant 0 : index
    %101 = vector.load %arg13[%c8_117, %c0_118] : memref<17x256xf32, #tpu.memory_space<vmem>>, vector<8x256xf32>
    %c1_119 = arith.constant 1 : index
    %c0_120 = arith.constant 0 : index
    %c0_121 = arith.constant 0 : index
    %c0_122 = arith.constant 0 : index
    %102 = vector.load %arg8[%c1_119, %c0_120, %c0_121, %c0_122] : memref<3x1x256x512xf32, #tpu.memory_space<vmem>>, vector<1x1x256x512xf32>
    %103 = vector.shape_cast %102 : vector<1x1x256x512xf32> to vector<256x512xf32>
    %cst_123 = arith.constant dense<0.000000e+00> : vector<8x512xf32>
    %104 = tpu.matmul %101, %103, %cst_123 {dimension_numbers = #tpu.dot_dimension_numbers<[1], [0], [0], [1], [0, 0, 1, 1], [], []>} : vector<8x256xf32>, vector<256x512xf32>, vector<8x512xf32> -> vector<8x512xf32>
    %105 = arith.addf %100, %104 : vector<8x512xf32>
    %c9_124 = arith.constant 9 : index
    %c0_125 = arith.constant 0 : index
    %106 = vector.load %arg13[%c9_124, %c0_125] : memref<17x256xf32, #tpu.memory_space<vmem>>, vector<8x256xf32>
    %c2_126 = arith.constant 2 : index
    %c0_127 = arith.constant 0 : index
    %c0_128 = arith.constant 0 : index
    %c0_129 = arith.constant 0 : index
    %107 = vector.load %arg8[%c2_126, %c0_127, %c0_128, %c0_129] : memref<3x1x256x512xf32, #tpu.memory_space<vmem>>, vector<1x1x256x512xf32>
    %108 = vector.shape_cast %107 : vector<1x1x256x512xf32> to vector<256x512xf32>
    %cst_130 = arith.constant dense<0.000000e+00> : vector<8x512xf32>
    %109 = tpu.matmul %106, %108, %cst_130 {dimension_numbers = #tpu.dot_dimension_numbers<[1], [0], [0], [1], [0, 0, 1, 1], [], []>} : vector<8x256xf32>, vector<256x512xf32>, vector<8x512xf32> -> vector<8x512xf32>
    %110 = arith.addf %105, %109 : vector<8x512xf32>
    %c0_131 = arith.constant 0 : index
    %c0_132 = arith.constant 0 : index
    %111 = vector.load %arg9[%c0_131, %c0_132] : memref<1x512xf32, #tpu.memory_space<vmem>>, vector<1x512xf32>
    %112 = vector.broadcast %111 : vector<1x512xf32> to vector<8x512xf32>
    %113 = arith.addf %110, %112 : vector<8x512xf32>
    %cst_133 = arith.constant 0.000000e+00 : f32
    %114 = vector.broadcast %cst_133 : f32 to vector<8x512xf32>
    %115 = arith.maximumf %113, %114 : vector<8x512xf32>
    %c0_134 = arith.constant 0 : index
    %c0_135 = arith.constant 0 : index
    %c0_136 = arith.constant 0 : index
    %116 = vector.load %arg10[%c0_134, %c0_135, %c0_136] : memref<1x8x512xf32, #tpu.memory_space<vmem>>, vector<1x8x512xf32>
    %117 = vector.shape_cast %116 : vector<1x8x512xf32> to vector<8x512xf32>
    %118 = vector.shape_cast %115 : vector<8x512xf32> to vector<1x8x512xf32>
    tpu.vector_store %arg10[%c0_134, %c0_135, %c0_136], %118 {strides = array<i32>} : memref<1x8x512xf32, #tpu.memory_space<vmem>>, vector<1x8x512xf32>,
    return
  }
  func.func @transform_0(%arg0: i32) -> (i32, i32, i32) {
    %c0_i32 = arith.constant 0 : i32
    %c0_i32_0 = arith.constant 0 : i32
    %c0_i32_1 = arith.constant 0 : i32
    return %arg0, %c0_i32, %c0_i32_0 : i32, i32, i32
  }
  func.func @transform_1(%arg0: i32) -> (i32, i32, i32, i32) {
    %c0_i32 = arith.constant 0 : i32
    %c0_i32_0 = arith.constant 0 : i32
    %c0_i32_1 = arith.constant 0 : i32
    %c0_i32_2 = arith.constant 0 : i32
    %c0_i32_3 = arith.constant 0 : i32
    return %c0_i32, %c0_i32_0, %c0_i32_1, %c0_i32_2 : i32, i32, i32, i32
  }
  func.func @transform_2(%arg0: i32) -> (i32, i32, i32) {
    %c0_i32 = arith.constant 0 : i32
    %c0_i32_0 = arith.constant 0 : i32
    %c0_i32_1 = arith.constant 0 : i32
    %c0_i32_2 = arith.constant 0 : i32
    return %c0_i32, %c0_i32_0, %c0_i32_1 : i32, i32, i32
  }
  func.func @transform_3(%arg0: i32) -> (i32, i32) {
    %c0_i32 = arith.constant 0 : i32
    %c0_i32_0 = arith.constant 0 : i32
    %c0_i32_1 = arith.constant 0 : i32
    return %c0_i32, %c0_i32_0 : i32, i32
  }
  func.func @transform_4(%arg0: i32) -> (i32, i32, i32, i32) {
    %c0_i32 = arith.constant 0 : i32
    %c0_i32_0 = arith.constant 0 : i32
    %c0_i32_1 = arith.constant 0 : i32
    %c0_i32_2 = arith.constant 0 : i32
    %c0_i32_3 = arith.constant 0 : i32
    return %c0_i32, %c0_i32_0, %c0_i32_1, %c0_i32_2 : i32, i32, i32, i32
  }
  func.func @transform_5(%arg0: i32) -> (i32, i32, i32) {
    %c0_i32 = arith.constant 0 : i32
    %c0_i32_0 = arith.constant 0 : i32
    %c0_i32_1 = arith.constant 0 : i32
    %c0_i32_2 = arith.constant 0 : i32
    return %c0_i32, %c0_i32_0, %c0_i32_1 : i32, i32, i32
  }
  func.func @transform_6(%arg0: i32) -> (i32, i32) {
    %c0_i32 = arith.constant 0 : i32
    %c0_i32_0 = arith.constant 0 : i32
    %c0_i32_1 = arith.constant 0 : i32
    return %c0_i32, %c0_i32_0 : i32, i32
  }
  func.func @transform_7(%arg0: i32) -> (i32, i32, i32, i32) {
    %c0_i32 = arith.constant 0 : i32
    %c0_i32_0 = arith.constant 0 : i32
    %c0_i32_1 = arith.constant 0 : i32
    %c0_i32_2 = arith.constant 0 : i32
    %c0_i32_3 = arith.constant 0 : i32
    return %c0_i32, %c0_i32_0, %c0_i32_1, %c0_i32_2 : i32, i32, i32, i32
  }
  func.func @transform_8(%arg0: i32) -> (i32, i32) {
    %c0_i32 = arith.constant 0 : i32
    %c0_i32_0 = arith.constant 0 : i32
    %c0_i32_1 = arith.constant 0 : i32
    return %c0_i32, %c0_i32_0 : i32, i32
  }
  func.func @transform_9(%arg0: i32) -> (i32, i32, i32) {
    %c0_i32 = arith.constant 0 : i32
    %c0_i32_0 = arith.constant 0 : i32
    %c0_i32_1 = arith.constant 0 : i32
    return %arg0, %c0_i32, %c0_i32_0 : i32, i32, i32
  }
}

</mosaic_0001>

<llo_original>
// kernel: encode_net_forward.1
$region0: #{encode_net_forward.1}
  #allocation0 [shape = 'u32[]', space=smem, size = 0x4, offset = 0x4, fixed_abs, tag = 'smem constant byte address 0x4 - core index']
  #allocation1 [shape = 'u32[144,128]{1,0:T(1,128)}', space=vmem, size = 0x12000, scoped, tag = 'internal scratch']
  #allocation2 [shape = 'f32[41,32]{1,0:T(8,128)}', space=vmem, size = 0x6000, scoped, tag = 'scratch operand']
  #allocation3 [shape = 'f32[25,256]{1,0:T(8,128)}', space=vmem, size = 0x8000, scoped, tag = 'scratch operand']
  #allocation4 [shape = 'f32[17,256]{1,0:T(8,128)}', space=vmem, size = 0x6000, scoped, tag = 'scratch operand']
  %s0 = inlined_call_operand.hbm [shape: f32[2,32,32], index: 0, kind: input, shape index: {}]
  %s1 = inlined_call_operand.hbm [shape: f32[3,2,32,256], index: 1, kind: input, shape index: {}]
  %s2 = inlined_call_operand.hbm [shape: f32[2,16,32], index: 2, kind: input, shape index: {}]
  %s3 = inlined_call_operand.hbm [shape: f32[1,256], index: 3, kind: input, shape index: {}]
  %s4 = inlined_call_operand.hbm [shape: f32[3,2,256,256], index: 4, kind: input, shape index: {}]
  %s5 = inlined_call_operand.hbm [shape: f32[2,8,16], index: 5, kind: input, shape index: {}]
  %s6 = inlined_call_operand.hbm [shape: f32[1,256], index: 6, kind: input, shape index: {}]
  %s7 = inlined_call_operand.hbm [shape: f32[3,1,256,512], index: 7, kind: input, shape index: {}]
  %s8 = inlined_call_operand.hbm [shape: f32[1,512], index: 8, kind: input, shape index: {}]
  %s9 = inlined_call_operand.vmem [shape: f32[2,8,512], index: 9, kind: output, shape index: {}]
  %s10 = sld [smem:[#allocation0]]
  $region105: #{encode_net_forward.1} parent=0
    _
  %s12 = ssub.s32 1, %s10
  %s13 = scalar_select 0, %s12, %s10
  $region1: #{encode_net_forward.1} parent=0
    #allocation5 [shape = 'u8[32768]{0}', space=vmem, size = 0x8000, scoped, tag = 'input window, operand 0']
    #allocation6 [shape = 's32[2]{0}', space=sflag, size = 0x8, scoped, tag = 'scoped memory for encode_net_forward.1']
    #allocation7 [shape = 'u8[196608]{0}', space=vmem, size = 0x30000, scoped, tag = 'input window, operand 1, single buffered']
    #allocation8 [shape = 's32[1]{0}', space=sflag, size = 0x4, scoped, tag = 'scoped memory for encode_net_forward.1']
    #allocation9 [shape = 'u8[16384]{0}', space=vmem, size = 0x4000, scoped, tag = 'input window, operand 2, single buffered']
    #allocation10 [shape = 'u8[1024]{0}', space=vmem, size = 0x400, scoped, tag = 'input window, operand 3, single buffered']
    #allocation11 [shape = 's32[1]{0}', space=sflag, size = 0x4, scoped, tag = 'scoped memory for encode_net_forward.1']
    #allocation12 [shape = 'u8[1572864]{0}', space=vmem, size = 0x180000, scoped, tag = 'input window, operand 4, single buffered']
    #allocation13 [shape = 'u8[8192]{0}', space=vmem, size = 0x2000, scoped, tag = 'input window, operand 5, single buffered']
    #allocation14 [shape = 's32[1]{0}', space=sflag, size = 0x4, scoped, tag = 'scoped memory for encode_net_forward.1']
    #allocation15 [shape = 'u8[1024]{0}', space=vmem, size = 0x400, scoped, tag = 'input window, operand 6, single buffered']
    #allocation16 [shape = 'u8[1572864]{0}', space=vmem, size = 0x180000, scoped, tag = 'input window, operand 7, single buffered']
    #allocation17 [shape = 's32[1]{0}', space=sflag, size = 0x4, scoped, tag = 'scoped memory for encode_net_forward.1']
    #allocation18 [shape = 'u8[2048]{0}', space=vmem, size = 0x800, scoped, tag = 'input window, operand 8, single buffered']
    %14 = vsyncpa [#allocation6], 0
    %s15 = scalar_lea.sflag [#allocation6], 1
    %16 = vsyncpa %s15, 0
    %17 = vsyncpa [#allocation8], 0
    %18 = vsyncpa [#allocation11], 0
    %19 = vsyncpa [#allocation14], 0
    %20 = vsyncpa [#allocation17], 0
    loop: start=0, step=1, limit=4
    $region2: #{encode_net_forward.1} parent=1 // loop_pre_header
      _
    $region3: #{encode_net_forward.1} parent=1 // loop_header
      %s22 = sphi 0, %s26
      %p23 = scmp.ge.s32.totalorder %s22, 4
      %s32 = sphi 0, %s34
      %s35 = sphi 0, %s32
      %s36 = sphi 0, %s35
      %s52 = sphi 0, %s36
      %s56 = sphi 0, %s56
      %s58 = sphi 0, %s56
      %s59 = sphi 0, %s58
      %s73 = sphi 0, %s59
      %s77 = sphi 0, %s77
      %s79 = sphi 0, %s77
      %s80 = sphi 0, %s79
      %s94 = sphi 0, %s80
      %s98 = sphi 0, %s98
      %s100 = sphi 0, %s98
      %s101 = sphi 0, %s100
      %s115 = sphi 0, %s101
      %s119 = sphi 0, %s119
      %s121 = sphi 0, %s119
      %s122 = sphi 0, %s121
      %s136 = sphi 0, %s122
      %s140 = sphi 0, %s140
      %s142 = sphi 0, %s140
      %s143 = sphi 0, %s142
      %s157 = sphi 0, %s143
      %s161 = sphi 0, %s161
      %s163 = sphi 0, %s161
      %s164 = sphi 0, %s163
      %s178 = sphi 0, %s164
      %s182 = sphi 0, %s182
      %s184 = sphi 0, %s182
      %s185 = sphi 0, %s184
      %s199 = sphi 0, %s185
      %s203 = sphi 0, %s203
      %s205 = sphi 0, %s203
      %s206 = sphi 0, %s205
      %s220 = sphi 0, %s206
      %s226 = sphi 0, %s228
      %s229 = sphi 0, %s226
      %s230 = sphi 0, %s229
      %s246 = sphi 0, %s230
    $region4: #{encode_net_forward.1} parent=1 // loop_header_branch
      %25 = sbr.rel (%p23) target = $region8
    $region5: #{encode_net_forward.1} parent=1 // loop_body
      %s27 = ssub.s32 %s22, 1
      %s28 = ssub.s32 %s22, 2
      %s29 = sadd.s32 %s22, 1
      %s30 = ssub.s32 %s22, %s29
      %p31 = scmp.eq.s32.totalorder %s30, 0
      %s33 = sadd.s32 %s32, 1
      %s34 = scalar_select %p31, %s32, %s33
      %p37 = pneg %p31
      %p38 = scmp.eq.s32.totalorder %s22, 1
      %p39 = por %p37, %p38
      %p40 = scmp.ne.s32.totalorder %s32, %s35
      %p41 = scmp.eq.s32.totalorder %s22, 0
      %p42 = por %p40, %p41
      %p43 = scmp.ne.s32.totalorder %s32, %s35
      %p44 = scmp.eq.s32.totalorder %s27, 1
      %p45 = por %p43, %p44
      %p46 = scmp.ne.s32.totalorder %s35, %s36
      %p47 = scmp.eq.s32.totalorder %s27, 0
      %p48 = por %p46, %p47
      %p49 = scmp.ne.s32.totalorder %s35, %s36
      %p50 = scmp.eq.s32.totalorder %s28, 1
      %p51 = por %p49, %p50
      %p53 = scmp.ne.s32.totalorder %s36, %s52
      %p54 = scmp.eq.s32.totalorder %s28, 0
      %p55 = por %p53, %p54
      %s57 = sadd.s32 %s56, 1
      %p60 = scmp.eq.s32.totalorder %s22, 1
      %p61 = scmp.ne.s32.totalorder %s56, %s58
      %p62 = scmp.eq.s32.totalorder %s22, 0
      %p63 = por %p61, %p62
      %p64 = scmp.ne.s32.totalorder %s56, %s58
      %p65 = scmp.eq.s32.totalorder %s27, 1
      %p66 = por %p64, %p65
      %p67 = scmp.ne.s32.totalorder %s58, %s59
      %p68 = scmp.eq.s32.totalorder %s27, 0
      %p69 = por %p67, %p68
      %p70 = scmp.ne.s32.totalorder %s58, %s59
      %p71 = scmp.eq.s32.totalorder %s28, 1
      %p72 = por %p70, %p71
      %p74 = scmp.ne.s32.totalorder %s59, %s73
      %p75 = scmp.eq.s32.totalorder %s28, 0
      %p76 = por %p74, %p75
      %s78 = sadd.s32 %s77, 1
      %p81 = scmp.eq.s32.totalorder %s22, 1
      %p82 = scmp.ne.s32.totalorder %s77, %s79
      %p83 = scmp.eq.s32.totalorder %s22, 0
      %p84 = por %p82, %p83
      %p85 = scmp.ne.s32.totalorder %s77, %s79
      %p86 = scmp.eq.s32.totalorder %s27, 1
      %p87 = por %p85, %p86
      %p88 = scmp.ne.s32.totalorder %s79, %s80
      %p89 = scmp.eq.s32.totalorder %s27, 0
      %p90 = por %p88, %p89
      %p91 = scmp.ne.s32.totalorder %s79, %s80
      %p92 = scmp.eq.s32.totalorder %s28, 1
      %p93 = por %p91, %p92
      %p95 = scmp.ne.s32.totalorder %s80, %s94
      %p96 = scmp.eq.s32.totalorder %s28, 0
      %p97 = por %p95, %p96
      %s99 = sadd.s32 %s98, 1
      %p102 = scmp.eq.s32.totalorder %s22, 1
      %p103 = scmp.ne.s32.totalorder %s98, %s100
      %p104 = scmp.eq.s32.totalorder %s22, 0
      %p105 = por %p103, %p104
      %p106 = scmp.ne.s32.totalorder %s98, %s100
      %p107 = scmp.eq.s32.totalorder %s27, 1
      %p108 = por %p106, %p107
      %p109 = scmp.ne.s32.totalorder %s100, %s101
      %p110 = scmp.eq.s32.totalorder %s27, 0
      %p111 = por %p109, %p110
      %p112 = scmp.ne.s32.totalorder %s100, %s101
      %p113 = scmp.eq.s32.totalorder %s28, 1
      %p114 = por %p112, %p113
      %p116 = scmp.ne.s32.totalorder %s101, %s115
      %p117 = scmp.eq.s32.totalorder %s28, 0
      %p118 = por %p116, %p117
      %s120 = sadd.s32 %s119, 1
      %p123 = scmp.eq.s32.totalorder %s22, 1
      %p124 = scmp.ne.s32.totalorder %s119, %s121
      %p125 = scmp.eq.s32.totalorder %s22, 0
      %p126 = por %p124, %p125
      %p127 = scmp.ne.s32.totalorder %s119, %s121
      %p128 = scmp.eq.s32.totalorder %s27, 1
      %p129 = por %p127, %p128
      %p130 = scmp.ne.s32.totalorder %s121, %s122
      %p131 = scmp.eq.s32.totalorder %s27, 0
      %p132 = por %p130, %p131
      %p133 = scmp.ne.s32.totalorder %s121, %s122
      %p134 = scmp.eq.s32.totalorder %s28, 1
      %p135 = por %p133, %p134
      %p137 = scmp.ne.s32.totalorder %s122, %s136
      %p138 = scmp.eq.s32.totalorder %s28, 0
      %p139 = por %p137, %p138
      %s141 = sadd.s32 %s140, 1
      %p144 = scmp.eq.s32.totalorder %s22, 1
      %p145 = scmp.ne.s32.totalorder %s140, %s142
      %p146 = scmp.eq.s32.totalorder %s22, 0
      %p147 = por %p145, %p146
      %p148 = scmp.ne.s32.totalorder %s140, %s142
      %p149 = scmp.eq.s32.totalorder %s27, 1
      %p150 = por %p148, %p149
      %p151 = scmp.ne.s32.totalorder %s142, %s143
      %p152 = scmp.eq.s32.totalorder %s27, 0
      %p153 = por %p151, %p152
      %p154 = scmp.ne.s32.totalorder %s142, %s143
      %p155 = scmp.eq.s32.totalorder %s28, 1
      %p156 = por %p154, %p155
      %p158 = scmp.ne.s32.totalorder %s143, %s157
      %p159 = scmp.eq.s32.totalorder %s28, 0
      %p160 = por %p158, %p159
      %s162 = sadd.s32 %s161, 1
      %p165 = scmp.eq.s32.totalorder %s22, 1
      %p166 = scmp.ne.s32.totalorder %s161, %s163
      %p167 = scmp.eq.s32.totalorder %s22, 0
      %p168 = por %p166, %p167
      %p169 = scmp.ne.s32.totalorder %s161, %s163
      %p170 = scmp.eq.s32.totalorder %s27, 1
      %p171 = por %p169, %p170
      %p172 = scmp.ne.s32.totalorder %s163, %s164
      %p173 = scmp.eq.s32.totalorder %s27, 0
      %p174 = por %p172, %p173
      %p175 = scmp.ne.s32.totalorder %s163, %s164
      %p176 = scmp.eq.s32.totalorder %s28, 1
      %p177 = por %p175, %p176
      %p179 = scmp.ne.s32.totalorder %s164, %s178
      %p180 = scmp.eq.s32.totalorder %s28, 0
      %p181 = por %p179, %p180
      %s183 = sadd.s32 %s182, 1
      %p186 = scmp.eq.s32.totalorder %s22, 1
      %p187 = scmp.ne.s32.totalorder %s182, %s184
      %p188 = scmp.eq.s32.totalorder %s22, 0
      %p189 = por %p187, %p188
      %p190 = scmp.ne.s32.totalorder %s182, %s184
      %p191 = scmp.eq.s32.totalorder %s27, 1
      %p192 = por %p190, %p191
      %p193 = scmp.ne.s32.totalorder %s184, %s185
      %p194 = scmp.eq.s32.totalorder %s27, 0
      %p195 = por %p193, %p194
      %p196 = scmp.ne.s32.totalorder %s184, %s185
      %p197 = scmp.eq.s32.totalorder %s28, 1
      %p198 = por %p196, %p197
      %p200 = scmp.ne.s32.totalorder %s185, %s199
      %p201 = scmp.eq.s32.totalorder %s28, 0
      %p202 = por %p200, %p201
      %s204 = sadd.s32 %s203, 1
      %p207 = scmp.eq.s32.totalorder %s22, 1
      %p208 = scmp.ne.s32.totalorder %s203, %s205
      %p209 = scmp.eq.s32.totalorder %s22, 0
      %p210 = por %p208, %p209
      %p211 = scmp.ne.s32.totalorder %s203, %s205
      %p212 = scmp.eq.s32.totalorder %s27, 1
      %p213 = por %p211, %p212
      %p214 = scmp.ne.s32.totalorder %s205, %s206
      %p215 = scmp.eq.s32.totalorder %s27, 0
      %p216 = por %p214, %p215
      %p217 = scmp.ne.s32.totalorder %s205, %s206
      %p218 = scmp.eq.s32.totalorder %s28, 1
      %p219 = por %p217, %p218
      %p221 = scmp.ne.s32.totalorder %s206, %s220
      %p222 = scmp.eq.s32.totalorder %s28, 0
      %p223 = por %p221, %p222
      %s224 = ssub.s32 %s22, %s29
      %p225 = scmp.eq.s32.totalorder %s224, 0
      %s227 = sadd.s32 %s226, 1
      %s228 = scalar_select %p225, %s226, %s227
      %p231 = pneg %p225
      %p232 = scmp.eq.s32.totalorder %s22, 1
      %p233 = por %p231, %p232
      %p234 = scmp.ne.s32.totalorder %s226, %s229
      %p235 = scmp.eq.s32.totalorder %s22, 0
      %p236 = por %p234, %p235
      %p237 = scmp.ne.s32.totalorder %s226, %s229
      %p238 = scmp.eq.s32.totalorder %s27, 1
      %p239 = por %p237, %p238
      %p240 = scmp.ne.s32.totalorder %s229, %s230
      %p241 = scmp.eq.s32.totalorder %s27, 0
      %p242 = por %p240, %p241
      %p243 = scmp.ne.s32.totalorder %s229, %s230
      %p244 = scmp.eq.s32.totalorder %s28, 1
      %p245 = por %p243, %p244
      %p247 = scmp.ne.s32.totalorder %s230, %s246
      %p248 = scmp.eq.s32.totalorder %s28, 0
      %p249 = por %p247, %p248
      %p250 = scmp.le.s32.totalorder 1, %s22
      %p251 = scmp.lt.s32.totalorder %s22, 3
      %p252 = pnand %p250, %p251
      %p253 = pneg %p252
      // Predicated region
      $region9: #{encode_net_forward.1} parent=5 // pred_check
        _
      $region10: #{encode_net_forward.1} parent=5 // pred_check_branch
        %255 = sbr.rel (%p252) target = $region12
      $region11: #{encode_net_forward.1} parent=5 // pred_region
        %s256 = ssub.s32 %s22, 1
        // Predicated region
        $region13: #{encode_net_forward.1} parent=11 // pred_check
          %p257 = pneg %p69
        $region14: #{encode_net_forward.1} parent=11 // pred_check_branch
          %259 = sbr.rel (%p257) target = $region16
        $region15: #{encode_net_forward.1} parent=11 // pred_region
          %s261 = ssub.s32 6144, 6144
          %262 = vsyncadd [#allocation8], %s261
          %s263 = sshll.u32 [#allocation7], 4
          %s264 = int_to_ptr.vmem [resolvable:$true] %s263
          %269 = dma.hbm_to_vmem [thread:$0]  %s1, 6144, %s264, [#allocation8], 256, 256, 16
        $region16: #{encode_net_forward.1} parent=11 // pred_fallthru
          _
        // Predicated region
        $region17: #{encode_net_forward.1} parent=11 // pred_check
          %p270 = pneg %p90
        $region18: #{encode_net_forward.1} parent=11 // pred_check_branch
          %272 = sbr.rel (%p270) target = $region20
        $region19: #{encode_net_forward.1} parent=11 // pred_region
          %s274 = ssub.s32 512, 512
          %275 = vsyncadd [#allocation8], %s274
          %s276 = sshll.u32 [#allocation9], 4
          %s277 = int_to_ptr.vmem [resolvable:$true] %s276
          %282 = dma.hbm_to_vmem [thread:$0]  %s2, 512, %s277, [#allocation8], 128, 128, 8
        $region20: #{encode_net_forward.1} parent=11 // pred_fallthru
          _
        // Predicated region
        $region21: #{encode_net_forward.1} parent=11 // pred_check
          %p283 = pneg %p111
        $region22: #{encode_net_forward.1} parent=11 // pred_check_branch
          %285 = sbr.rel (%p283) target = $region24
        $region23: #{encode_net_forward.1} parent=11 // pred_region
          %s287 = ssub.s32 32, 32
          %288 = vsyncadd [#allocation11], %s287
          %s290 = sshll.u32 [#allocation10], 4
          %s291 = int_to_ptr.vmem [resolvable:$true] %s290
          %293 = dma.hbm_to_vmem [thread:$0]  %s3, 32, %s291, [#allocation11]
        $region24: #{encode_net_forward.1} parent=11 // pred_fallthru
          _
        // Predicated region
        $region25: #{encode_net_forward.1} parent=11 // pred_check
          %p294 = pneg %p132
        $region26: #{encode_net_forward.1} parent=11 // pred_check_branch
          %296 = sbr.rel (%p294) target = $region28
        $region27: #{encode_net_forward.1} parent=11 // pred_region
          %s298 = ssub.s32 49152, 49152
          %299 = vsyncadd [#allocation11], %s298
          %s300 = sshll.u32 [#allocation12], 4
          %s301 = int_to_ptr.vmem [resolvable:$true] %s300
          %306 = dma.hbm_to_vmem [thread:$0]  %s4, 49152, %s301, [#allocation11], 256, 256, 16
        $region28: #{encode_net_forward.1} parent=11 // pred_fallthru
          _
        // Predicated region
        $region29: #{encode_net_forward.1} parent=11 // pred_check
          %p307 = pneg %p153
        $region30: #{encode_net_forward.1} parent=11 // pred_check_branch
          %309 = sbr.rel (%p307) target = $region32
        $region31: #{encode_net_forward.1} parent=11 // pred_region
          %s311 = ssub.s32 256, 256
          %312 = vsyncadd [#allocation14], %s311
          %s313 = sshll.u32 [#allocation13], 4
          %s314 = int_to_ptr.vmem [resolvable:$true] %s313
          %319 = dma.hbm_to_vmem [thread:$0]  %s5, 256, %s314, [#allocation14], 128, 128, 8
        $region32: #{encode_net_forward.1} parent=11 // pred_fallthru
          _
        // Predicated region
        $region33: #{encode_net_forward.1} parent=11 // pred_check
          %p320 = pneg %p174
        $region34: #{encode_net_forward.1} parent=11 // pred_check_branch
          %322 = sbr.rel (%p320) target = $region36
        $region35: #{encode_net_forward.1} parent=11 // pred_region
          %s324 = ssub.s32 32, 32
          %325 = vsyncadd [#allocation14], %s324
          %s327 = sshll.u32 [#allocation15], 4
          %s328 = int_to_ptr.vmem [resolvable:$true] %s327
          %330 = dma.hbm_to_vmem [thread:$0]  %s6, 32, %s328, [#allocation14]
        $region36: #{encode_net_forward.1} parent=11 // pred_fallthru
          _
        // Predicated region
        $region37: #{encode_net_forward.1} parent=11 // pred_check
          %p331 = pneg %p195
        $region38: #{encode_net_forward.1} parent=11 // pred_check_branch
          %333 = sbr.rel (%p331) target = $region40
        $region39: #{encode_net_forward.1} parent=11 // pred_region
          %s335 = ssub.s32 49152, 49152
          %336 = vsyncadd [#allocation17], %s335
          %s337 = sshll.u32 [#allocation16], 4
          %s338 = int_to_ptr.vmem [resolvable:$true] %s337
          %343 = dma.hbm_to_vmem [thread:$0]  %s7, 49152, %s338, [#allocation17], 512, 512, 32
        $region40: #{encode_net_forward.1} parent=11 // pred_fallthru
          _
        // Predicated region
        $region41: #{encode_net_forward.1} parent=11 // pred_check
          %p344 = pneg %p216
        $region42: #{encode_net_forward.1} parent=11 // pred_check_branch
          %346 = sbr.rel (%p344) target = $region44
        $region43: #{encode_net_forward.1} parent=11 // pred_region
          %s348 = ssub.s32 64, 64
          %349 = vsyncadd [#allocation17], %s348
          %s351 = sshll.u32 [#allocation18], 4
          %s352 = int_to_ptr.vmem [resolvable:$true] %s351
          %354 = dma.hbm_to_vmem [thread:$0]  %s8, 64, %s352, [#allocation17]
        $region44: #{encode_net_forward.1} parent=11 // pred_fallthru
          _
      $region12: #{encode_net_forward.1} parent=5 // pred_fallthru
        _
      %p355 = scmp.lt.s32.totalorder %s22, 2
      // Predicated region
      $region45: #{encode_net_forward.1} parent=5 // pred_check
        %p356 = pneg %p355
      $region46: #{encode_net_forward.1} parent=5 // pred_check_branch
        %358 = sbr.rel (%p356) target = $region48
      $region47: #{encode_net_forward.1} parent=5 // pred_region
        // Predicated region
        $region49: #{encode_net_forward.1} parent=47 // pred_check
          %p359 = pneg %p42
        $region50: #{encode_net_forward.1} parent=47 // pred_check_branch
          %361 = sbr.rel (%p359) target = $region52
        $region51: #{encode_net_forward.1} parent=47 // pred_region
          %s362 = sand.u32 %s32, 1
          %s363 = scalar_lea.sflag [#allocation6], %s362
          %s364 = sand.u32 %s32, 1
          %s365 = smul.addr %s364, 32
          %s366 = scalar_lea.vmem [#allocation5], %s365
          %s368 = ssub.s32 512, 512
          %369 = vsyncadd %s363, %s368
          %s370 = smul.addr %s22, 4
          %s371 = smul.addr %s370, 128
          %s372 = scalar_lea.hbm %s0, %s371
          %s373 = sshll.u32 %s366, 4
          %s374 = int_to_ptr.vmem [resolvable:$true] %s373
          %379 = dma.hbm_to_vmem [thread:$0]  %s372, 512, %s374, %s363, 128, 128, 8
        $region52: #{encode_net_forward.1} parent=47 // pred_fallthru
          _
      $region48: #{encode_net_forward.1} parent=5 // pred_fallthru
        _
      %p380 = scmp.le.s32.totalorder 1, %s22
      %p381 = scmp.lt.s32.totalorder %s22, 3
      %p382 = pnand %p380, %p381
      %p383 = pneg %p382
      // Predicated region
      $region53: #{encode_net_forward.1} parent=5 // pred_check
        _
      $region54: #{encode_net_forward.1} parent=5 // pred_check_branch
        %385 = sbr.rel (%p382) target = $region56
      $region55: #{encode_net_forward.1} parent=5 // pred_region
        %s386 = ssub.s32 %s22, 1
        %s387 = sand.u32 %s35, 1
        %s388 = scalar_lea.sflag [#allocation6], %s387
        %s389 = sand.u32 %s35, 1
        %s390 = smul.addr %s389, 32
        %s391 = scalar_lea.vmem [#allocation5], %s390
        // Predicated region
        $region57: #{encode_net_forward.1} parent=55 // pred_check
          %p392 = pneg %p48
        $region58: #{encode_net_forward.1} parent=55 // pred_check_branch
          %394 = sbr.rel (%p392) target = $region60
        $region59: #{encode_net_forward.1} parent=55 // pred_region
          %395 = dma.done %s388, 512
        $region60: #{encode_net_forward.1} parent=55 // pred_fallthru
          _
        // Predicated region
        $region61: #{encode_net_forward.1} parent=55 // pred_check
          %p396 = pneg %p69
        $region62: #{encode_net_forward.1} parent=55 // pred_check_branch
          %398 = sbr.rel (%p396) target = $region64
        $region63: #{encode_net_forward.1} parent=55 // pred_region
          %399 = dma.done [#allocation8], 6144
        $region64: #{encode_net_forward.1} parent=55 // pred_fallthru
          _
        // Predicated region
        $region65: #{encode_net_forward.1} parent=55 // pred_check
          %p400 = pneg %p90
        $region66: #{encode_net_forward.1} parent=55 // pred_check_branch
          %402 = sbr.rel (%p400) target = $region68
        $region67: #{encode_net_forward.1} parent=55 // pred_region
          %403 = dma.done [#allocation8], 512
        $region68: #{encode_net_forward.1} parent=55 // pred_fallthru
          _
        // Predicated region
        $region69: #{encode_net_forward.1} parent=55 // pred_check
          %p404 = pneg %p111
        $region70: #{encode_net_forward.1} parent=55 // pred_check_branch
          %406 = sbr.rel (%p404) target = $region72
        $region71: #{encode_net_forward.1} parent=55 // pred_region
          %407 = dma.done [#allocation11], 32
        $region72: #{encode_net_forward.1} parent=55 // pred_fallthru
          _
        // Predicated region
        $region73: #{encode_net_forward.1} parent=55 // pred_check
          %p408 = pneg %p132
        $region74: #{encode_net_forward.1} parent=55 // pred_check_branch
          %410 = sbr.rel (%p408) target = $region76
        $region75: #{encode_net_forward.1} parent=55 // pred_region
          %411 = dma.done [#allocation11], 49152
        $region76: #{encode_net_forward.1} parent=55 // pred_fallthru
          _
        // Predicated region
        $region77: #{encode_net_forward.1} parent=55 // pred_check
          %p412 = pneg %p153
        $region78: #{encode_net_forward.1} parent=55 // pred_check_branch
          %414 = sbr.rel (%p412) target = $region80
        $region79: #{encode_net_forward.1} parent=55 // pred_region
          %415 = dma.done [#allocation14], 256
        $region80: #{encode_net_forward.1} parent=55 // pred_fallthru
          _
        // Predicated region
        $region81: #{encode_net_forward.1} parent=55 // pred_check
          %p416 = pneg %p174
        $region82: #{encode_net_forward.1} parent=55 // pred_check_branch
          %418 = sbr.rel (%p416) target = $region84
        $region83: #{encode_net_forward.1} parent=55 // pred_region
          %419 = dma.done [#allocation14], 32
        $region84: #{encode_net_forward.1} parent=55 // pred_fallthru
          _
        // Predicated region
        $region85: #{encode_net_forward.1} parent=55 // pred_check
          %p420 = pneg %p195
        $region86: #{encode_net_forward.1} parent=55 // pred_check_branch
          %422 = sbr.rel (%p420) target = $region88
        $region87: #{encode_net_forward.1} parent=55 // pred_region
          %423 = dma.done [#allocation17], 49152
        $region88: #{encode_net_forward.1} parent=55 // pred_fallthru
          _
        // Predicated region
        $region89: #{encode_net_forward.1} parent=55 // pred_check
          %p424 = pneg %p216
        $region90: #{encode_net_forward.1} parent=55 // pred_check_branch
          %426 = sbr.rel (%p424) target = $region92
        $region91: #{encode_net_forward.1} parent=55 // pred_region
          %427 = dma.done [#allocation17], 64
        $region92: #{encode_net_forward.1} parent=55 // pred_fallthru
          _
        %s428 = sand.u32 %s35, 1
        %s429 = scalar_lea.sflag [#allocation6], %s428
        %s430 = sand.u32 %s35, 1
        %s431 = smul.addr %s430, 32
        %s432 = scalar_lea.vmem [#allocation5], %s431
        %p433 = pneg %p48
        %p434 = pneg %p45
        %p435 = pneg %p69
        %p436 = pneg %p66
        %p437 = pneg %p90
        %p438 = pneg %p87
        %p439 = pneg %p111
        %p440 = pneg %p108
        %p441 = pneg %p132
        %p442 = pneg %p129
        %p443 = pneg %p153
        %p444 = pneg %p150
        %p445 = pneg %p174
        %p446 = pneg %p171
        %p447 = pneg %p195
        %p448 = pneg %p192
        %p449 = pneg %p216
        %p450 = pneg %p213
        %p451 = pneg %p242
        %p452 = pneg %p239
        %p453 = scmp.lt.s32.totalorder %s27, 1
        %s454 = scalar_select %p453, %s27, 1
        %s455 = smul.addr %s454, 4
        %s456 = smul.addr %s455, 8
        %s457 = scalar_lea.vmem %s9, %s456
        %p458 = scmp.lt.s32.totalorder %s27, 1
        %s459 = scalar_select %p458, %s27, 1
        %s460 = smul.addr %s459, 4
        %s461 = smul.addr %s460, 8
        %s462 = scalar_lea.vmem %s9, %s461
        %v463 = vld [vmem:[%s391] sm:$0xff]
        %v464 = vld [vmem:[%s391 + $0x8] sm:$0xff]
        %v465 = vld [vmem:[%s391 + $0x10] sm:$0xff]
        %v466 = vld [vmem:[%s391 + $0x18] sm:$0xff]
        %vm467 = vcmask 261120
        %468 = vst.msk [vmem:[#allocation2] sm:$0xff] %vm467, 0.0
        %469 = vst.msk [vmem:[#allocation2 + $0x8] sm:$0xff] %vm467, 0.0
        %470 = vst.msk [vmem:[#allocation2 + $0x10] sm:$0xff] %vm467, 0.0
        %471 = vst.msk [vmem:[#allocation2 + $0x18] sm:$0xff] %vm467, 0.0
        %472 = vst.msk [vmem:[#allocation2 + $0x20] sm:$0xff] %vm467, 0.0
        %vm473 = vcmask 253952
        %474 = vst.msk [vmem:[#allocation2 + $0x28] sm:$0x1] %vm473, 0.0
        %475 = vst.msk [vmem:[#allocation2 + $0x8] sm:$0xff] %vm467, %v463
        %476 = vst.msk [vmem:[#allocation2 + $0x10] sm:$0xff] %vm467, %v464
        %477 = vst.msk [vmem:[#allocation2 + $0x18] sm:$0xff] %vm467, %v465
        %478 = vst.msk [vmem:[#allocation2 + $0x20] sm:$0xff] %vm467, %v466
        %v479 = vld [vmem:[#allocation2 + $0x7] sm:$0xff]
        %v480 = vld [vmem:[#allocation2 + $0xf] sm:$0xff]
        %v481 = vld [vmem:[#allocation2 + $0x17] sm:$0xff]
        %v482 = vld [vmem:[#allocation2 + $0x1f] sm:$0xff]
        %v483 = vld [vmem:[#allocation7] sm:$0xff]
        %v484 = vld [vmem:[#allocation7 + $0x8] sm:$0xff]
        %v485 = vld [vmem:[#allocation7 + $0x10] sm:$0xff]
        %v486 = vld [vmem:[#allocation7 + $0x18] sm:$0xff]
        %v487 = vld [vmem:[#allocation7 + $0x20] sm:$0xff]
        %v488 = vld [vmem:[#allocation7 + $0x28] sm:$0xff]
        %v489 = vld [vmem:[#allocation7 + $0x30] sm:$0xff]
        %v490 = vld [vmem:[#allocation7 + $0x38] sm:$0xff]
        %s491 = scalar_lea.vmem [#allocation7], 64
        %v492 = vld [vmem:[%s491] sm:$0xff]
        %v493 = vld [vmem:[%s491 + $0x8] sm:$0xff]
        %v494 = vld [vmem:[%s491 + $0x10] sm:$0xff]
        %v495 = vld [vmem:[%s491 + $0x18] sm:$0xff]
        %v496 = vld [vmem:[%s491 + $0x20] sm:$0xff]
        %v497 = vld [vmem:[%s491 + $0x28] sm:$0xff]
        %v498 = vld [vmem:[%s491 + $0x30] sm:$0xff]
        %v499 = vld [vmem:[%s491 + $0x38] sm:$0xff]
        %v500 = vld [vmem:[#allocation2 + $0x8] sm:$0xff]
        %v501 = vld [vmem:[#allocation2 + $0x10] sm:$0xff]
        %v502 = vld [vmem:[#allocation2 + $0x18] sm:$0xff]
        %v503 = vld [vmem:[#allocation2 + $0x20] sm:$0xff]
        %s504 = scalar_lea.vmem [#allocation7], 128
        %v505 = vld [vmem:[%s504] sm:$0xff]
        %v506 = vld [vmem:[%s504 + $0x8] sm:$0xff]
        %v507 = vld [vmem:[%s504 + $0x10] sm:$0xff]
        %v508 = vld [vmem:[%s504 + $0x18] sm:$0xff]
        %v509 = vld [vmem:[%s504 + $0x20] sm:$0xff]
        %v510 = vld [vmem:[%s504 + $0x28] sm:$0xff]
        %v511 = vld [vmem:[%s504 + $0x30] sm:$0xff]
        %v512 = vld [vmem:[%s504 + $0x38] sm:$0xff]
        %v514 = vsel %vm467, %v500, 0
        %v517 = vsel %vm467, %v501, 0
        %v520 = vsel %vm467, %v502, 0
        %v523 = vsel %vm467, %v503, 0
        %525 = vmatprep.subr.mxu0 0.0
        %526 = vmatpush1.msra.mxu0 0.0
        %527 = vmatprep.subr.mxu0 0.0
        %528 = vmatpush1.msra.mxu0 0.0
        %529 = vmatprep.subr.mxu0 0.0
        %530 = vmatpush1.msra.mxu0 0.0
        %531 = vmatprep.subr.mxu0 0.0
        %532 = vmatpush1.msra.mxu0 0.0
        %533 = vmatprep.subr.mxu0 0.0
        %534 = vmatpush1.msra.mxu0 0.0
        %535 = vmatprep.subr.mxu0 0.0
        %536 = vmatpush1.msra.mxu0 0.0
        %537 = vmatprep.subr.mxu0 0.0
        %538 = vmatpush1.msra.mxu0 0.0
        %539 = vmatprep.subr.mxu0 0.0
        %540 = vmatpush1.msra.mxu0 0.0
        %541 = vmatprep.subr.mxu0 0.0
        %542 = vmatpush1.msra.mxu0 0.0
        %543 = vmatprep.subr.mxu0 0.0
        %544 = vmatpush1.msra.mxu0 0.0
        %545 = vmatprep.subr.mxu0 0.0
        %546 = vmatpush1.msra.mxu0 0.0
        %547 = vmatprep.subr.mxu0 0.0
        %548 = vmatpush1.msra.mxu0 0.0
        %549 = vmatprep.subr.mxu0 %v512
        %550 = vmatpush1.msra.mxu0 %v511
        %551 = vmatprep.subr.mxu0 %v510
        %552 = vmatpush1.msra.mxu0 %v509
        %553 = vmatprep.subr.mxu0 %v508
        %554 = vmatpush1.msra.mxu0 %v507
        %555 = vmatprep.subr.mxu0 %v506
        %556 = vmatpush1.msra.mxu0 %v505
        %557 = vmatprep.subr.mxu0 0.0
        %558 = vmatpush2.msra.mxu0 0.0
        %559 = vmatprep.subr.mxu0 0.0
        %560 = vmatpush2.msra.mxu0 0.0
        %561 = vmatprep.subr.mxu0 0.0
        %562 = vmatpush2.msra.mxu0 0.0
        %563 = vmatprep.subr.mxu0 0.0
        %564 = vmatpush2.msra.mxu0 0.0
        %565 = vmatprep.subr.mxu0 0.0
        %566 = vmatpush2.msra.mxu0 0.0
        %567 = vmatprep.subr.mxu0 0.0
        %568 = vmatpush2.msra.mxu0 0.0
        %569 = vmatprep.subr.mxu0 0.0
        %570 = vmatpush2.msra.mxu0 0.0
        %571 = vmatprep.subr.mxu0 0.0
        %572 = vmatpush2.msra.mxu0 0.0
        %573 = vmatprep.subr.mxu0 0.0
        %574 = vmatpush2.msra.mxu0 0.0
        %575 = vmatprep.subr.mxu0 0.0
        %576 = vmatpush2.msra.mxu0 0.0
        %577 = vmatprep.subr.mxu0 0.0
        %578 = vmatpush2.msra.mxu0 0.0
        %579 = vmatprep.subr.mxu0 0.0
        %580 = vmatpush2.msra.mxu0 0.0
        %581 = vmatprep.subr.mxu0 0.0
        %582 = vmatpush2.msra.mxu0 0.0
        %583 = vmatprep.subr.mxu0 0.0
        %584 = vmatpush2.msra.mxu0 0.0
        %585 = vmatprep.subr.mxu0 0.0
        %586 = vmatpush2.msra.mxu0 0.0
        %587 = vmatprep.subr.mxu0 0.0
        %588 = vmatpush2.msra.mxu0 0.0
        %589 = vmatprep.mubr.f32.mxu0 0.0
        %590 = vmatmul.mubr.f32.gmra.mxu0 %v514
        %v591 = vpop.f32.mrf.mxu0
        %v592 = vadd.f32 0.0, %v591
        %v593 = vpop.f32.mrf.mxu0
        %v594 = vadd.f32 0.0, %v593
        %595 = vmatprep.mubr.f32.mxu0 0.0
        %596 = vmatmul.mubr.f32.gmra.mxu0 %v517
        %v597 = vpop.f32.mrf.mxu0
        %v598 = vadd.f32 0.0, %v597
        %v599 = vpop.f32.mrf.mxu0
        %v600 = vadd.f32 0.0, %v599
        %601 = vmatprep.mubr.f32.mxu0 0.0
        %602 = vmatmul.mubr.f32.gmra.mxu0 %v520
        %v603 = vpop.f32.mrf.mxu0
        %v604 = vadd.f32 0.0, %v603
        %v605 = vpop.f32.mrf.mxu0
        %v606 = vadd.f32 0.0, %v605
        %607 = vmatprep.mubr.f32.mxu0 0.0
        %608 = vmatmul.mubr.f32.gmra.mxu0 %v523
        %v609 = vpop.f32.mrf.mxu0
        %v610 = vadd.f32 0.0, %v609
        %v611 = vpop.f32.mrf.mxu0
        %v612 = vadd.f32 0.0, %v611
        %613 = vdwg.mxu0
        %v615 = vsel %vm467, %v479, 0
        %v618 = vsel %vm467, %v480, 0
        %v621 = vsel %vm467, %v481, 0
        %v624 = vsel %vm467, %v482, 0
        %626 = vmatprep.subr.mxu0 0.0
        %627 = vmatpush1.msra.mxu0 0.0
        %628 = vmatprep.subr.mxu0 0.0
        %629 = vmatpush1.msra.mxu0 0.0
        %630 = vmatprep.subr.mxu0 0.0
        %631 = vmatpush1.msra.mxu0 0.0
        %632 = vmatprep.subr.mxu0 0.0
        %633 = vmatpush1.msra.mxu0 0.0
        %634 = vmatprep.subr.mxu0 0.0
        %635 = vmatpush1.msra.mxu0 0.0
        %636 = vmatprep.subr.mxu0 0.0
        %637 = vmatpush1.msra.mxu0 0.0
        %638 = vmatprep.subr.mxu0 0.0
        %639 = vmatpush1.msra.mxu0 0.0
        %640 = vmatprep.subr.mxu0 0.0
        %641 = vmatpush1.msra.mxu0 0.0
        %642 = vmatprep.subr.mxu0 0.0
        %643 = vmatpush1.msra.mxu0 0.0
        %644 = vmatprep.subr.mxu0 0.0
        %645 = vmatpush1.msra.mxu0 0.0
        %646 = vmatprep.subr.mxu0 0.0
        %647 = vmatpush1.msra.mxu0 0.0
        %648 = vmatprep.subr.mxu0 0.0
        %649 = vmatpush1.msra.mxu0 0.0
        %650 = vmatprep.subr.mxu0 %v490
        %651 = vmatpush1.msra.mxu0 %v489
        %652 = vmatprep.subr.mxu0 %v488
        %653 = vmatpush1.msra.mxu0 %v487
        %654 = vmatprep.subr.mxu0 %v486
        %655 = vmatpush1.msra.mxu0 %v485
        %656 = vmatprep.subr.mxu0 %v484
        %657 = vmatpush1.msra.mxu0 %v483
        %658 = vmatprep.subr.mxu0 0.0
        %659 = vmatpush2.msra.mxu0 0.0
        %660 = vmatprep.subr.mxu0 0.0
        %661 = vmatpush2.msra.mxu0 0.0
        %662 = vmatprep.subr.mxu0 0.0
        %663 = vmatpush2.msra.mxu0 0.0
        %664 = vmatprep.subr.mxu0 0.0
        %665 = vmatpush2.msra.mxu0 0.0
        %666 = vmatprep.subr.mxu0 0.0
        %667 = vmatpush2.msra.mxu0 0.0
        %668 = vmatprep.subr.mxu0 0.0
        %669 = vmatpush2.msra.mxu0 0.0
        %670 = vmatprep.subr.mxu0 0.0
        %671 = vmatpush2.msra.mxu0 0.0
        %672 = vmatprep.subr.mxu0 0.0
        %673 = vmatpush2.msra.mxu0 0.0
        %674 = vmatprep.subr.mxu0 0.0
        %675 = vmatpush2.msra.mxu0 0.0
        %676 = vmatprep.subr.mxu0 0.0
        %677 = vmatpush2.msra.mxu0 0.0
        %678 = vmatprep.subr.mxu0 0.0
        %679 = vmatpush2.msra.mxu0 0.0
        %680 = vmatprep.subr.mxu0 0.0
        %681 = vmatpush2.msra.mxu0 0.0
        %682 = vmatprep.subr.mxu0 0.0
        %683 = vmatpush2.msra.mxu0 0.0
        %684 = vmatprep.subr.mxu0 0.0
        %685 = vmatpush2.msra.mxu0 0.0
        %686 = vmatprep.subr.mxu0 0.0
        %687 = vmatpush2.msra.mxu0 0.0
        %688 = vmatprep.subr.mxu0 0.0
        %689 = vmatpush2.msra.mxu0 0.0
        %690 = vmatprep.mubr.f32.mxu0 0.0
        %691 = vmatmul.mubr.f32.gmra.mxu0 %v615
        %v692 = vpop.f32.mrf.mxu0
        %v693 = vadd.f32 %v592, %v692
        %v694 = vpop.f32.mrf.mxu0
        %v695 = vadd.f32 %v594, %v694
        %696 = vmatprep.mubr.f32.mxu0 0.0
        %697 = vmatmul.mubr.f32.gmra.mxu0 %v618
        %v698 = vpop.f32.mrf.mxu0
        %v699 = vadd.f32 %v598, %v698
        %v700 = vpop.f32.mrf.mxu0
        %v701 = vadd.f32 %v600, %v700
        %702 = vmatprep.mubr.f32.mxu0 0.0
        %703 = vmatmul.mubr.f32.gmra.mxu0 %v621
        %v704 = vpop.f32.mrf.mxu0
        %v705 = vadd.f32 %v604, %v704
        %v706 = vpop.f32.mrf.mxu0
        %v707 = vadd.f32 %v606, %v706
        %708 = vmatprep.mubr.f32.mxu0 0.0
        %709 = vmatmul.mubr.f32.gmra.mxu0 %v624
        %v710 = vpop.f32.mrf.mxu0
        %v711 = vadd.f32 %v610, %v710
        %v712 = vpop.f32.mrf.mxu0
        %v713 = vadd.f32 %v612, %v712
        %714 = vdwg.mxu0
        %s715 = scalar_lea.vmem [#allocation7], 192
        %v716 = vld [vmem:[%s715] sm:$0xff]
        %v717 = vld [vmem:[%s715 + $0x8] sm:$0xff]
        %v718 = vld [vmem:[%s715 + $0x10] sm:$0xff]
        %v719 = vld [vmem:[%s715 + $0x18] sm:$0xff]
        %v720 = vld [vmem:[%s715 + $0x20] sm:$0xff]
        %v721 = vld [vmem:[%s715 + $0x28] sm:$0xff]
        %v722 = vld [vmem:[%s715 + $0x30] sm:$0xff]
        %v723 = vld [vmem:[%s715 + $0x38] sm:$0xff]
        %724 = vmatprep.subr.mxu0 0.0
        %725 = vmatpush1.msra.mxu0 0.0
        %726 = vmatprep.subr.mxu0 0.0
        %727 = vmatpush1.msra.mxu0 0.0
        %728 = vmatprep.subr.mxu0 0.0
        %729 = vmatpush1.msra.mxu0 0.0
        %730 = vmatprep.subr.mxu0 0.0
        %731 = vmatpush1.msra.mxu0 0.0
        %732 = vmatprep.subr.mxu0 0.0
        %733 = vmatpush1.msra.mxu0 0.0
        %734 = vmatprep.subr.mxu0 0.0
        %735 = vmatpush1.msra.mxu0 0.0
        %736 = vmatprep.subr.mxu0 0.0
        %737 = vmatpush1.msra.mxu0 0.0
        %738 = vmatprep.subr.mxu0 0.0
        %739 = vmatpush1.msra.mxu0 0.0
        %740 = vmatprep.subr.mxu0 0.0
        %741 = vmatpush1.msra.mxu0 0.0
        %742 = vmatprep.subr.mxu0 0.0
        %743 = vmatpush1.msra.mxu0 0.0
        %744 = vmatprep.subr.mxu0 0.0
        %745 = vmatpush1.msra.mxu0 0.0
        %746 = vmatprep.subr.mxu0 0.0
        %747 = vmatpush1.msra.mxu0 0.0
        %748 = vmatprep.subr.mxu0 %v723
        %749 = vmatpush1.msra.mxu0 %v722
        %750 = vmatprep.subr.mxu0 %v721
        %751 = vmatpush1.msra.mxu0 %v720
        %752 = vmatprep.subr.mxu0 %v719
        %753 = vmatpush1.msra.mxu0 %v718
        %754 = vmatprep.subr.mxu0 %v717
        %755 = vmatpush1.msra.mxu0 %v716
        %756 = vmatprep.subr.mxu0 0.0
        %757 = vmatpush2.msra.mxu0 0.0
        %758 = vmatprep.subr.mxu0 0.0
        %759 = vmatpush2.msra.mxu0 0.0
        %760 = vmatprep.subr.mxu0 0.0
        %761 = vmatpush2.msra.mxu0 0.0
        %762 = vmatprep.subr.mxu0 0.0
        %763 = vmatpush2.msra.mxu0 0.0
        %764 = vmatprep.subr.mxu0 0.0
        %765 = vmatpush2.msra.mxu0 0.0
        %766 = vmatprep.subr.mxu0 0.0
        %767 = vmatpush2.msra.mxu0 0.0
        %768 = vmatprep.subr.mxu0 0.0
        %769 = vmatpush2.msra.mxu0 0.0
        %770 = vmatprep.subr.mxu0 0.0
        %771 = vmatpush2.msra.mxu0 0.0
        %772 = vmatprep.subr.mxu0 0.0
        %773 = vmatpush2.msra.mxu0 0.0
        %774 = vmatprep.subr.mxu0 0.0
        %775 = vmatpush2.msra.mxu0 0.0
        %776 = vmatprep.subr.mxu0 0.0
        %777 = vmatpush2.msra.mxu0 0.0
        %778 = vmatprep.subr.mxu0 0.0
        %779 = vmatpush2.msra.mxu0 0.0
        %780 = vmatprep.subr.mxu0 0.0
        %781 = vmatpush2.msra.mxu0 0.0
        %782 = vmatprep.subr.mxu0 0.0
        %783 = vmatpush2.msra.mxu0 0.0
        %784 = vmatprep.subr.mxu0 0.0
        %785 = vmatpush2.msra.mxu0 0.0
        %786 = vmatprep.subr.mxu0 0.0
        %787 = vmatpush2.msra.mxu0 0.0
        %788 = vmatprep.mubr.f32.mxu0 0.0
        %789 = vmatmul.mubr.f32.gmra.mxu0 %v514
        %v790 = vpop.f32.mrf.mxu0
        %v791 = vadd.f32 0.0, %v790
        %v792 = vpop.f32.mrf.mxu0
        %v793 = vadd.f32 0.0, %v792
        %794 = vmatprep.mubr.f32.mxu0 0.0
        %795 = vmatmul.mubr.f32.gmra.mxu0 %v517
        %v796 = vpop.f32.mrf.mxu0
        %v797 = vadd.f32 0.0, %v796
        %v798 = vpop.f32.mrf.mxu0
        %v799 = vadd.f32 0.0, %v798
        %800 = vmatprep.mubr.f32.mxu0 0.0
        %801 = vmatmul.mubr.f32.gmra.mxu0 %v520
        %v802 = vpop.f32.mrf.mxu0
        %v803 = vadd.f32 0.0, %v802
        %v804 = vpop.f32.mrf.mxu0
        %v805 = vadd.f32 0.0, %v804
        %806 = vmatprep.mubr.f32.mxu0 0.0
        %807 = vmatmul.mubr.f32.gmra.mxu0 %v523
        %v808 = vpop.f32.mrf.mxu0
        %v809 = vadd.f32 0.0, %v808
        %v810 = vpop.f32.mrf.mxu0
        %v811 = vadd.f32 0.0, %v810
        %812 = vdwg.mxu0
        %813 = vmatprep.subr.mxu0 0.0
        %814 = vmatpush1.msra.mxu0 0.0
        %815 = vmatprep.subr.mxu0 0.0
        %816 = vmatpush1.msra.mxu0 0.0
        %817 = vmatprep.subr.mxu0 0.0
        %818 = vmatpush1.msra.mxu0 0.0
        %819 = vmatprep.subr.mxu0 0.0
        %820 = vmatpush1.msra.mxu0 0.0
        %821 = vmatprep.subr.mxu0 0.0
        %822 = vmatpush1.msra.mxu0 0.0
        %823 = vmatprep.subr.mxu0 0.0
        %824 = vmatpush1.msra.mxu0 0.0
        %825 = vmatprep.subr.mxu0 0.0
        %826 = vmatpush1.msra.mxu0 0.0
        %827 = vmatprep.subr.mxu0 0.0
        %828 = vmatpush1.msra.mxu0 0.0
        %829 = vmatprep.subr.mxu0 0.0
        %830 = vmatpush1.msra.mxu0 0.0
        %831 = vmatprep.subr.mxu0 0.0
        %832 = vmatpush1.msra.mxu0 0.0
        %833 = vmatprep.subr.mxu0 0.0
        %834 = vmatpush1.msra.mxu0 0.0
        %835 = vmatprep.subr.mxu0 0.0
        %836 = vmatpush1.msra.mxu0 0.0
        %837 = vmatprep.subr.mxu0 %v499
        %838 = vmatpush1.msra.mxu0 %v498
        %839 = vmatprep.subr.mxu0 %v497
        %840 = vmatpush1.msra.mxu0 %v496
        %841 = vmatprep.subr.mxu0 %v495
        %842 = vmatpush1.msra.mxu0 %v494
        %843 = vmatprep.subr.mxu0 %v493
        %844 = vmatpush1.msra.mxu0 %v492
        %845 = vmatprep.subr.mxu0 0.0
        %846 = vmatpush2.msra.mxu0 0.0
        %847 = vmatprep.subr.mxu0 0.0
        %848 = vmatpush2.msra.mxu0 0.0
        %849 = vmatprep.subr.mxu0 0.0
        %850 = vmatpush2.msra.mxu0 0.0
        %851 = vmatprep.subr.mxu0 0.0
        %852 = vmatpush2.msra.mxu0 0.0
        %853 = vmatprep.subr.mxu0 0.0
        %854 = vmatpush2.msra.mxu0 0.0
        %855 = vmatprep.subr.mxu0 0.0
        %856 = vmatpush2.msra.mxu0 0.0
        %857 = vmatprep.subr.mxu0 0.0
        %858 = vmatpush2.msra.mxu0 0.0
        %859 = vmatprep.subr.mxu0 0.0
        %860 = vmatpush2.msra.mxu0 0.0
        %861 = vmatprep.subr.mxu0 0.0
        %862 = vmatpush2.msra.mxu0 0.0
        %863 = vmatprep.subr.mxu0 0.0
        %864 = vmatpush2.msra.mxu0 0.0
        %865 = vmatprep.subr.mxu0 0.0
        %866 = vmatpush2.msra.mxu0 0.0
        %867 = vmatprep.subr.mxu0 0.0
        %868 = vmatpush2.msra.mxu0 0.0
        %869 = vmatprep.subr.mxu0 0.0
        %870 = vmatpush2.msra.mxu0 0.0
        %871 = vmatprep.subr.mxu0 0.0
        %872 = vmatpush2.msra.mxu0 0.0
        %873 = vmatprep.subr.mxu0 0.0
        %874 = vmatpush2.msra.mxu0 0.0
        %875 = vmatprep.subr.mxu0 0.0
        %876 = vmatpush2.msra.mxu0 0.0
        %877 = vmatprep.mubr.f32.mxu0 0.0
        %878 = vmatmul.mubr.f32.gmra.mxu0 %v615
        %v879 = vpop.f32.mrf.mxu0
        %v880 = vadd.f32 %v791, %v879
        %v881 = vpop.f32.mrf.mxu0
        %v882 = vadd.f32 %v793, %v881
        %883 = vmatprep.mubr.f32.mxu0 0.0
        %884 = vmatmul.mubr.f32.gmra.mxu0 %v618
        %v885 = vpop.f32.mrf.mxu0
        %v886 = vadd.f32 %v797, %v885
        %v887 = vpop.f32.mrf.mxu0
        %v888 = vadd.f32 %v799, %v887
        %889 = vmatprep.mubr.f32.mxu0 0.0
        %890 = vmatmul.mubr.f32.gmra.mxu0 %v621
        %v891 = vpop.f32.mrf.mxu0
        %v892 = vadd.f32 %v803, %v891
        %v893 = vpop.f32.mrf.mxu0
        %v894 = vadd.f32 %v805, %v893
        %895 = vmatprep.mubr.f32.mxu0 0.0
        %896 = vmatmul.mubr.f32.gmra.mxu0 %v624
        %v897 = vpop.f32.mrf.mxu0
        %v898 = vadd.f32 %v809, %v897
        %v899 = vpop.f32.mrf.mxu0
        %v900 = vadd.f32 %v811, %v899
        %901 = vdwg.mxu0
        %v902 = vld [vmem:[#allocation2 + $0x9] sm:$0xff]
        %v903 = vld [vmem:[#allocation2 + $0x11] sm:$0xff]
        %v904 = vld [vmem:[#allocation2 + $0x19] sm:$0xff]
        %v905 = vld [vmem:[#allocation2 + $0x21] sm:$0xff]
        %s906 = scalar_lea.vmem [#allocation7], 256
        %v907 = vld [vmem:[%s906] sm:$0xff]
        %v908 = vld [vmem:[%s906 + $0x8] sm:$0xff]
        %v909 = vld [vmem:[%s906 + $0x10] sm:$0xff]
        %v910 = vld [vmem:[%s906 + $0x18] sm:$0xff]
        %v911 = vld [vmem:[%s906 + $0x20] sm:$0xff]
        %v912 = vld [vmem:[%s906 + $0x28] sm:$0xff]
        %v913 = vld [vmem:[%s906 + $0x30] sm:$0xff]
        %v914 = vld [vmem:[%s906 + $0x38] sm:$0xff]
        %v916 = vsel %vm467, %v902, 0
        %v919 = vsel %vm467, %v903, 0
        %v922 = vsel %vm467, %v904, 0
        %v925 = vsel %vm467, %v905, 0
        %927 = vmatprep.subr.mxu0 0.0
        %928 = vmatpush1.msra.mxu0 0.0
        %929 = vmatprep.subr.mxu0 0.0
        %930 = vmatpush1.msra.mxu0 0.0
        %931 = vmatprep.subr.mxu0 0.0
        %932 = vmatpush1.msra.mxu0 0.0
        %933 = vmatprep.subr.mxu0 0.0
        %934 = vmatpush1.msra.mxu0 0.0
        %935 = vmatprep.subr.mxu0 0.0
        %936 = vmatpush1.msra.mxu0 0.0
        %937 = vmatprep.subr.mxu0 0.0
        %938 = vmatpush1.msra.mxu0 0.0
        %939 = vmatprep.subr.mxu0 0.0
        %940 = vmatpush1.msra.mxu0 0.0
        %941 = vmatprep.subr.mxu0 0.0
        %942 = vmatpush1.msra.mxu0 0.0
        %943 = vmatprep.subr.mxu0 0.0
        %944 = vmatpush1.msra.mxu0 0.0
        %945 = vmatprep.subr.mxu0 0.0
        %946 = vmatpush1.msra.mxu0 0.0
        %947 = vmatprep.subr.mxu0 0.0
        %948 = vmatpush1.msra.mxu0 0.0
        %949 = vmatprep.subr.mxu0 0.0
        %950 = vmatpush1.msra.mxu0 0.0
        %951 = vmatprep.subr.mxu0 %v914
        %952 = vmatpush1.msra.mxu0 %v913
        %953 = vmatprep.subr.mxu0 %v912
        %954 = vmatpush1.msra.mxu0 %v911
        %955 = vmatprep.subr.mxu0 %v910
        %956 = vmatpush1.msra.mxu0 %v909
        %957 = vmatprep.subr.mxu0 %v908
        %958 = vmatpush1.msra.mxu0 %v907
        %959 = vmatprep.subr.mxu0 0.0
        %960 = vmatpush2.msra.mxu0 0.0
        %961 = vmatprep.subr.mxu0 0.0
        %962 = vmatpush2.msra.mxu0 0.0
        %963 = vmatprep.subr.mxu0 0.0
        %964 = vmatpush2.msra.mxu0 0.0
        %965 = vmatprep.subr.mxu0 0.0
        %966 = vmatpush2.msra.mxu0 0.0
        %967 = vmatprep.subr.mxu0 0.0
        %968 = vmatpush2.msra.mxu0 0.0
        %969 = vmatprep.subr.mxu0 0.0
        %970 = vmatpush2.msra.mxu0 0.0
        %971 = vmatprep.subr.mxu0 0.0
        %972 = vmatpush2.msra.mxu0 0.0
        %973 = vmatprep.subr.mxu0 0.0
        %974 = vmatpush2.msra.mxu0 0.0
        %975 = vmatprep.subr.mxu0 0.0
        %976 = vmatpush2.msra.mxu0 0.0
        %977 = vmatprep.subr.mxu0 0.0
        %978 = vmatpush2.msra.mxu0 0.0
        %979 = vmatprep.subr.mxu0 0.0
        %980 = vmatpush2.msra.mxu0 0.0
        %981 = vmatprep.subr.mxu0 0.0
        %982 = vmatpush2.msra.mxu0 0.0
        %983 = vmatprep.subr.mxu0 0.0
        %984 = vmatpush2.msra.mxu0 0.0
        %985 = vmatprep.subr.mxu0 0.0
        %986 = vmatpush2.msra.mxu0 0.0
        %987 = vmatprep.subr.mxu0 0.0
        %988 = vmatpush2.msra.mxu0 0.0
        %989 = vmatprep.subr.mxu0 0.0
        %990 = vmatpush2.msra.mxu0 0.0
        %991 = vmatprep.mubr.f32.mxu0 0.0
        %992 = vmatmul.mubr.f32.gmra.mxu0 %v916
        %v993 = vpop.f32.mrf.mxu0
        %v994 = vadd.f32 0.0, %v993
        %v995 = vpop.f32.mrf.mxu0
        %v996 = vadd.f32 0.0, %v995
        %997 = vmatprep.mubr.f32.mxu0 0.0
        %998 = vmatmul.mubr.f32.gmra.mxu0 %v919
        %v999 = vpop.f32.mrf.mxu0
        %v1000 = vadd.f32 0.0, %v999
        %v1001 = vpop.f32.mrf.mxu0
        %v1002 = vadd.f32 0.0, %v1001
        %1003 = vmatprep.mubr.f32.mxu0 0.0
        %1004 = vmatmul.mubr.f32.gmra.mxu0 %v922
        %v1005 = vpop.f32.mrf.mxu0
        %v1006 = vadd.f32 0.0, %v1005
        %v1007 = vpop.f32.mrf.mxu0
        %v1008 = vadd.f32 0.0, %v1007
        %1009 = vmatprep.mubr.f32.mxu0 0.0
        %1010 = vmatmul.mubr.f32.gmra.mxu0 %v925
        %v1011 = vpop.f32.mrf.mxu0
        %v1012 = vadd.f32 0.0, %v1011
        %v1013 = vpop.f32.mrf.mxu0
        %v1014 = vadd.f32 0.0, %v1013
        %1015 = vdwg.mxu0
        %v1016 = vadd.f32 %v693, %v994
        %v1017 = vadd.f32 %v695, %v996
        %v1018 = vadd.f32 %v699, %v1000
        %v1019 = vadd.f32 %v701, %v1002
        %v1020 = vadd.f32 %v705, %v1006
        %v1021 = vadd.f32 %v707, %v1008
        %v1022 = vadd.f32 %v711, %v1012
        %v1023 = vadd.f32 %v713, %v1014
        %s1024 = scalar_lea.vmem [#allocation7], 320
        %v1025 = vld [vmem:[%s1024] sm:$0xff]
        %v1026 = vld [vmem:[%s1024 + $0x8] sm:$0xff]
        %v1027 = vld [vmem:[%s1024 + $0x10] sm:$0xff]
        %v1028 = vld [vmem:[%s1024 + $0x18] sm:$0xff]
        %v1029 = vld [vmem:[%s1024 + $0x20] sm:$0xff]
        %v1030 = vld [vmem:[%s1024 + $0x28] sm:$0xff]
        %v1031 = vld [vmem:[%s1024 + $0x30] sm:$0xff]
        %v1032 = vld [vmem:[%s1024 + $0x38] sm:$0xff]
        %1033 = vmatprep.subr.mxu0 0.0
        %1034 = vmatpush1.msra.mxu0 0.0
        %1035 = vmatprep.subr.mxu0 0.0
        %1036 = vmatpush1.msra.mxu0 0.0
        %1037 = vmatprep.subr.mxu0 0.0
        %1038 = vmatpush1.msra.mxu0 0.0
        %1039 = vmatprep.subr.mxu0 0.0
        %1040 = vmatpush1.msra.mxu0 0.0
        %1041 = vmatprep.subr.mxu0 0.0
        %1042 = vmatpush1.msra.mxu0 0.0
        %1043 = vmatprep.subr.mxu0 0.0
        %1044 = vmatpush1.msra.mxu0 0.0
        %1045 = vmatprep.subr.mxu0 0.0
        %1046 = vmatpush1.msra.mxu0 0.0
        %1047 = vmatprep.subr.mxu0 0.0
        %1048 = vmatpush1.msra.mxu0 0.0
        %1049 = vmatprep.subr.mxu0 0.0
        %1050 = vmatpush1.msra.mxu0 0.0
        %1051 = vmatprep.subr.mxu0 0.0
        %1052 = vmatpush1.msra.mxu0 0.0
        %1053 = vmatprep.subr.mxu0 0.0
        %1054 = vmatpush1.msra.mxu0 0.0
        %1055 = vmatprep.subr.mxu0 0.0
        %1056 = vmatpush1.msra.mxu0 0.0
        %1057 = vmatprep.subr.mxu0 %v1032
        %1058 = vmatpush1.msra.mxu0 %v1031
        %1059 = vmatprep.subr.mxu0 %v1030
        %1060 = vmatpush1.msra.mxu0 %v1029
        %1061 = vmatprep.subr.mxu0 %v1028
        %1062 = vmatpush1.msra.mxu0 %v1027
        %1063 = vmatprep.subr.mxu0 %v1026
        %1064 = vmatpush1.msra.mxu0 %v1025
        %1065 = vmatprep.subr.mxu0 0.0
        %1066 = vmatpush2.msra.mxu0 0.0
        %1067 = vmatprep.subr.mxu0 0.0
        %1068 = vmatpush2.msra.mxu0 0.0
        %1069 = vmatprep.subr.mxu0 0.0
        %1070 = vmatpush2.msra.mxu0 0.0
        %1071 = vmatprep.subr.mxu0 0.0
        %1072 = vmatpush2.msra.mxu0 0.0
        %1073 = vmatprep.subr.mxu0 0.0
        %1074 = vmatpush2.msra.mxu0 0.0
        %1075 = vmatprep.subr.mxu0 0.0
        %1076 = vmatpush2.msra.mxu0 0.0
        %1077 = vmatprep.subr.mxu0 0.0
        %1078 = vmatpush2.msra.mxu0 0.0
        %1079 = vmatprep.subr.mxu0 0.0
        %1080 = vmatpush2.msra.mxu0 0.0
        %1081 = vmatprep.subr.mxu0 0.0
        %1082 = vmatpush2.msra.mxu0 0.0
        %1083 = vmatprep.subr.mxu0 0.0
        %1084 = vmatpush2.msra.mxu0 0.0
        %1085 = vmatprep.subr.mxu0 0.0
        %1086 = vmatpush2.msra.mxu0 0.0
        %1087 = vmatprep.subr.mxu0 0.0
        %1088 = vmatpush2.msra.mxu0 0.0
        %1089 = vmatprep.subr.mxu0 0.0
        %1090 = vmatpush2.msra.mxu0 0.0
        %1091 = vmatprep.subr.mxu0 0.0
        %1092 = vmatpush2.msra.mxu0 0.0
        %1093 = vmatprep.subr.mxu0 0.0
        %1094 = vmatpush2.msra.mxu0 0.0
        %1095 = vmatprep.subr.mxu0 0.0
        %1096 = vmatpush2.msra.mxu0 0.0
        %1097 = vmatprep.mubr.f32.mxu0 0.0
        %1098 = vmatmul.mubr.f32.gmra.mxu0 %v916
        %v1099 = vpop.f32.mrf.mxu0
        %v1100 = vadd.f32 0.0, %v1099
        %v1101 = vpop.f32.mrf.mxu0
        %v1102 = vadd.f32 0.0, %v1101
        %1103 = vmatprep.mubr.f32.mxu0 0.0
        %1104 = vmatmul.mubr.f32.gmra.mxu0 %v919
        %v1105 = vpop.f32.mrf.mxu0
        %v1106 = vadd.f32 0.0, %v1105
        %v1107 = vpop.f32.mrf.mxu0
        %v1108 = vadd.f32 0.0, %v1107
        %1109 = vmatprep.mubr.f32.mxu0 0.0
        %1110 = vmatmul.mubr.f32.gmra.mxu0 %v922
        %v1111 = vpop.f32.mrf.mxu0
        %v1112 = vadd.f32 0.0, %v1111
        %v1113 = vpop.f32.mrf.mxu0
        %v1114 = vadd.f32 0.0, %v1113
        %1115 = vmatprep.mubr.f32.mxu0 0.0
        %1116 = vmatmul.mubr.f32.gmra.mxu0 %v925
        %v1117 = vpop.f32.mrf.mxu0
        %v1118 = vadd.f32 0.0, %v1117
        %v1119 = vpop.f32.mrf.mxu0
        %v1120 = vadd.f32 0.0, %v1119
        %1121 = vdwg.mxu0
        %v1122 = vadd.f32 %v880, %v1100
        %v1123 = vadd.f32 %v882, %v1102
        %v1124 = vadd.f32 %v886, %v1106
        %v1125 = vadd.f32 %v888, %v1108
        %v1126 = vadd.f32 %v892, %v1112
        %v1127 = vadd.f32 %v894, %v1114
        %v1128 = vadd.f32 %v898, %v1118
        %v1129 = vadd.f32 %v900, %v1120
        %v1130 = vmax.f32 %v1016, %v1122
        %v1131 = vmax.f32 %v1017, %v1123
        %v1132 = vmax.f32 %v1018, %v1124
        %v1133 = vmax.f32 %v1019, %v1125
        %v1134 = vmax.f32 %v1020, %v1126
        %v1135 = vmax.f32 %v1021, %v1127
        %v1136 = vmax.f32 %v1022, %v1128
        %v1137 = vmax.f32 %v1023, %v1129
        %v1138 = vld [vmem:[#allocation9] sm:$0xff]
        %v1139 = vld [vmem:[#allocation9 + $0x8] sm:$0xff]
        %v1141 = vsel %vm467, %v1138, 0
        %v1144 = vsel %vm467, %v1139, 0
        %1146 = vmatprep.subr.mxu0 0.0
        %1147 = vmatpush1.msra.mxu0 0.0
        %1148 = vmatprep.subr.mxu0 0.0
        %1149 = vmatpush1.msra.mxu0 0.0
        %1150 = vmatprep.subr.mxu0 0.0
        %1151 = vmatpush1.msra.mxu0 0.0
        %1152 = vmatprep.subr.mxu0 0.0
        %1153 = vmatpush1.msra.mxu0 0.0
        %1154 = vmatprep.subr.mxu0 0.0
        %1155 = vmatpush1.msra.mxu0 0.0
        %1156 = vmatprep.subr.mxu0 0.0
        %1157 = vmatpush1.msra.mxu0 0.0
        %1158 = vmatprep.subr.mxu0 0.0
        %1159 = vmatpush1.msra.mxu0 0.0
        %1160 = vmatprep.subr.mxu0 0.0
        %1161 = vmatpush1.msra.mxu0 0.0
        %1162 = vmatprep.subr.mxu0 0.0
        %1163 = vmatpush1.msra.mxu0 0.0
        %1164 = vmatprep.subr.mxu0 0.0
        %1165 = vmatpush1.msra.mxu0 0.0
        %1166 = vmatprep.subr.mxu0 0.0
        %1167 = vmatpush1.msra.mxu0 0.0
        %1168 = vmatprep.subr.mxu0 0.0
        %1169 = vmatpush1.msra.mxu0 0.0
        %1170 = vmatprep.subr.mxu0 %v1137
        %1171 = vmatpush1.msra.mxu0 %v1136
        %1172 = vmatprep.subr.mxu0 %v1135
        %1173 = vmatpush1.msra.mxu0 %v1134
        %1174 = vmatprep.subr.mxu0 %v1133
        %1175 = vmatpush1.msra.mxu0 %v1132
        %1176 = vmatprep.subr.mxu0 %v1131
        %1177 = vmatpush1.msra.mxu0 %v1130
        %1178 = vmatprep.subr.mxu0 0.0
        %1179 = vmatpush2.msra.mxu0 0.0
        %1180 = vmatprep.subr.mxu0 0.0
        %1181 = vmatpush2.msra.mxu0 0.0
        %1182 = vmatprep.subr.mxu0 0.0
        %1183 = vmatpush2.msra.mxu0 0.0
        %1184 = vmatprep.subr.mxu0 0.0
        %1185 = vmatpush2.msra.mxu0 0.0
        %1186 = vmatprep.subr.mxu0 0.0
        %1187 = vmatpush2.msra.mxu0 0.0
        %1188 = vmatprep.subr.mxu0 0.0
        %1189 = vmatpush2.msra.mxu0 0.0
        %1190 = vmatprep.subr.mxu0 0.0
        %1191 = vmatpush2.msra.mxu0 0.0
        %1192 = vmatprep.subr.mxu0 0.0
        %1193 = vmatpush2.msra.mxu0 0.0
        %1194 = vmatprep.subr.mxu0 0.0
        %1195 = vmatpush2.msra.mxu0 0.0
        %1196 = vmatprep.subr.mxu0 0.0
        %1197 = vmatpush2.msra.mxu0 0.0
        %1198 = vmatprep.subr.mxu0 0.0
        %1199 = vmatpush2.msra.mxu0 0.0
        %1200 = vmatprep.subr.mxu0 0.0
        %1201 = vmatpush2.msra.mxu0 0.0
        %1202 = vmatprep.subr.mxu0 0.0
        %1203 = vmatpush2.msra.mxu0 0.0
        %1204 = vmatprep.subr.mxu0 0.0
        %1205 = vmatpush2.msra.mxu0 0.0
        %1206 = vmatprep.subr.mxu0 0.0
        %1207 = vmatpush2.msra.mxu0 0.0
        %1208 = vmatprep.subr.mxu0 0.0
        %1209 = vmatpush2.msra.mxu0 0.0
        %1210 = vmatprep.mubr.f32.mxu0 0.0
        %1211 = vmatmul.mubr.f32.gmra.mxu0 %v1141
        %v1212 = vpop.f32.mrf.mxu0
        %v1213 = vadd.f32 0.0, %v1212
        %v1214 = vpop.f32.mrf.mxu0
        %v1215 = vadd.f32 0.0, %v1214
        %1216 = vmatprep.mubr.f32.mxu0 0.0
        %1217 = vmatmul.mubr.f32.gmra.mxu0 %v1144
        %v1218 = vpop.f32.mrf.mxu0
        %v1219 = vadd.f32 0.0, %v1218
        %v1220 = vpop.f32.mrf.mxu0
        %v1221 = vadd.f32 0.0, %v1220
        %1222 = vdwg.mxu0
        %s1223 = scalar_lea.vmem [#allocation9], 16
        %v1224 = vld [vmem:[%s1223] sm:$0xff]
        %v1225 = vld [vmem:[%s1223 + $0x8] sm:$0xff]
        %v1227 = vsel %vm467, %v1224, 0
        %v1230 = vsel %vm467, %v1225, 0
        %1232 = vmatprep.subr.mxu0 0.0
        %1233 = vmatpush1.msra.mxu0 0.0
        %1234 = vmatprep.subr.mxu0 0.0
        %1235 = vmatpush1.msra.mxu0 0.0
        %1236 = vmatprep.subr.mxu0 0.0
        %1237 = vmatpush1.msra.mxu0 0.0
        %1238 = vmatprep.subr.mxu0 0.0
        %1239 = vmatpush1.msra.mxu0 0.0
        %1240 = vmatprep.subr.mxu0 0.0
        %1241 = vmatpush1.msra.mxu0 0.0
        %1242 = vmatprep.subr.mxu0 0.0
        %1243 = vmatpush1.msra.mxu0 0.0
        %1244 = vmatprep.subr.mxu0 0.0
        %1245 = vmatpush1.msra.mxu0 0.0
        %1246 = vmatprep.subr.mxu0 0.0
        %1247 = vmatpush1.msra.mxu0 0.0
        %1248 = vmatprep.subr.mxu0 0.0
        %1249 = vmatpush1.msra.mxu0 0.0
        %1250 = vmatprep.subr.mxu0 0.0
        %1251 = vmatpush1.msra.mxu0 0.0
        %1252 = vmatprep.subr.mxu0 0.0
        %1253 = vmatpush1.msra.mxu0 0.0
        %1254 = vmatprep.subr.mxu0 0.0
        %1255 = vmatpush1.msra.mxu0 0.0
        %1256 = vmatprep.subr.mxu0 %v1137
        %1257 = vmatpush1.msra.mxu0 %v1136
        %1258 = vmatprep.subr.mxu0 %v1135
        %1259 = vmatpush1.msra.mxu0 %v1134
        %1260 = vmatprep.subr.mxu0 %v1133
        %1261 = vmatpush1.msra.mxu0 %v1132
        %1262 = vmatprep.subr.mxu0 %v1131
        %1263 = vmatpush1.msra.mxu0 %v1130
        %1264 = vmatprep.subr.mxu0 0.0
        %1265 = vmatpush2.msra.mxu0 0.0
        %1266 = vmatprep.subr.mxu0 0.0
        %1267 = vmatpush2.msra.mxu0 0.0
        %1268 = vmatprep.subr.mxu0 0.0
        %1269 = vmatpush2.msra.mxu0 0.0
        %1270 = vmatprep.subr.mxu0 0.0
        %1271 = vmatpush2.msra.mxu0 0.0
        %1272 = vmatprep.subr.mxu0 0.0
        %1273 = vmatpush2.msra.mxu0 0.0
        %1274 = vmatprep.subr.mxu0 0.0
        %1275 = vmatpush2.msra.mxu0 0.0
        %1276 = vmatprep.subr.mxu0 0.0
        %1277 = vmatpush2.msra.mxu0 0.0
        %1278 = vmatprep.subr.mxu0 0.0
        %1279 = vmatpush2.msra.mxu0 0.0
        %1280 = vmatprep.subr.mxu0 0.0
        %1281 = vmatpush2.msra.mxu0 0.0
        %1282 = vmatprep.subr.mxu0 0.0
        %1283 = vmatpush2.msra.mxu0 0.0
        %1284 = vmatprep.subr.mxu0 0.0
        %1285 = vmatpush2.msra.mxu0 0.0
        %1286 = vmatprep.subr.mxu0 0.0
        %1287 = vmatpush2.msra.mxu0 0.0
        %1288 = vmatprep.subr.mxu0 0.0
        %1289 = vmatpush2.msra.mxu0 0.0
        %1290 = vmatprep.subr.mxu0 0.0
        %1291 = vmatpush2.msra.mxu0 0.0
        %1292 = vmatprep.subr.mxu0 0.0
        %1293 = vmatpush2.msra.mxu0 0.0
        %1294 = vmatprep.subr.mxu0 0.0
        %1295 = vmatpush2.msra.mxu0 0.0
        %1296 = vmatprep.mubr.f32.mxu0 0.0
        %1297 = vmatmul.mubr.f32.gmra.mxu0 %v1227
        %v1298 = vpop.f32.mrf.mxu0
        %v1299 = vadd.f32 0.0, %v1298
        %v1300 = vpop.f32.mrf.mxu0
        %v1301 = vadd.f32 0.0, %v1300
        %1302 = vmatprep.mubr.f32.mxu0 0.0
        %1303 = vmatmul.mubr.f32.gmra.mxu0 %v1230
        %v1304 = vpop.f32.mrf.mxu0
        %v1305 = vadd.f32 0.0, %v1304
        %v1306 = vpop.f32.mrf.mxu0
        %v1307 = vadd.f32 0.0, %v1306
        %1308 = vdwg.mxu0
        %v1309 = vmax.f32 %v1213, %v1299
        %v1310 = vmax.f32 %v1215, %v1301
        %v1311 = vmax.f32 %v1219, %v1305
        %v1312 = vmax.f32 %v1221, %v1307
        %v1313 = vld [vmem:[#allocation10] sm:$0x3]
        %v1315 = vlaneseq
        %v1316 = vshrl.u32 %v1315, 7
        %v1317 = vsub.s32 0, %v1316
        %v1318 = vrot.slane %v1313, %v1317
        %v1319 = vlaneseq
        %v1320 = vshrl.u32 %v1319, 7
        %v1321 = vsub.s32 1, %v1320
        %v1322 = vrot.slane %v1313, %v1321
        %v1325 = vadd.f32 %v1309, %v1318
        %v1326 = vadd.f32 %v1310, %v1322
        %v1327 = vadd.f32 %v1311, %v1318
        %v1328 = vadd.f32 %v1312, %v1322
        %v1329 = vmax.f32 %v1325, 0.0
        %v1330 = vmax.f32 %v1326, 0.0
        %v1331 = vmax.f32 %v1327, 0.0
        %v1332 = vmax.f32 %v1328, 0.0
        %1333 = vst [vmem:[#allocation3] sm:$0xff] 0.0
        %1334 = vst [vmem:[#allocation3 + $0x8] sm:$0xff] 0.0
        %1335 = vst [vmem:[#allocation3 + $0x10] sm:$0xff] 0.0
        %1336 = vst [vmem:[#allocation3 + $0x18] sm:$0xff] 0.0
        %1337 = vst [vmem:[#allocation3 + $0x20] sm:$0xff] 0.0
        %1338 = vst [vmem:[#allocation3 + $0x28] sm:$0xff] 0.0
        %1339 = vst [vmem:[#allocation3 + $0x30] sm:$0x1] 0.0
        %1340 = vst [vmem:[#allocation3 + $0x38] sm:$0x1] 0.0
        %1341 = vst [vmem:[#allocation3 + $0x10] sm:$0xff] %v1329
        %1342 = vst [vmem:[#allocation3 + $0x18] sm:$0xff] %v1330
        %1343 = vst [vmem:[#allocation3 + $0x20] sm:$0xff] %v1331
        %1344 = vst [vmem:[#allocation3 + $0x28] sm:$0xff] %v1332
        %v1345 = vld [vmem:[#allocation3] sm:$0x80]
        %v1346 = vld [vmem:[#allocation3 + $0x8] sm:$0x80]
        %v1347 = vld [vmem:[#allocation3 + $0x10] sm:$0xff]
        %v1348 = vld [vmem:[#allocation3 + $0x18] sm:$0xff]
        %v1349 = vld [vmem:[#allocation3 + $0x20] sm:$0x7f]
        %v1350 = vld [vmem:[#allocation3 + $0x28] sm:$0x7f]
        %v1351 = vld [vmem:[#allocation12] sm:$0xff]
        %v1352 = vld [vmem:[#allocation12 + $0x8] sm:$0xff]
        %v1353 = vld [vmem:[#allocation12 + $0x10] sm:$0xff]
        %v1354 = vld [vmem:[#allocation12 + $0x18] sm:$0xff]
        %v1355 = vld [vmem:[#allocation12 + $0x20] sm:$0xff]
        %v1356 = vld [vmem:[#allocation12 + $0x28] sm:$0xff]
        %v1357 = vld [vmem:[#allocation12 + $0x30] sm:$0xff]
        %v1358 = vld [vmem:[#allocation12 + $0x38] sm:$0xff]
        %v1359 = vld [vmem:[#allocation12 + $0x40] sm:$0xff]
        %v1360 = vld [vmem:[#allocation12 + $0x48] sm:$0xff]
        %v1361 = vld [vmem:[#allocation12 + $0x50] sm:$0xff]
        %v1362 = vld [vmem:[#allocation12 + $0x58] sm:$0xff]
        %v1363 = vld [vmem:[#allocation12 + $0x60] sm:$0xff]
        %v1364 = vld [vmem:[#allocation12 + $0x68] sm:$0xff]
        %v1365 = vld [vmem:[#allocation12 + $0x70] sm:$0xff]
        %v1366 = vld [vmem:[#allocation12 + $0x78] sm:$0xff]
        %v1367 = vld [vmem:[#allocation12 + $0x80] sm:$0xff]
        %v1368 = vld [vmem:[#allocation12 + $0x88] sm:$0xff]
        %v1369 = vld [vmem:[#allocation12 + $0x90] sm:$0xff]
        %v1370 = vld [vmem:[#allocation12 + $0x98] sm:$0xff]
        %v1371 = vld [vmem:[#allocation12 + $0xa0] sm:$0xff]
        %v1372 = vld [vmem:[#allocation12 + $0xa8] sm:$0xff]
        %v1373 = vld [vmem:[#allocation12 + $0xb0] sm:$0xff]
        %v1374 = vld [vmem:[#allocation12 + $0xb8] sm:$0xff]
        %v1375 = vld [vmem:[#allocation12 + $0xc0] sm:$0xff]
        %v1376 = vld [vmem:[#allocation12 + $0xc8] sm:$0xff]
        %v1377 = vld [vmem:[#allocation12 + $0xd0] sm:$0xff]
        %v1378 = vld [vmem:[#allocation12 + $0xd8] sm:$0xff]
        %v1379 = vld [vmem:[#allocation12 + $0xe0] sm:$0xff]
        %v1380 = vld [vmem:[#allocation12 + $0xe8] sm:$0xff]
        %v1381 = vld [vmem:[#allocation12 + $0xf0] sm:$0xff]
        %v1382 = vld [vmem:[#allocation12 + $0xf8] sm:$0xff]
        %v1383 = vld [vmem:[#allocation12 + $0x100] sm:$0xff]
        %v1384 = vld [vmem:[#allocation12 + $0x108] sm:$0xff]
        %v1385 = vld [vmem:[#allocation12 + $0x110] sm:$0xff]
        %v1386 = vld [vmem:[#allocation12 + $0x118] sm:$0xff]
        %v1387 = vld [vmem:[#allocation12 + $0x120] sm:$0xff]
        %v1388 = vld [vmem:[#allocation12 + $0x128] sm:$0xff]
        %v1389 = vld [vmem:[#allocation12 + $0x130] sm:$0xff]
        %v1390 = vld [vmem:[#allocation12 + $0x138] sm:$0xff]
        %v1391 = vld [vmem:[#allocation12 + $0x140] sm:$0xff]
        %v1392 = vld [vmem:[#allocation12 + $0x148] sm:$0xff]
        %v1393 = vld [vmem:[#allocation12 + $0x150] sm:$0xff]
        %v1394 = vld [vmem:[#allocation12 + $0x158] sm:$0xff]
        %v1395 = vld [vmem:[#allocation12 + $0x160] sm:$0xff]
        %v1396 = vld [vmem:[#allocation12 + $0x168] sm:$0xff]
        %v1397 = vld [vmem:[#allocation12 + $0x170] sm:$0xff]
        %v1398 = vld [vmem:[#allocation12 + $0x178] sm:$0xff]
        %v1399 = vld [vmem:[#allocation12 + $0x180] sm:$0xff]
        %v1400 = vld [vmem:[#allocation12 + $0x188] sm:$0xff]
        %v1401 = vld [vmem:[#allocation12 + $0x190] sm:$0xff]
        %v1402 = vld [vmem:[#allocation12 + $0x198] sm:$0xff]
        %v1403 = vld [vmem:[#allocation12 + $0x1a0] sm:$0xff]
        %v1404 = vld [vmem:[#allocation12 + $0x1a8] sm:$0xff]
        %v1405 = vld [vmem:[#allocation12 + $0x1b0] sm:$0xff]
        %v1406 = vld [vmem:[#allocation12 + $0x1b8] sm:$0xff]
        %v1407 = vld [vmem:[#allocation12 + $0x1c0] sm:$0xff]
        %v1408 = vld [vmem:[#allocation12 + $0x1c8] sm:$0xff]
        %v1409 = vld [vmem:[#allocation12 + $0x1d0] sm:$0xff]
        %v1410 = vld [vmem:[#allocation12 + $0x1d8] sm:$0xff]
        %v1411 = vld [vmem:[#allocation12 + $0x1e0] sm:$0xff]
        %v1412 = vld [vmem:[#allocation12 + $0x1e8] sm:$0xff]
        %v1413 = vld [vmem:[#allocation12 + $0x1f0] sm:$0xff]
        %v1414 = vld [vmem:[#allocation12 + $0x1f8] sm:$0xff]
        %s1415 = scalar_lea.vmem [#allocation12], 512
        %v1416 = vld [vmem:[%s1415] sm:$0xff]
        %v1417 = vld [vmem:[%s1415 + $0x8] sm:$0xff]
        %v1418 = vld [vmem:[%s1415 + $0x10] sm:$0xff]
        %v1419 = vld [vmem:[%s1415 + $0x18] sm:$0xff]
        %v1420 = vld [vmem:[%s1415 + $0x20] sm:$0xff]
        %v1421 = vld [vmem:[%s1415 + $0x28] sm:$0xff]
        %v1422 = vld [vmem:[%s1415 + $0x30] sm:$0xff]
        %v1423 = vld [vmem:[%s1415 + $0x38] sm:$0xff]
        %v1424 = vld [vmem:[%s1415 + $0x40] sm:$0xff]
        %v1425 = vld [vmem:[%s1415 + $0x48] sm:$0xff]
        %v1426 = vld [vmem:[%s1415 + $0x50] sm:$0xff]
        %v1427 = vld [vmem:[%s1415 + $0x58] sm:$0xff]
        %v1428 = vld [vmem:[%s1415 + $0x60] sm:$0xff]
        %v1429 = vld [vmem:[%s1415 + $0x68] sm:$0xff]
        %v1430 = vld [vmem:[%s1415 + $0x70] sm:$0xff]
        %v1431 = vld [vmem:[%s1415 + $0x78] sm:$0xff]
        %v1432 = vld [vmem:[%s1415 + $0x80] sm:$0xff]
        %v1433 = vld [vmem:[%s1415 + $0x88] sm:$0xff]
        %v1434 = vld [vmem:[%s1415 + $0x90] sm:$0xff]
        %v1435 = vld [vmem:[%s1415 + $0x98] sm:$0xff]
        %v1436 = vld [vmem:[%s1415 + $0xa0] sm:$0xff]
        %v1437 = vld [vmem:[%s1415 + $0xa8] sm:$0xff]
        %v1438 = vld [vmem:[%s1415 + $0xb0] sm:$0xff]
        %v1439 = vld [vmem:[%s1415 + $0xb8] sm:$0xff]
        %v1440 = vld [vmem:[%s1415 + $0xc0] sm:$0xff]
        %v1441 = vld [vmem:[%s1415 + $0xc8] sm:$0xff]
        %v1442 = vld [vmem:[%s1415 + $0xd0] sm:$0xff]
        %v1443 = vld [vmem:[%s1415 + $0xd8] sm:$0xff]
        %v1444 = vld [vmem:[%s1415 + $0xe0] sm:$0xff]
        %v1445 = vld [vmem:[%s1415 + $0xe8] sm:$0xff]
        %v1446 = vld [vmem:[%s1415 + $0xf0] sm:$0xff]
        %v1447 = vld [vmem:[%s1415 + $0xf8] sm:$0xff]
        %v1448 = vld [vmem:[%s1415 + $0x100] sm:$0xff]
        %v1449 = vld [vmem:[%s1415 + $0x108] sm:$0xff]
        %v1450 = vld [vmem:[%s1415 + $0x110] sm:$0xff]
        %v1451 = vld [vmem:[%s1415 + $0x118] sm:$0xff]
        %v1452 = vld [vmem:[%s1415 + $0x120] sm:$0xff]
        %v1453 = vld [vmem:[%s1415 + $0x128] sm:$0xff]
        %v1454 = vld [vmem:[%s1415 + $0x130] sm:$0xff]
        %v1455 = vld [vmem:[%s1415 + $0x138] sm:$0xff]
        %v1456 = vld [vmem:[%s1415 + $0x140] sm:$0xff]
        %v1457 = vld [vmem:[%s1415 + $0x148] sm:$0xff]
        %v1458 = vld [vmem:[%s1415 + $0x150] sm:$0xff]
        %v1459 = vld [vmem:[%s1415 + $0x158] sm:$0xff]
        %v1460 = vld [vmem:[%s1415 + $0x160] sm:$0xff]
        %v1461 = vld [vmem:[%s1415 + $0x168] sm:$0xff]
        %v1462 = vld [vmem:[%s1415 + $0x170] sm:$0xff]
        %v1463 = vld [vmem:[%s1415 + $0x178] sm:$0xff]
        %v1464 = vld [vmem:[%s1415 + $0x180] sm:$0xff]
        %v1465 = vld [vmem:[%s1415 + $0x188] sm:$0xff]
        %v1466 = vld [vmem:[%s1415 + $0x190] sm:$0xff]
        %v1467 = vld [vmem:[%s1415 + $0x198] sm:$0xff]
        %v1468 = vld [vmem:[%s1415 + $0x1a0] sm:$0xff]
        %v1469 = vld [vmem:[%s1415 + $0x1a8] sm:$0xff]
        %v1470 = vld [vmem:[%s1415 + $0x1b0] sm:$0xff]
        %v1471 = vld [vmem:[%s1415 + $0x1b8] sm:$0xff]
        %v1472 = vld [vmem:[%s1415 + $0x1c0] sm:$0xff]
        %v1473 = vld [vmem:[%s1415 + $0x1c8] sm:$0xff]
        %v1474 = vld [vmem:[%s1415 + $0x1d0] sm:$0xff]
        %v1475 = vld [vmem:[%s1415 + $0x1d8] sm:$0xff]
        %v1476 = vld [vmem:[%s1415 + $0x1e0] sm:$0xff]
        %v1477 = vld [vmem:[%s1415 + $0x1e8] sm:$0xff]
        %v1478 = vld [vmem:[%s1415 + $0x1f0] sm:$0xff]
        %v1479 = vld [vmem:[%s1415 + $0x1f8] sm:$0xff]
        %v1480 = vld [vmem:[#allocation3 + $0x20] sm:$0xff]
        %v1481 = vld [vmem:[#allocation3 + $0x28] sm:$0xff]
        %s1482 = scalar_lea.vmem [#allocation12], 1024
        %v1483 = vld [vmem:[%s1482] sm:$0xff]
        %v1484 = vld [vmem:[%s1482 + $0x8] sm:$0xff]
        %v1485 = vld [vmem:[%s1482 + $0x10] sm:$0xff]
        %v1486 = vld [vmem:[%s1482 + $0x18] sm:$0xff]
        %v1487 = vld [vmem:[%s1482 + $0x20] sm:$0xff]
        %v1488 = vld [vmem:[%s1482 + $0x28] sm:$0xff]
        %v1489 = vld [vmem:[%s1482 + $0x30] sm:$0xff]
        %v1490 = vld [vmem:[%s1482 + $0x38] sm:$0xff]
        %v1491 = vld [vmem:[%s1482 + $0x40] sm:$0xff]
        %v1492 = vld [vmem:[%s1482 + $0x48] sm:$0xff]
        %v1493 = vld [vmem:[%s1482 + $0x50] sm:$0xff]
        %v1494 = vld [vmem:[%s1482 + $0x58] sm:$0xff]
        %v1495 = vld [vmem:[%s1482 + $0x60] sm:$0xff]
        %v1496 = vld [vmem:[%s1482 + $0x68] sm:$0xff]
        %v1497 = vld [vmem:[%s1482 + $0x70] sm:$0xff]
        %v1498 = vld [vmem:[%s1482 + $0x78] sm:$0xff]
        %v1499 = vld [vmem:[%s1482 + $0x80] sm:$0xff]
        %v1500 = vld [vmem:[%s1482 + $0x88] sm:$0xff]
        %v1501 = vld [vmem:[%s1482 + $0x90] sm:$0xff]
        %v1502 = vld [vmem:[%s1482 + $0x98] sm:$0xff]
        %v1503 = vld [vmem:[%s1482 + $0xa0] sm:$0xff]
        %v1504 = vld [vmem:[%s1482 + $0xa8] sm:$0xff]
        %v1505 = vld [vmem:[%s1482 + $0xb0] sm:$0xff]
        %v1506 = vld [vmem:[%s1482 + $0xb8] sm:$0xff]
        %v1507 = vld [vmem:[%s1482 + $0xc0] sm:$0xff]
        %v1508 = vld [vmem:[%s1482 + $0xc8] sm:$0xff]
        %v1509 = vld [vmem:[%s1482 + $0xd0] sm:$0xff]
        %v1510 = vld [vmem:[%s1482 + $0xd8] sm:$0xff]
        %v1511 = vld [vmem:[%s1482 + $0xe0] sm:$0xff]
        %v1512 = vld [vmem:[%s1482 + $0xe8] sm:$0xff]
        %v1513 = vld [vmem:[%s1482 + $0xf0] sm:$0xff]
        %v1514 = vld [vmem:[%s1482 + $0xf8] sm:$0xff]
        %v1515 = vld [vmem:[%s1482 + $0x100] sm:$0xff]
        %v1516 = vld [vmem:[%s1482 + $0x108] sm:$0xff]
        %v1517 = vld [vmem:[%s1482 + $0x110] sm:$0xff]
        %v1518 = vld [vmem:[%s1482 + $0x118] sm:$0xff]
        %v1519 = vld [vmem:[%s1482 + $0x120] sm:$0xff]
        %v1520 = vld [vmem:[%s1482 + $0x128] sm:$0xff]
        %v1521 = vld [vmem:[%s1482 + $0x130] sm:$0xff]
        %v1522 = vld [vmem:[%s1482 + $0x138] sm:$0xff]
        %v1523 = vld [vmem:[%s1482 + $0x140] sm:$0xff]
        %v1524 = vld [vmem:[%s1482 + $0x148] sm:$0xff]
        %v1525 = vld [vmem:[%s1482 + $0x150] sm:$0xff]
        %v1526 = vld [vmem:[%s1482 + $0x158] sm:$0xff]
        %v1527 = vld [vmem:[%s1482 + $0x160] sm:$0xff]
        %v1528 = vld [vmem:[%s1482 + $0x168] sm:$0xff]
        %v1529 = vld [vmem:[%s1482 + $0x170] sm:$0xff]
        %v1530 = vld [vmem:[%s1482 + $0x178] sm:$0xff]
        %v1531 = vld [vmem:[%s1482 + $0x180] sm:$0xff]
        %v1532 = vld [vmem:[%s1482 + $0x188] sm:$0xff]
        %v1533 = vld [vmem:[%s1482 + $0x190] sm:$0xff]
        %v1534 = vld [vmem:[%s1482 + $0x198] sm:$0xff]
        %v1535 = vld [vmem:[%s1482 + $0x1a0] sm:$0xff]
        %v1536 = vld [vmem:[%s1482 + $0x1a8] sm:$0xff]
        %v1537 = vld [vmem:[%s1482 + $0x1b0] sm:$0xff]
        %v1538 = vld [vmem:[%s1482 + $0x1b8] sm:$0xff]
        %v1539 = vld [vmem:[%s1482 + $0x1c0] sm:$0xff]
        %v1540 = vld [vmem:[%s1482 + $0x1c8] sm:$0xff]
        %v1541 = vld [vmem:[%s1482 + $0x1d0] sm:$0xff]
        %v1542 = vld [vmem:[%s1482 + $0x1d8] sm:$0xff]
        %v1543 = vld [vmem:[%s1482 + $0x1e0] sm:$0xff]
        %v1544 = vld [vmem:[%s1482 + $0x1e8] sm:$0xff]
        %v1545 = vld [vmem:[%s1482 + $0x1f0] sm:$0xff]
        %v1546 = vld [vmem:[%s1482 + $0x1f8] sm:$0xff]
        %1547 = vmatprep.subr.mxu0 %v1514
        %1548 = vmatpush1.msra.mxu0 %v1513
        %1549 = vmatprep.subr.mxu0 %v1512
        %1550 = vmatpush1.msra.mxu0 %v1511
        %1551 = vmatprep.subr.mxu0 %v1510
        %1552 = vmatpush1.msra.mxu0 %v1509
        %1553 = vmatprep.subr.mxu0 %v1508
        %1554 = vmatpush1.msra.mxu0 %v1507
        %1555 = vmatprep.subr.mxu0 %v1506
        %1556 = vmatpush1.msra.mxu0 %v1505
        %1557 = vmatprep.subr.mxu0 %v1504
        %1558 = vmatpush1.msra.mxu0 %v1503
        %1559 = vmatprep.subr.mxu0 %v1502
        %1560 = vmatpush1.msra.mxu0 %v1501
        %1561 = vmatprep.subr.mxu0 %v1500
        %1562 = vmatpush1.msra.mxu0 %v1499
        %1563 = vmatprep.subr.mxu0 %v1498
        %1564 = vmatpush1.msra.mxu0 %v1497
        %1565 = vmatprep.subr.mxu0 %v1496
        %1566 = vmatpush1.msra.mxu0 %v1495
        %1567 = vmatprep.subr.mxu0 %v1494
        %1568 = vmatpush1.msra.mxu0 %v1493
        %1569 = vmatprep.subr.mxu0 %v1492
        %1570 = vmatpush1.msra.mxu0 %v1491
        %1571 = vmatprep.subr.mxu0 %v1490
        %1572 = vmatpush1.msra.mxu0 %v1489
        %1573 = vmatprep.subr.mxu0 %v1488
        %1574 = vmatpush1.msra.mxu0 %v1487
        %1575 = vmatprep.subr.mxu0 %v1486
        %1576 = vmatpush1.msra.mxu0 %v1485
        %1577 = vmatprep.subr.mxu0 %v1484
        %1578 = vmatpush1.msra.mxu0 %v1483
        %1579 = vmatprep.subr.mxu0 %v1546
        %1580 = vmatpush2.msra.mxu0 %v1545
        %1581 = vmatprep.subr.mxu0 %v1544
        %1582 = vmatpush2.msra.mxu0 %v1543
        %1583 = vmatprep.subr.mxu0 %v1542
        %1584 = vmatpush2.msra.mxu0 %v1541
        %1585 = vmatprep.subr.mxu0 %v1540
        %1586 = vmatpush2.msra.mxu0 %v1539
        %1587 = vmatprep.subr.mxu0 %v1538
        %1588 = vmatpush2.msra.mxu0 %v1537
        %1589 = vmatprep.subr.mxu0 %v1536
        %1590 = vmatpush2.msra.mxu0 %v1535
        %1591 = vmatprep.subr.mxu0 %v1534
        %1592 = vmatpush2.msra.mxu0 %v1533
        %1593 = vmatprep.subr.mxu0 %v1532
        %1594 = vmatpush2.msra.mxu0 %v1531
        %1595 = vmatprep.subr.mxu0 %v1530
        %1596 = vmatpush2.msra.mxu0 %v1529
        %1597 = vmatprep.subr.mxu0 %v1528
        %1598 = vmatpush2.msra.mxu0 %v1527
        %1599 = vmatprep.subr.mxu0 %v1526
        %1600 = vmatpush2.msra.mxu0 %v1525
        %1601 = vmatprep.subr.mxu0 %v1524
        %1602 = vmatpush2.msra.mxu0 %v1523
        %1603 = vmatprep.subr.mxu0 %v1522
        %1604 = vmatpush2.msra.mxu0 %v1521
        %1605 = vmatprep.subr.mxu0 %v1520
        %1606 = vmatpush2.msra.mxu0 %v1519
        %1607 = vmatprep.subr.mxu0 %v1518
        %1608 = vmatpush2.msra.mxu0 %v1517
        %1609 = vmatprep.subr.mxu0 %v1516
        %1610 = vmatpush2.msra.mxu0 %v1515
        %1611 = vmatprep.mubr.f32.mxu0 %v1348
        %1612 = vmatmul.mubr.f32.gmra.mxu0 %v1347
        %v1613 = vpop.f32.mrf.mxu0
        %v1614 = vadd.f32 0.0, %v1613
        %v1615 = vpop.f32.mrf.mxu0
        %v1616 = vadd.f32 0.0, %v1615
        %1617 = vmatprep.mubr.f32.mxu0 %v1481
        %1618 = vmatmul.mubr.f32.gmra.mxu0 %v1480
        %v1619 = vpop.f32.mrf.mxu0
        %v1620 = vadd.f32 0.0, %v1619
        %v1621 = vpop.f32.mrf.mxu0
        %v1622 = vadd.f32 0.0, %v1621
        %1623 = vdwg.mxu0
        %vm1630 = vcmask 1040384
        %v1631 = vrot.slane %v1345, 7
        %v1632 = vrot.slane %v1347, 7
        %v1633 = vsel %vm1630, %v1631, %v1632
        %v1634 = vrot.slane %v1346, 7
        %v1635 = vrot.slane %v1348, 7
        %v1636 = vsel %vm1630, %v1634, %v1635
        %v1637 = vrot.slane %v1349, 7
        %v1638 = vsel %vm1630, %v1632, %v1637
        %v1639 = vrot.slane %v1350, 7
        %v1640 = vsel %vm1630, %v1635, %v1639
        %1645 = vmatprep.subr.mxu0 %v1382
        %1646 = vmatpush1.msra.mxu0 %v1381
        %1647 = vmatprep.subr.mxu0 %v1380
        %1648 = vmatpush1.msra.mxu0 %v1379
        %1649 = vmatprep.subr.mxu0 %v1378
        %1650 = vmatpush1.msra.mxu0 %v1377
        %1651 = vmatprep.subr.mxu0 %v1376
        %1652 = vmatpush1.msra.mxu0 %v1375
        %1653 = vmatprep.subr.mxu0 %v1374
        %1654 = vmatpush1.msra.mxu0 %v1373
        %1655 = vmatprep.subr.mxu0 %v1372
        %1656 = vmatpush1.msra.mxu0 %v1371
        %1657 = vmatprep.subr.mxu0 %v1370
        %1658 = vmatpush1.msra.mxu0 %v1369
        %1659 = vmatprep.subr.mxu0 %v1368
        %1660 = vmatpush1.msra.mxu0 %v1367
        %1661 = vmatprep.subr.mxu0 %v1366
        %1662 = vmatpush1.msra.mxu0 %v1365
        %1663 = vmatprep.subr.mxu0 %v1364
        %1664 = vmatpush1.msra.mxu0 %v1363
        %1665 = vmatprep.subr.mxu0 %v1362
        %1666 = vmatpush1.msra.mxu0 %v1361
        %1667 = vmatprep.subr.mxu0 %v1360
        %1668 = vmatpush1.msra.mxu0 %v1359
        %1669 = vmatprep.subr.mxu0 %v1358
        %1670 = vmatpush1.msra.mxu0 %v1357
        %1671 = vmatprep.subr.mxu0 %v1356
        %1672 = vmatpush1.msra.mxu0 %v1355
        %1673 = vmatprep.subr.mxu0 %v1354
        %1674 = vmatpush1.msra.mxu0 %v1353
        %1675 = vmatprep.subr.mxu0 %v1352
        %1676 = vmatpush1.msra.mxu0 %v1351
        %1677 = vmatprep.subr.mxu0 %v1414
        %1678 = vmatpush2.msra.mxu0 %v1413
        %1679 = vmatprep.subr.mxu0 %v1412
        %1680 = vmatpush2.msra.mxu0 %v1411
        %1681 = vmatprep.subr.mxu0 %v1410
        %1682 = vmatpush2.msra.mxu0 %v1409
        %1683 = vmatprep.subr.mxu0 %v1408
        %1684 = vmatpush2.msra.mxu0 %v1407
        %1685 = vmatprep.subr.mxu0 %v1406
        %1686 = vmatpush2.msra.mxu0 %v1405
        %1687 = vmatprep.subr.mxu0 %v1404
        %1688 = vmatpush2.msra.mxu0 %v1403
        %1689 = vmatprep.subr.mxu0 %v1402
        %1690 = vmatpush2.msra.mxu0 %v1401
        %1691 = vmatprep.subr.mxu0 %v1400
        %1692 = vmatpush2.msra.mxu0 %v1399
        %1693 = vmatprep.subr.mxu0 %v1398
        %1694 = vmatpush2.msra.mxu0 %v1397
        %1695 = vmatprep.subr.mxu0 %v1396
        %1696 = vmatpush2.msra.mxu0 %v1395
        %1697 = vmatprep.subr.mxu0 %v1394
        %1698 = vmatpush2.msra.mxu0 %v1393
        %1699 = vmatprep.subr.mxu0 %v1392
        %1700 = vmatpush2.msra.mxu0 %v1391
        %1701 = vmatprep.subr.mxu0 %v1390
        %1702 = vmatpush2.msra.mxu0 %v1389
        %1703 = vmatprep.subr.mxu0 %v1388
        %1704 = vmatpush2.msra.mxu0 %v1387
        %1705 = vmatprep.subr.mxu0 %v1386
        %1706 = vmatpush2.msra.mxu0 %v1385
        %1707 = vmatprep.subr.mxu0 %v1384
        %1708 = vmatpush2.msra.mxu0 %v1383
        %1709 = vmatprep.mubr.f32.mxu0 %v1636
        %1710 = vmatmul.mubr.f32.gmra.mxu0 %v1633
        %v1711 = vpop.f32.mrf.mxu0
        %v1712 = vadd.f32 %v1614, %v1711
        %v1713 = vpop.f32.mrf.mxu0
        %v1714 = vadd.f32 %v1616, %v1713
        %1715 = vmatprep.mubr.f32.mxu0 %v1640
        %1716 = vmatmul.mubr.f32.gmra.mxu0 %v1638
        %v1717 = vpop.f32.mrf.mxu0
        %v1718 = vadd.f32 %v1620, %v1717
        %v1719 = vpop.f32.mrf.mxu0
        %v1720 = vadd.f32 %v1622, %v1719
        %1721 = vdwg.mxu0
        %s1722 = scalar_lea.vmem [#allocation12], 1536
        %v1723 = vld [vmem:[%s1722] sm:$0xff]
        %v1724 = vld [vmem:[%s1722 + $0x8] sm:$0xff]
        %v1725 = vld [vmem:[%s1722 + $0x10] sm:$0xff]
        %v1726 = vld [vmem:[%s1722 + $0x18] sm:$0xff]
        %v1727 = vld [vmem:[%s1722 + $0x20] sm:$0xff]
        %v1728 = vld [vmem:[%s1722 + $0x28] sm:$0xff]
        %v1729 = vld [vmem:[%s1722 + $0x30] sm:$0xff]
        %v1730 = vld [vmem:[%s1722 + $0x38] sm:$0xff]
        %v1731 = vld [vmem:[%s1722 + $0x40] sm:$0xff]
        %v1732 = vld [vmem:[%s1722 + $0x48] sm:$0xff]
        %v1733 = vld [vmem:[%s1722 + $0x50] sm:$0xff]
        %v1734 = vld [vmem:[%s1722 + $0x58] sm:$0xff]
        %v1735 = vld [vmem:[%s1722 + $0x60] sm:$0xff]
        %v1736 = vld [vmem:[%s1722 + $0x68] sm:$0xff]
        %v1737 = vld [vmem:[%s1722 + $0x70] sm:$0xff]
        %v1738 = vld [vmem:[%s1722 + $0x78] sm:$0xff]
        %v1739 = vld [vmem:[%s1722 + $0x80] sm:$0xff]
        %v1740 = vld [vmem:[%s1722 + $0x88] sm:$0xff]
        %v1741 = vld [vmem:[%s1722 + $0x90] sm:$0xff]
        %v1742 = vld [vmem:[%s1722 + $0x98] sm:$0xff]
        %v1743 = vld [vmem:[%s1722 + $0xa0] sm:$0xff]
        %v1744 = vld [vmem:[%s1722 + $0xa8] sm:$0xff]
        %v1745 = vld [vmem:[%s1722 + $0xb0] sm:$0xff]
        %v1746 = vld [vmem:[%s1722 + $0xb8] sm:$0xff]
        %v1747 = vld [vmem:[%s1722 + $0xc0] sm:$0xff]
        %v1748 = vld [vmem:[%s1722 + $0xc8] sm:$0xff]
        %v1749 = vld [vmem:[%s1722 + $0xd0] sm:$0xff]
        %v1750 = vld [vmem:[%s1722 + $0xd8] sm:$0xff]
        %v1751 = vld [vmem:[%s1722 + $0xe0] sm:$0xff]
        %v1752 = vld [vmem:[%s1722 + $0xe8] sm:$0xff]
        %v1753 = vld [vmem:[%s1722 + $0xf0] sm:$0xff]
        %v1754 = vld [vmem:[%s1722 + $0xf8] sm:$0xff]
        %v1755 = vld [vmem:[%s1722 + $0x100] sm:$0xff]
        %v1756 = vld [vmem:[%s1722 + $0x108] sm:$0xff]
        %v1757 = vld [vmem:[%s1722 + $0x110] sm:$0xff]
        %v1758 = vld [vmem:[%s1722 + $0x118] sm:$0xff]
        %v1759 = vld [vmem:[%s1722 + $0x120] sm:$0xff]
        %v1760 = vld [vmem:[%s1722 + $0x128] sm:$0xff]
        %v1761 = vld [vmem:[%s1722 + $0x130] sm:$0xff]
        %v1762 = vld [vmem:[%s1722 + $0x138] sm:$0xff]
        %v1763 = vld [vmem:[%s1722 + $0x140] sm:$0xff]
        %v1764 = vld [vmem:[%s1722 + $0x148] sm:$0xff]
        %v1765 = vld [vmem:[%s1722 + $0x150] sm:$0xff]
        %v1766 = vld [vmem:[%s1722 + $0x158] sm:$0xff]
        %v1767 = vld [vmem:[%s1722 + $0x160] sm:$0xff]
        %v1768 = vld [vmem:[%s1722 + $0x168] sm:$0xff]
        %v1769 = vld [vmem:[%s1722 + $0x170] sm:$0xff]
        %v1770 = vld [vmem:[%s1722 + $0x178] sm:$0xff]
        %v1771 = vld [vmem:[%s1722 + $0x180] sm:$0xff]
        %v1772 = vld [vmem:[%s1722 + $0x188] sm:$0xff]
        %v1773 = vld [vmem:[%s1722 + $0x190] sm:$0xff]
        %v1774 = vld [vmem:[%s1722 + $0x198] sm:$0xff]
        %v1775 = vld [vmem:[%s1722 + $0x1a0] sm:$0xff]
        %v1776 = vld [vmem:[%s1722 + $0x1a8] sm:$0xff]
        %v1777 = vld [vmem:[%s1722 + $0x1b0] sm:$0xff]
        %v1778 = vld [vmem:[%s1722 + $0x1b8] sm:$0xff]
        %v1779 = vld [vmem:[%s1722 + $0x1c0] sm:$0xff]
        %v1780 = vld [vmem:[%s1722 + $0x1c8] sm:$0xff]
        %v1781 = vld [vmem:[%s1722 + $0x1d0] sm:$0xff]
        %v1782 = vld [vmem:[%s1722 + $0x1d8] sm:$0xff]
        %v1783 = vld [vmem:[%s1722 + $0x1e0] sm:$0xff]
        %v1784 = vld [vmem:[%s1722 + $0x1e8] sm:$0xff]
        %v1785 = vld [vmem:[%s1722 + $0x1f0] sm:$0xff]
        %v1786 = vld [vmem:[%s1722 + $0x1f8] sm:$0xff]
        %1787 = vmatprep.subr.mxu0 %v1754
        %1788 = vmatpush1.msra.mxu0 %v1753
        %1789 = vmatprep.subr.mxu0 %v1752
        %1790 = vmatpush1.msra.mxu0 %v1751
        %1791 = vmatprep.subr.mxu0 %v1750
        %1792 = vmatpush1.msra.mxu0 %v1749
        %1793 = vmatprep.subr.mxu0 %v1748
        %1794 = vmatpush1.msra.mxu0 %v1747
        %1795 = vmatprep.subr.mxu0 %v1746
        %1796 = vmatpush1.msra.mxu0 %v1745
        %1797 = vmatprep.subr.mxu0 %v1744
        %1798 = vmatpush1.msra.mxu0 %v1743
        %1799 = vmatprep.subr.mxu0 %v1742
        %1800 = vmatpush1.msra.mxu0 %v1741
        %1801 = vmatprep.subr.mxu0 %v1740
        %1802 = vmatpush1.msra.mxu0 %v1739
        %1803 = vmatprep.subr.mxu0 %v1738
        %1804 = vmatpush1.msra.mxu0 %v1737
        %1805 = vmatprep.subr.mxu0 %v1736
        %1806 = vmatpush1.msra.mxu0 %v1735
        %1807 = vmatprep.subr.mxu0 %v1734
        %1808 = vmatpush1.msra.mxu0 %v1733
        %1809 = vmatprep.subr.mxu0 %v1732
        %1810 = vmatpush1.msra.mxu0 %v1731
        %1811 = vmatprep.subr.mxu0 %v1730
        %1812 = vmatpush1.msra.mxu0 %v1729
        %1813 = vmatprep.subr.mxu0 %v1728
        %1814 = vmatpush1.msra.mxu0 %v1727
        %1815 = vmatprep.subr.mxu0 %v1726
        %1816 = vmatpush1.msra.mxu0 %v1725
        %1817 = vmatprep.subr.mxu0 %v1724
        %1818 = vmatpush1.msra.mxu0 %v1723
        %1819 = vmatprep.subr.mxu0 %v1786
        %1820 = vmatpush2.msra.mxu0 %v1785
        %1821 = vmatprep.subr.mxu0 %v1784
        %1822 = vmatpush2.msra.mxu0 %v1783
        %1823 = vmatprep.subr.mxu0 %v1782
        %1824 = vmatpush2.msra.mxu0 %v1781
        %1825 = vmatprep.subr.mxu0 %v1780
        %1826 = vmatpush2.msra.mxu0 %v1779
        %1827 = vmatprep.subr.mxu0 %v1778
        %1828 = vmatpush2.msra.mxu0 %v1777
        %1829 = vmatprep.subr.mxu0 %v1776
        %1830 = vmatpush2.msra.mxu0 %v1775
        %1831 = vmatprep.subr.mxu0 %v1774
        %1832 = vmatpush2.msra.mxu0 %v1773
        %1833 = vmatprep.subr.mxu0 %v1772
        %1834 = vmatpush2.msra.mxu0 %v1771
        %1835 = vmatprep.subr.mxu0 %v1770
        %1836 = vmatpush2.msra.mxu0 %v1769
        %1837 = vmatprep.subr.mxu0 %v1768
        %1838 = vmatpush2.msra.mxu0 %v1767
        %1839 = vmatprep.subr.mxu0 %v1766
        %1840 = vmatpush2.msra.mxu0 %v1765
        %1841 = vmatprep.subr.mxu0 %v1764
        %1842 = vmatpush2.msra.mxu0 %v1763
        %1843 = vmatprep.subr.mxu0 %v1762
        %1844 = vmatpush2.msra.mxu0 %v1761
        %1845 = vmatprep.subr.mxu0 %v1760
        %1846 = vmatpush2.msra.mxu0 %v1759
        %1847 = vmatprep.subr.mxu0 %v1758
        %1848 = vmatpush2.msra.mxu0 %v1757
        %1849 = vmatprep.subr.mxu0 %v1756
        %1850 = vmatpush2.msra.mxu0 %v1755
        %1851 = vmatprep.mubr.f32.mxu0 %v1348
        %1852 = vmatmul.mubr.f32.gmra.mxu0 %v1347
        %v1853 = vpop.f32.mrf.mxu0
        %v1854 = vadd.f32 0.0, %v1853
        %v1855 = vpop.f32.mrf.mxu0
        %v1856 = vadd.f32 0.0, %v1855
        %1857 = vmatprep.mubr.f32.mxu0 %v1481
        %1858 = vmatmul.mubr.f32.gmra.mxu0 %v1480
        %v1859 = vpop.f32.mrf.mxu0
        %v1860 = vadd.f32 0.0, %v1859
        %v1861 = vpop.f32.mrf.mxu0
        %v1862 = vadd.f32 0.0, %v1861
        %1863 = vdwg.mxu0
        %1864 = vmatprep.subr.mxu0 %v1447
        %1865 = vmatpush1.msra.mxu0 %v1446
        %1866 = vmatprep.subr.mxu0 %v1445
        %1867 = vmatpush1.msra.mxu0 %v1444
        %1868 = vmatprep.subr.mxu0 %v1443
        %1869 = vmatpush1.msra.mxu0 %v1442
        %1870 = vmatprep.subr.mxu0 %v1441
        %1871 = vmatpush1.msra.mxu0 %v1440
        %1872 = vmatprep.subr.mxu0 %v1439
        %1873 = vmatpush1.msra.mxu0 %v1438
        %1874 = vmatprep.subr.mxu0 %v1437
        %1875 = vmatpush1.msra.mxu0 %v1436
        %1876 = vmatprep.subr.mxu0 %v1435
        %1877 = vmatpush1.msra.mxu0 %v1434
        %1878 = vmatprep.subr.mxu0 %v1433
        %1879 = vmatpush1.msra.mxu0 %v1432
        %1880 = vmatprep.subr.mxu0 %v1431
        %1881 = vmatpush1.msra.mxu0 %v1430
        %1882 = vmatprep.subr.mxu0 %v1429
        %1883 = vmatpush1.msra.mxu0 %v1428
        %1884 = vmatprep.subr.mxu0 %v1427
        %1885 = vmatpush1.msra.mxu0 %v1426
        %1886 = vmatprep.subr.mxu0 %v1425
        %1887 = vmatpush1.msra.mxu0 %v1424
        %1888 = vmatprep.subr.mxu0 %v1423
        %1889 = vmatpush1.msra.mxu0 %v1422
        %1890 = vmatprep.subr.mxu0 %v1421
        %1891 = vmatpush1.msra.mxu0 %v1420
        %1892 = vmatprep.subr.mxu0 %v1419
        %1893 = vmatpush1.msra.mxu0 %v1418
        %1894 = vmatprep.subr.mxu0 %v1417
        %1895 = vmatpush1.msra.mxu0 %v1416
        %1896 = vmatprep.subr.mxu0 %v1479
        %1897 = vmatpush2.msra.mxu0 %v1478
        %1898 = vmatprep.subr.mxu0 %v1477
        %1899 = vmatpush2.msra.mxu0 %v1476
        %1900 = vmatprep.subr.mxu0 %v1475
        %1901 = vmatpush2.msra.mxu0 %v1474
        %1902 = vmatprep.subr.mxu0 %v1473
        %1903 = vmatpush2.msra.mxu0 %v1472
        %1904 = vmatprep.subr.mxu0 %v1471
        %1905 = vmatpush2.msra.mxu0 %v1470
        %1906 = vmatprep.subr.mxu0 %v1469
        %1907 = vmatpush2.msra.mxu0 %v1468
        %1908 = vmatprep.subr.mxu0 %v1467
        %1909 = vmatpush2.msra.mxu0 %v1466
        %1910 = vmatprep.subr.mxu0 %v1465
        %1911 = vmatpush2.msra.mxu0 %v1464
        %1912 = vmatprep.subr.mxu0 %v1463
        %1913 = vmatpush2.msra.mxu0 %v1462
        %1914 = vmatprep.subr.mxu0 %v1461
        %1915 = vmatpush2.msra.mxu0 %v1460
        %1916 = vmatprep.subr.mxu0 %v1459
        %1917 = vmatpush2.msra.mxu0 %v1458
        %1918 = vmatprep.subr.mxu0 %v1457
        %1919 = vmatpush2.msra.mxu0 %v1456
        %1920 = vmatprep.subr.mxu0 %v1455
        %1921 = vmatpush2.msra.mxu0 %v1454
        %1922 = vmatprep.subr.mxu0 %v1453
        %1923 = vmatpush2.msra.mxu0 %v1452
        %1924 = vmatprep.subr.mxu0 %v1451
        %1925 = vmatpush2.msra.mxu0 %v1450
        %1926 = vmatprep.subr.mxu0 %v1449
        %1927 = vmatpush2.msra.mxu0 %v1448
        %1928 = vmatprep.mubr.f32.mxu0 %v1636
        %1929 = vmatmul.mubr.f32.gmra.mxu0 %v1633
        %v1930 = vpop.f32.mrf.mxu0
        %v1931 = vadd.f32 %v1854, %v1930
        %v1932 = vpop.f32.mrf.mxu0
        %v1933 = vadd.f32 %v1856, %v1932
        %1934 = vmatprep.mubr.f32.mxu0 %v1640
        %1935 = vmatmul.mubr.f32.gmra.mxu0 %v1638
        %v1936 = vpop.f32.mrf.mxu0
        %v1937 = vadd.f32 %v1860, %v1936
        %v1938 = vpop.f32.mrf.mxu0
        %v1939 = vadd.f32 %v1862, %v1938
        %1940 = vdwg.mxu0
        %v1941 = vld [vmem:[#allocation3 + $0x10] sm:$0xfe]
        %v1942 = vld [vmem:[#allocation3 + $0x18] sm:$0xfe]
        %v1943 = vld [vmem:[#allocation3 + $0x20] sm:$0xff]
        %v1944 = vld [vmem:[#allocation3 + $0x28] sm:$0xff]
        %v1945 = vld [vmem:[#allocation3 + $0x30] sm:$0x1]
        %v1946 = vld [vmem:[#allocation3 + $0x38] sm:$0x1]
        %s1947 = scalar_lea.vmem [#allocation12], 2048
        %v1948 = vld [vmem:[%s1947] sm:$0xff]
        %v1949 = vld [vmem:[%s1947 + $0x8] sm:$0xff]
        %v1950 = vld [vmem:[%s1947 + $0x10] sm:$0xff]
        %v1951 = vld [vmem:[%s1947 + $0x18] sm:$0xff]
        %v1952 = vld [vmem:[%s1947 + $0x20] sm:$0xff]
        %v1953 = vld [vmem:[%s1947 + $0x28] sm:$0xff]
        %v1954 = vld [vmem:[%s1947 + $0x30] sm:$0xff]
        %v1955 = vld [vmem:[%s1947 + $0x38] sm:$0xff]
        %v1956 = vld [vmem:[%s1947 + $0x40] sm:$0xff]
        %v1957 = vld [vmem:[%s1947 + $0x48] sm:$0xff]
        %v1958 = vld [vmem:[%s1947 + $0x50] sm:$0xff]
        %v1959 = vld [vmem:[%s1947 + $0x58] sm:$0xff]
        %v1960 = vld [vmem:[%s1947 + $0x60] sm:$0xff]
        %v1961 = vld [vmem:[%s1947 + $0x68] sm:$0xff]
        %v1962 = vld [vmem:[%s1947 + $0x70] sm:$0xff]
        %v1963 = vld [vmem:[%s1947 + $0x78] sm:$0xff]
        %v1964 = vld [vmem:[%s1947 + $0x80] sm:$0xff]
        %v1965 = vld [vmem:[%s1947 + $0x88] sm:$0xff]
        %v1966 = vld [vmem:[%s1947 + $0x90] sm:$0xff]
        %v1967 = vld [vmem:[%s1947 + $0x98] sm:$0xff]
        %v1968 = vld [vmem:[%s1947 + $0xa0] sm:$0xff]
        %v1969 = vld [vmem:[%s1947 + $0xa8] sm:$0xff]
        %v1970 = vld [vmem:[%s1947 + $0xb0] sm:$0xff]
        %v1971 = vld [vmem:[%s1947 + $0xb8] sm:$0xff]
        %v1972 = vld [vmem:[%s1947 + $0xc0] sm:$0xff]
        %v1973 = vld [vmem:[%s1947 + $0xc8] sm:$0xff]
        %v1974 = vld [vmem:[%s1947 + $0xd0] sm:$0xff]
        %v1975 = vld [vmem:[%s1947 + $0xd8] sm:$0xff]
        %v1976 = vld [vmem:[%s1947 + $0xe0] sm:$0xff]
        %v1977 = vld [vmem:[%s1947 + $0xe8] sm:$0xff]
        %v1978 = vld [vmem:[%s1947 + $0xf0] sm:$0xff]
        %v1979 = vld [vmem:[%s1947 + $0xf8] sm:$0xff]
        %v1980 = vld [vmem:[%s1947 + $0x100] sm:$0xff]
        %v1981 = vld [vmem:[%s1947 + $0x108] sm:$0xff]
        %v1982 = vld [vmem:[%s1947 + $0x110] sm:$0xff]
        %v1983 = vld [vmem:[%s1947 + $0x118] sm:$0xff]
        %v1984 = vld [vmem:[%s1947 + $0x120] sm:$0xff]
        %v1985 = vld [vmem:[%s1947 + $0x128] sm:$0xff]
        %v1986 = vld [vmem:[%s1947 + $0x130] sm:$0xff]
        %v1987 = vld [vmem:[%s1947 + $0x138] sm:$0xff]
        %v1988 = vld [vmem:[%s1947 + $0x140] sm:$0xff]
        %v1989 = vld [vmem:[%s1947 + $0x148] sm:$0xff]
        %v1990 = vld [vmem:[%s1947 + $0x150] sm:$0xff]
        %v1991 = vld [vmem:[%s1947 + $0x158] sm:$0xff]
        %v1992 = vld [vmem:[%s1947 + $0x160] sm:$0xff]
        %v1993 = vld [vmem:[%s1947 + $0x168] sm:$0xff]
        %v1994 = vld [vmem:[%s1947 + $0x170] sm:$0xff]
        %v1995 = vld [vmem:[%s1947 + $0x178] sm:$0xff]
        %v1996 = vld [vmem:[%s1947 + $0x180] sm:$0xff]
        %v1997 = vld [vmem:[%s1947 + $0x188] sm:$0xff]
        %v1998 = vld [vmem:[%s1947 + $0x190] sm:$0xff]
        %v1999 = vld [vmem:[%s1947 + $0x198] sm:$0xff]
        %v2000 = vld [vmem:[%s1947 + $0x1a0] sm:$0xff]
        %v2001 = vld [vmem:[%s1947 + $0x1a8] sm:$0xff]
        %v2002 = vld [vmem:[%s1947 + $0x1b0] sm:$0xff]
        %v2003 = vld [vmem:[%s1947 + $0x1b8] sm:$0xff]
        %v2004 = vld [vmem:[%s1947 + $0x1c0] sm:$0xff]
        %v2005 = vld [vmem:[%s1947 + $0x1c8] sm:$0xff]
        %v2006 = vld [vmem:[%s1947 + $0x1d0] sm:$0xff]
        %v2007 = vld [vmem:[%s1947 + $0x1d8] sm:$0xff]
        %v2008 = vld [vmem:[%s1947 + $0x1e0] sm:$0xff]
        %v2009 = vld [vmem:[%s1947 + $0x1e8] sm:$0xff]
        %v2010 = vld [vmem:[%s1947 + $0x1f0] sm:$0xff]
        %v2011 = vld [vmem:[%s1947 + $0x1f8] sm:$0xff]
        %vm2018 = vcmask 1046528
        %v2019 = vrot.slane %v1941, 1
        %v2020 = vrot.slane %v1943, 1
        %v2021 = vsel %vm2018, %v2019, %v2020
        %v2022 = vrot.slane %v1942, 1
        %v2023 = vrot.slane %v1944, 1
        %v2024 = vsel %vm2018, %v2022, %v2023
        %v2025 = vrot.slane %v1945, 1
        %v2026 = vsel %vm2018, %v2020, %v2025
        %v2027 = vrot.slane %v1946, 1
        %v2028 = vsel %vm2018, %v2023, %v2027
        %2033 = vmatprep.subr.mxu0 %v1979
        %2034 = vmatpush1.msra.mxu0 %v1978
        %2035 = vmatprep.subr.mxu0 %v1977
        %2036 = vmatpush1.msra.mxu0 %v1976
        %2037 = vmatprep.subr.mxu0 %v1975
        %2038 = vmatpush1.msra.mxu0 %v1974
        %2039 = vmatprep.subr.mxu0 %v1973
        %2040 = vmatpush1.msra.mxu0 %v1972
        %2041 = vmatprep.subr.mxu0 %v1971
        %2042 = vmatpush1.msra.mxu0 %v1970
        %2043 = vmatprep.subr.mxu0 %v1969
        %2044 = vmatpush1.msra.mxu0 %v1968
        %2045 = vmatprep.subr.mxu0 %v1967
        %2046 = vmatpush1.msra.mxu0 %v1966
        %2047 = vmatprep.subr.mxu0 %v1965
        %2048 = vmatpush1.msra.mxu0 %v1964
        %2049 = vmatprep.subr.mxu0 %v1963
        %2050 = vmatpush1.msra.mxu0 %v1962
        %2051 = vmatprep.subr.mxu0 %v1961
        %2052 = vmatpush1.msra.mxu0 %v1960
        %2053 = vmatprep.subr.mxu0 %v1959
        %2054 = vmatpush1.msra.mxu0 %v1958
        %2055 = vmatprep.subr.mxu0 %v1957
        %2056 = vmatpush1.msra.mxu0 %v1956
        %2057 = vmatprep.subr.mxu0 %v1955
        %2058 = vmatpush1.msra.mxu0 %v1954
        %2059 = vmatprep.subr.mxu0 %v1953
        %2060 = vmatpush1.msra.mxu0 %v1952
        %2061 = vmatprep.subr.mxu0 %v1951
        %2062 = vmatpush1.msra.mxu0 %v1950
        %2063 = vmatprep.subr.mxu0 %v1949
        %2064 = vmatpush1.msra.mxu0 %v1948
        %2065 = vmatprep.subr.mxu0 %v2011
        %2066 = vmatpush2.msra.mxu0 %v2010
        %2067 = vmatprep.subr.mxu0 %v2009
        %2068 = vmatpush2.msra.mxu0 %v2008
        %2069 = vmatprep.subr.mxu0 %v2007
        %2070 = vmatpush2.msra.mxu0 %v2006
        %2071 = vmatprep.subr.mxu0 %v2005
        %2072 = vmatpush2.msra.mxu0 %v2004
        %2073 = vmatprep.subr.mxu0 %v2003
        %2074 = vmatpush2.msra.mxu0 %v2002
        %2075 = vmatprep.subr.mxu0 %v2001
        %2076 = vmatpush2.msra.mxu0 %v2000
        %2077 = vmatprep.subr.mxu0 %v1999
        %2078 = vmatpush2.msra.mxu0 %v1998
        %2079 = vmatprep.subr.mxu0 %v1997
        %2080 = vmatpush2.msra.mxu0 %v1996
        %2081 = vmatprep.subr.mxu0 %v1995
        %2082 = vmatpush2.msra.mxu0 %v1994
        %2083 = vmatprep.subr.mxu0 %v1993
        %2084 = vmatpush2.msra.mxu0 %v1992
        %2085 = vmatprep.subr.mxu0 %v1991
        %2086 = vmatpush2.msra.mxu0 %v1990
        %2087 = vmatprep.subr.mxu0 %v1989
        %2088 = vmatpush2.msra.mxu0 %v1988
        %2089 = vmatprep.subr.mxu0 %v1987
        %2090 = vmatpush2.msra.mxu0 %v1986
        %2091 = vmatprep.subr.mxu0 %v1985
        %2092 = vmatpush2.msra.mxu0 %v1984
        %2093 = vmatprep.subr.mxu0 %v1983
        %2094 = vmatpush2.msra.mxu0 %v1982
        %2095 = vmatprep.subr.mxu0 %v1981
        %2096 = vmatpush2.msra.mxu0 %v1980
        %2097 = vmatprep.mubr.f32.mxu0 %v2024
        %2098 = vmatmul.mubr.f32.gmra.mxu0 %v2021
        %v2099 = vpop.f32.mrf.mxu0
        %v2100 = vadd.f32 0.0, %v2099
        %v2101 = vpop.f32.mrf.mxu0
        %v2102 = vadd.f32 0.0, %v2101
        %2103 = vmatprep.mubr.f32.mxu0 %v2028
        %2104 = vmatmul.mubr.f32.gmra.mxu0 %v2026
        %v2105 = vpop.f32.mrf.mxu0
        %v2106 = vadd.f32 0.0, %v2105
        %v2107 = vpop.f32.mrf.mxu0
        %v2108 = vadd.f32 0.0, %v2107
        %2109 = vdwg.mxu0
        %v2110 = vadd.f32 %v1712, %v2100
        %v2111 = vadd.f32 %v1714, %v2102
        %v2112 = vadd.f32 %v1718, %v2106
        %v2113 = vadd.f32 %v1720, %v2108
        %s2114 = scalar_lea.vmem [#allocation12], 2560
        %v2115 = vld [vmem:[%s2114] sm:$0xff]
        %v2116 = vld [vmem:[%s2114 + $0x8] sm:$0xff]
        %v2117 = vld [vmem:[%s2114 + $0x10] sm:$0xff]
        %v2118 = vld [vmem:[%s2114 + $0x18] sm:$0xff]
        %v2119 = vld [vmem:[%s2114 + $0x20] sm:$0xff]
        %v2120 = vld [vmem:[%s2114 + $0x28] sm:$0xff]
        %v2121 = vld [vmem:[%s2114 + $0x30] sm:$0xff]
        %v2122 = vld [vmem:[%s2114 + $0x38] sm:$0xff]
        %v2123 = vld [vmem:[%s2114 + $0x40] sm:$0xff]
        %v2124 = vld [vmem:[%s2114 + $0x48] sm:$0xff]
        %v2125 = vld [vmem:[%s2114 + $0x50] sm:$0xff]
        %v2126 = vld [vmem:[%s2114 + $0x58] sm:$0xff]
        %v2127 = vld [vmem:[%s2114 + $0x60] sm:$0xff]
        %v2128 = vld [vmem:[%s2114 + $0x68] sm:$0xff]
        %v2129 = vld [vmem:[%s2114 + $0x70] sm:$0xff]
        %v2130 = vld [vmem:[%s2114 + $0x78] sm:$0xff]
        %v2131 = vld [vmem:[%s2114 + $0x80] sm:$0xff]
        %v2132 = vld [vmem:[%s2114 + $0x88] sm:$0xff]
        %v2133 = vld [vmem:[%s2114 + $0x90] sm:$0xff]
        %v2134 = vld [vmem:[%s2114 + $0x98] sm:$0xff]
        %v2135 = vld [vmem:[%s2114 + $0xa0] sm:$0xff]
        %v2136 = vld [vmem:[%s2114 + $0xa8] sm:$0xff]
        %v2137 = vld [vmem:[%s2114 + $0xb0] sm:$0xff]
        %v2138 = vld [vmem:[%s2114 + $0xb8] sm:$0xff]
        %v2139 = vld [vmem:[%s2114 + $0xc0] sm:$0xff]
        %v2140 = vld [vmem:[%s2114 + $0xc8] sm:$0xff]
        %v2141 = vld [vmem:[%s2114 + $0xd0] sm:$0xff]
        %v2142 = vld [vmem:[%s2114 + $0xd8] sm:$0xff]
        %v2143 = vld [vmem:[%s2114 + $0xe0] sm:$0xff]
        %v2144 = vld [vmem:[%s2114 + $0xe8] sm:$0xff]
        %v2145 = vld [vmem:[%s2114 + $0xf0] sm:$0xff]
        %v2146 = vld [vmem:[%s2114 + $0xf8] sm:$0xff]
        %v2147 = vld [vmem:[%s2114 + $0x100] sm:$0xff]
        %v2148 = vld [vmem:[%s2114 + $0x108] sm:$0xff]
        %v2149 = vld [vmem:[%s2114 + $0x110] sm:$0xff]
        %v2150 = vld [vmem:[%s2114 + $0x118] sm:$0xff]
        %v2151 = vld [vmem:[%s2114 + $0x120] sm:$0xff]
        %v2152 = vld [vmem:[%s2114 + $0x128] sm:$0xff]
        %v2153 = vld [vmem:[%s2114 + $0x130] sm:$0xff]
        %v2154 = vld [vmem:[%s2114 + $0x138] sm:$0xff]
        %v2155 = vld [vmem:[%s2114 + $0x140] sm:$0xff]
        %v2156 = vld [vmem:[%s2114 + $0x148] sm:$0xff]
        %v2157 = vld [vmem:[%s2114 + $0x150] sm:$0xff]
        %v2158 = vld [vmem:[%s2114 + $0x158] sm:$0xff]
        %v2159 = vld [vmem:[%s2114 + $0x160] sm:$0xff]
        %v2160 = vld [vmem:[%s2114 + $0x168] sm:$0xff]
        %v2161 = vld [vmem:[%s2114 + $0x170] sm:$0xff]
        %v2162 = vld [vmem:[%s2114 + $0x178] sm:$0xff]
        %v2163 = vld [vmem:[%s2114 + $0x180] sm:$0xff]
        %v2164 = vld [vmem:[%s2114 + $0x188] sm:$0xff]
        %v2165 = vld [vmem:[%s2114 + $0x190] sm:$0xff]
        %v2166 = vld [vmem:[%s2114 + $0x198] sm:$0xff]
        %v2167 = vld [vmem:[%s2114 + $0x1a0] sm:$0xff]
        %v2168 = vld [vmem:[%s2114 + $0x1a8] sm:$0xff]
        %v2169 = vld [vmem:[%s2114 + $0x1b0] sm:$0xff]
        %v2170 = vld [vmem:[%s2114 + $0x1b8] sm:$0xff]
        %v2171 = vld [vmem:[%s2114 + $0x1c0] sm:$0xff]
        %v2172 = vld [vmem:[%s2114 + $0x1c8] sm:$0xff]
        %v2173 = vld [vmem:[%s2114 + $0x1d0] sm:$0xff]
        %v2174 = vld [vmem:[%s2114 + $0x1d8] sm:$0xff]
        %v2175 = vld [vmem:[%s2114 + $0x1e0] sm:$0xff]
        %v2176 = vld [vmem:[%s2114 + $0x1e8] sm:$0xff]
        %v2177 = vld [vmem:[%s2114 + $0x1f0] sm:$0xff]
        %v2178 = vld [vmem:[%s2114 + $0x1f8] sm:$0xff]
        %2179 = vmatprep.subr.mxu0 %v2146
        %2180 = vmatpush1.msra.mxu0 %v2145
        %2181 = vmatprep.subr.mxu0 %v2144
        %2182 = vmatpush1.msra.mxu0 %v2143
        %2183 = vmatprep.subr.mxu0 %v2142
        %2184 = vmatpush1.msra.mxu0 %v2141
        %2185 = vmatprep.subr.mxu0 %v2140
        %2186 = vmatpush1.msra.mxu0 %v2139
        %2187 = vmatprep.subr.mxu0 %v2138
        %2188 = vmatpush1.msra.mxu0 %v2137
        %2189 = vmatprep.subr.mxu0 %v2136
        %2190 = vmatpush1.msra.mxu0 %v2135
        %2191 = vmatprep.subr.mxu0 %v2134
        %2192 = vmatpush1.msra.mxu0 %v2133
        %2193 = vmatprep.subr.mxu0 %v2132
        %2194 = vmatpush1.msra.mxu0 %v2131
        %2195 = vmatprep.subr.mxu0 %v2130
        %2196 = vmatpush1.msra.mxu0 %v2129
        %2197 = vmatprep.subr.mxu0 %v2128
        %2198 = vmatpush1.msra.mxu0 %v2127
        %2199 = vmatprep.subr.mxu0 %v2126
        %2200 = vmatpush1.msra.mxu0 %v2125
        %2201 = vmatprep.subr.mxu0 %v2124
        %2202 = vmatpush1.msra.mxu0 %v2123
        %2203 = vmatprep.subr.mxu0 %v2122
        %2204 = vmatpush1.msra.mxu0 %v2121
        %2205 = vmatprep.subr.mxu0 %v2120
        %2206 = vmatpush1.msra.mxu0 %v2119
        %2207 = vmatprep.subr.mxu0 %v2118
        %2208 = vmatpush1.msra.mxu0 %v2117
        %2209 = vmatprep.subr.mxu0 %v2116
        %2210 = vmatpush1.msra.mxu0 %v2115
        %2211 = vmatprep.subr.mxu0 %v2178
        %2212 = vmatpush2.msra.mxu0 %v2177
        %2213 = vmatprep.subr.mxu0 %v2176
        %2214 = vmatpush2.msra.mxu0 %v2175
        %2215 = vmatprep.subr.mxu0 %v2174
        %2216 = vmatpush2.msra.mxu0 %v2173
        %2217 = vmatprep.subr.mxu0 %v2172
        %2218 = vmatpush2.msra.mxu0 %v2171
        %2219 = vmatprep.subr.mxu0 %v2170
        %2220 = vmatpush2.msra.mxu0 %v2169
        %2221 = vmatprep.subr.mxu0 %v2168
        %2222 = vmatpush2.msra.mxu0 %v2167
        %2223 = vmatprep.subr.mxu0 %v2166
        %2224 = vmatpush2.msra.mxu0 %v2165
        %2225 = vmatprep.subr.mxu0 %v2164
        %2226 = vmatpush2.msra.mxu0 %v2163
        %2227 = vmatprep.subr.mxu0 %v2162
        %2228 = vmatpush2.msra.mxu0 %v2161
        %2229 = vmatprep.subr.mxu0 %v2160
        %2230 = vmatpush2.msra.mxu0 %v2159
        %2231 = vmatprep.subr.mxu0 %v2158
        %2232 = vmatpush2.msra.mxu0 %v2157
        %2233 = vmatprep.subr.mxu0 %v2156
        %2234 = vmatpush2.msra.mxu0 %v2155
        %2235 = vmatprep.subr.mxu0 %v2154
        %2236 = vmatpush2.msra.mxu0 %v2153
        %2237 = vmatprep.subr.mxu0 %v2152
        %2238 = vmatpush2.msra.mxu0 %v2151
        %2239 = vmatprep.subr.mxu0 %v2150
        %2240 = vmatpush2.msra.mxu0 %v2149
        %2241 = vmatprep.subr.mxu0 %v2148
        %2242 = vmatpush2.msra.mxu0 %v2147
        %2243 = vmatprep.mubr.f32.mxu0 %v2024
        %2244 = vmatmul.mubr.f32.gmra.mxu0 %v2021
        %v2245 = vpop.f32.mrf.mxu0
        %v2246 = vadd.f32 0.0, %v2245
        %v2247 = vpop.f32.mrf.mxu0
        %v2248 = vadd.f32 0.0, %v2247
        %2249 = vmatprep.mubr.f32.mxu0 %v2028
        %2250 = vmatmul.mubr.f32.gmra.mxu0 %v2026
        %v2251 = vpop.f32.mrf.mxu0
        %v2252 = vadd.f32 0.0, %v2251
        %v2253 = vpop.f32.mrf.mxu0
        %v2254 = vadd.f32 0.0, %v2253
        %2255 = vdwg.mxu0
        %v2256 = vadd.f32 %v1931, %v2246
        %v2257 = vadd.f32 %v1933, %v2248
        %v2258 = vadd.f32 %v1937, %v2252
        %v2259 = vadd.f32 %v1939, %v2254
        %v2260 = vmax.f32 %v2110, %v2256
        %v2261 = vmax.f32 %v2111, %v2257
        %v2262 = vmax.f32 %v2112, %v2258
        %v2263 = vmax.f32 %v2113, %v2259
        %v2264 = vld [vmem:[#allocation13] sm:$0xff]
        %vm2265 = vcmask 130048
        %v2267 = vsel %vm2265, %v2264, 0
        %2269 = vmatprep.subr.mxu0 0.0
        %2270 = vmatpush1.msra.mxu0 0.0
        %2271 = vmatprep.subr.mxu0 0.0
        %2272 = vmatpush1.msra.mxu0 0.0
        %2273 = vmatprep.subr.mxu0 0.0
        %2274 = vmatpush1.msra.mxu0 0.0
        %2275 = vmatprep.subr.mxu0 0.0
        %2276 = vmatpush1.msra.mxu0 0.0
        %2277 = vmatprep.subr.mxu0 0.0
        %2278 = vmatpush1.msra.mxu0 0.0
        %2279 = vmatprep.subr.mxu0 0.0
        %2280 = vmatpush1.msra.mxu0 0.0
        %2281 = vmatprep.subr.mxu0 0.0
        %2282 = vmatpush1.msra.mxu0 0.0
        %2283 = vmatprep.subr.mxu0 0.0
        %2284 = vmatpush1.msra.mxu0 0.0
        %2285 = vmatprep.subr.mxu0 0.0
        %2286 = vmatpush1.msra.mxu0 0.0
        %2287 = vmatprep.subr.mxu0 0.0
        %2288 = vmatpush1.msra.mxu0 0.0
        %2289 = vmatprep.subr.mxu0 0.0
        %2290 = vmatpush1.msra.mxu0 0.0
        %2291 = vmatprep.subr.mxu0 0.0
        %2292 = vmatpush1.msra.mxu0 0.0
        %2293 = vmatprep.subr.mxu0 0.0
        %2294 = vmatpush1.msra.mxu0 0.0
        %2295 = vmatprep.subr.mxu0 0.0
        %2296 = vmatpush1.msra.mxu0 0.0
        %2297 = vmatprep.subr.mxu0 %v2263
        %2298 = vmatpush1.msra.mxu0 %v2262
        %2299 = vmatprep.subr.mxu0 %v2261
        %2300 = vmatpush1.msra.mxu0 %v2260
        %2301 = vmatprep.subr.mxu0 0.0
        %2302 = vmatpush2.msra.mxu0 0.0
        %2303 = vmatprep.subr.mxu0 0.0
        %2304 = vmatpush2.msra.mxu0 0.0
        %2305 = vmatprep.subr.mxu0 0.0
        %2306 = vmatpush2.msra.mxu0 0.0
        %2307 = vmatprep.subr.mxu0 0.0
        %2308 = vmatpush2.msra.mxu0 0.0
        %2309 = vmatprep.subr.mxu0 0.0
        %2310 = vmatpush2.msra.mxu0 0.0
        %2311 = vmatprep.subr.mxu0 0.0
        %2312 = vmatpush2.msra.mxu0 0.0
        %2313 = vmatprep.subr.mxu0 0.0
        %2314 = vmatpush2.msra.mxu0 0.0
        %2315 = vmatprep.subr.mxu0 0.0
        %2316 = vmatpush2.msra.mxu0 0.0
        %2317 = vmatprep.subr.mxu0 0.0
        %2318 = vmatpush2.msra.mxu0 0.0
        %2319 = vmatprep.subr.mxu0 0.0
        %2320 = vmatpush2.msra.mxu0 0.0
        %2321 = vmatprep.subr.mxu0 0.0
        %2322 = vmatpush2.msra.mxu0 0.0
        %2323 = vmatprep.subr.mxu0 0.0
        %2324 = vmatpush2.msra.mxu0 0.0
        %2325 = vmatprep.subr.mxu0 0.0
        %2326 = vmatpush2.msra.mxu0 0.0
        %2327 = vmatprep.subr.mxu0 0.0
        %2328 = vmatpush2.msra.mxu0 0.0
        %2329 = vmatprep.subr.mxu0 0.0
        %2330 = vmatpush2.msra.mxu0 0.0
        %2331 = vmatprep.subr.mxu0 0.0
        %2332 = vmatpush2.msra.mxu0 0.0
        %2333 = vmatprep.mubr.f32.mxu0 0.0
        %2334 = vmatmul.mubr.f32.gmra.mxu0 %v2267
        %v2335 = vpop.f32.mrf.mxu0
        %v2336 = vadd.f32 0.0, %v2335
        %v2337 = vpop.f32.mrf.mxu0
        %v2338 = vadd.f32 0.0, %v2337
        %2339 = vdwg.mxu0
        %s2340 = scalar_lea.vmem [#allocation13], 8
        %v2341 = vld [vmem:[%s2340] sm:$0xff]
        %v2343 = vsel %vm2265, %v2341, 0
        %2345 = vmatprep.subr.mxu0 0.0
        %2346 = vmatpush1.msra.mxu0 0.0
        %2347 = vmatprep.subr.mxu0 0.0
        %2348 = vmatpush1.msra.mxu0 0.0
        %2349 = vmatprep.subr.mxu0 0.0
        %2350 = vmatpush1.msra.mxu0 0.0
        %2351 = vmatprep.subr.mxu0 0.0
        %2352 = vmatpush1.msra.mxu0 0.0
        %2353 = vmatprep.subr.mxu0 0.0
        %2354 = vmatpush1.msra.mxu0 0.0
        %2355 = vmatprep.subr.mxu0 0.0
        %2356 = vmatpush1.msra.mxu0 0.0
        %2357 = vmatprep.subr.mxu0 0.0
        %2358 = vmatpush1.msra.mxu0 0.0
        %2359 = vmatprep.subr.mxu0 0.0
        %2360 = vmatpush1.msra.mxu0 0.0
        %2361 = vmatprep.subr.mxu0 0.0
        %2362 = vmatpush1.msra.mxu0 0.0
        %2363 = vmatprep.subr.mxu0 0.0
        %2364 = vmatpush1.msra.mxu0 0.0
        %2365 = vmatprep.subr.mxu0 0.0
        %2366 = vmatpush1.msra.mxu0 0.0
        %2367 = vmatprep.subr.mxu0 0.0
        %2368 = vmatpush1.msra.mxu0 0.0
        %2369 = vmatprep.subr.mxu0 0.0
        %2370 = vmatpush1.msra.mxu0 0.0
        %2371 = vmatprep.subr.mxu0 0.0
        %2372 = vmatpush1.msra.mxu0 0.0
        %2373 = vmatprep.subr.mxu0 %v2263
        %2374 = vmatpush1.msra.mxu0 %v2262
        %2375 = vmatprep.subr.mxu0 %v2261
        %2376 = vmatpush1.msra.mxu0 %v2260
        %2377 = vmatprep.subr.mxu0 0.0
        %2378 = vmatpush2.msra.mxu0 0.0
        %2379 = vmatprep.subr.mxu0 0.0
        %2380 = vmatpush2.msra.mxu0 0.0
        %2381 = vmatprep.subr.mxu0 0.0
        %2382 = vmatpush2.msra.mxu0 0.0
        %2383 = vmatprep.subr.mxu0 0.0
        %2384 = vmatpush2.msra.mxu0 0.0
        %2385 = vmatprep.subr.mxu0 0.0
        %2386 = vmatpush2.msra.mxu0 0.0
        %2387 = vmatprep.subr.mxu0 0.0
        %2388 = vmatpush2.msra.mxu0 0.0
        %2389 = vmatprep.subr.mxu0 0.0
        %2390 = vmatpush2.msra.mxu0 0.0
        %2391 = vmatprep.subr.mxu0 0.0
        %2392 = vmatpush2.msra.mxu0 0.0
        %2393 = vmatprep.subr.mxu0 0.0
        %2394 = vmatpush2.msra.mxu0 0.0
        %2395 = vmatprep.subr.mxu0 0.0
        %2396 = vmatpush2.msra.mxu0 0.0
        %2397 = vmatprep.subr.mxu0 0.0
        %2398 = vmatpush2.msra.mxu0 0.0
        %2399 = vmatprep.subr.mxu0 0.0
        %2400 = vmatpush2.msra.mxu0 0.0
        %2401 = vmatprep.subr.mxu0 0.0
        %2402 = vmatpush2.msra.mxu0 0.0
        %2403 = vmatprep.subr.mxu0 0.0
        %2404 = vmatpush2.msra.mxu0 0.0
        %2405 = vmatprep.subr.mxu0 0.0
        %2406 = vmatpush2.msra.mxu0 0.0
        %2407 = vmatprep.subr.mxu0 0.0
        %2408 = vmatpush2.msra.mxu0 0.0
        %2409 = vmatprep.mubr.f32.mxu0 0.0
        %2410 = vmatmul.mubr.f32.gmra.mxu0 %v2343
        %v2411 = vpop.f32.mrf.mxu0
        %v2412 = vadd.f32 0.0, %v2411
        %v2413 = vpop.f32.mrf.mxu0
        %v2414 = vadd.f32 0.0, %v2413
        %2415 = vdwg.mxu0
        %v2416 = vmax.f32 %v2336, %v2412
        %v2417 = vmax.f32 %v2338, %v2414
        %v2418 = vld [vmem:[#allocation15] sm:$0x3]
        %v2420 = vlaneseq
        %v2421 = vshrl.u32 %v2420, 7
        %v2422 = vsub.s32 0, %v2421
        %v2423 = vrot.slane %v2418, %v2422
        %v2424 = vlaneseq
        %v2425 = vshrl.u32 %v2424, 7
        %v2426 = vsub.s32 1, %v2425
        %v2427 = vrot.slane %v2418, %v2426
        %v2430 = vadd.f32 %v2416, %v2423
        %v2431 = vadd.f32 %v2417, %v2427
        %v2432 = vmax.f32 %v2430, 0.0
        %v2433 = vmax.f32 %v2431, 0.0
        %2434 = vst [vmem:[#allocation4] sm:$0xff] 0.0
        %2435 = vst [vmem:[#allocation4 + $0x8] sm:$0xff] 0.0
        %2436 = vst [vmem:[#allocation4 + $0x10] sm:$0xff] 0.0
        %2437 = vst [vmem:[#allocation4 + $0x18] sm:$0xff] 0.0
        %2438 = vst [vmem:[#allocation4 + $0x20] sm:$0x1] 0.0
        %2439 = vst [vmem:[#allocation4 + $0x28] sm:$0x1] 0.0
        %2440 = vst [vmem:[#allocation4 + $0x10] sm:$0xff] %v2432
        %2441 = vst [vmem:[#allocation4 + $0x18] sm:$0xff] %v2433
        %v2442 = vld [vmem:[#allocation4] sm:$0x80]
        %v2443 = vld [vmem:[#allocation4 + $0x8] sm:$0x80]
        %v2444 = vld [vmem:[#allocation4 + $0x10] sm:$0x7f]
        %v2445 = vld [vmem:[#allocation4 + $0x18] sm:$0x7f]
        %v2446 = vld [vmem:[#allocation16] sm:$0xff]
        %v2447 = vld [vmem:[#allocation16 + $0x8] sm:$0xff]
        %v2448 = vld [vmem:[#allocation16 + $0x10] sm:$0xff]
        %v2449 = vld [vmem:[#allocation16 + $0x18] sm:$0xff]
        %v2450 = vld [vmem:[#allocation16 + $0x20] sm:$0xff]
        %v2451 = vld [vmem:[#allocation16 + $0x28] sm:$0xff]
        %v2452 = vld [vmem:[#allocation16 + $0x30] sm:$0xff]
        %v2453 = vld [vmem:[#allocation16 + $0x38] sm:$0xff]
        %v2454 = vld [vmem:[#allocation16 + $0x40] sm:$0xff]
        %v2455 = vld [vmem:[#allocation16 + $0x48] sm:$0xff]
        %v2456 = vld [vmem:[#allocation16 + $0x50] sm:$0xff]
        %v2457 = vld [vmem:[#allocation16 + $0x58] sm:$0xff]
        %v2458 = vld [vmem:[#allocation16 + $0x60] sm:$0xff]
        %v2459 = vld [vmem:[#allocation16 + $0x68] sm:$0xff]
        %v2460 = vld [vmem:[#allocation16 + $0x70] sm:$0xff]
        %v2461 = vld [vmem:[#allocation16 + $0x78] sm:$0xff]
        %v2462 = vld [vmem:[#allocation16 + $0x80] sm:$0xff]
        %v2463 = vld [vmem:[#allocation16 + $0x88] sm:$0xff]
        %v2464 = vld [vmem:[#allocation16 + $0x90] sm:$0xff]
        %v2465 = vld [vmem:[#allocation16 + $0x98] sm:$0xff]
        %v2466 = vld [vmem:[#allocation16 + $0xa0] sm:$0xff]
        %v2467 = vld [vmem:[#allocation16 + $0xa8] sm:$0xff]
        %v2468 = vld [vmem:[#allocation16 + $0xb0] sm:$0xff]
        %v2469 = vld [vmem:[#allocation16 + $0xb8] sm:$0xff]
        %v2470 = vld [vmem:[#allocation16 + $0xc0] sm:$0xff]
        %v2471 = vld [vmem:[#allocation16 + $0xc8] sm:$0xff]
        %v2472 = vld [vmem:[#allocation16 + $0xd0] sm:$0xff]
        %v2473 = vld [vmem:[#allocation16 + $0xd8] sm:$0xff]
        %v2474 = vld [vmem:[#allocation16 + $0xe0] sm:$0xff]
        %v2475 = vld [vmem:[#allocation16 + $0xe8] sm:$0xff]
        %v2476 = vld [vmem:[#allocation16 + $0xf0] sm:$0xff]
        %v2477 = vld [vmem:[#allocation16 + $0xf8] sm:$0xff]
        %v2478 = vld [vmem:[#allocation16 + $0x100] sm:$0xff]
        %v2479 = vld [vmem:[#allocation16 + $0x108] sm:$0xff]
        %v2480 = vld [vmem:[#allocation16 + $0x110] sm:$0xff]
        %v2481 = vld [vmem:[#allocation16 + $0x118] sm:$0xff]
        %v2482 = vld [vmem:[#allocation16 + $0x120] sm:$0xff]
        %v2483 = vld [vmem:[#allocation16 + $0x128] sm:$0xff]
        %v2484 = vld [vmem:[#allocation16 + $0x130] sm:$0xff]
        %v2485 = vld [vmem:[#allocation16 + $0x138] sm:$0xff]
        %v2486 = vld [vmem:[#allocation16 + $0x140] sm:$0xff]
        %v2487 = vld [vmem:[#allocation16 + $0x148] sm:$0xff]
        %v2488 = vld [vmem:[#allocation16 + $0x150] sm:$0xff]
        %v2489 = vld [vmem:[#allocation16 + $0x158] sm:$0xff]
        %v2490 = vld [vmem:[#allocation16 + $0x160] sm:$0xff]
        %v2491 = vld [vmem:[#allocation16 + $0x168] sm:$0xff]
        %v2492 = vld [vmem:[#allocation16 + $0x170] sm:$0xff]
        %v2493 = vld [vmem:[#allocation16 + $0x178] sm:$0xff]
        %v2494 = vld [vmem:[#allocation16 + $0x180] sm:$0xff]
        %v2495 = vld [vmem:[#allocation16 + $0x188] sm:$0xff]
        %v2496 = vld [vmem:[#allocation16 + $0x190] sm:$0xff]
        %v2497 = vld [vmem:[#allocation16 + $0x198] sm:$0xff]
        %v2498 = vld [vmem:[#allocation16 + $0x1a0] sm:$0xff]
        %v2499 = vld [vmem:[#allocation16 + $0x1a8] sm:$0xff]
        %v2500 = vld [vmem:[#allocation16 + $0x1b0] sm:$0xff]
        %v2501 = vld [vmem:[#allocation16 + $0x1b8] sm:$0xff]
        %v2502 = vld [vmem:[#allocation16 + $0x1c0] sm:$0xff]
        %v2503 = vld [vmem:[#allocation16 + $0x1c8] sm:$0xff]
        %v2504 = vld [vmem:[#allocation16 + $0x1d0] sm:$0xff]
        %v2505 = vld [vmem:[#allocation16 + $0x1d8] sm:$0xff]
        %v2506 = vld [vmem:[#allocation16 + $0x1e0] sm:$0xff]
        %v2507 = vld [vmem:[#allocation16 + $0x1e8] sm:$0xff]
        %v2508 = vld [vmem:[#allocation16 + $0x1f0] sm:$0xff]
        %v2509 = vld [vmem:[#allocation16 + $0x1f8] sm:$0xff]
        %v2510 = vld [vmem:[#allocation16 + $0x200] sm:$0xff]
        %v2511 = vld [vmem:[#allocation16 + $0x208] sm:$0xff]
        %v2512 = vld [vmem:[#allocation16 + $0x210] sm:$0xff]
        %v2513 = vld [vmem:[#allocation16 + $0x218] sm:$0xff]
        %v2514 = vld [vmem:[#allocation16 + $0x220] sm:$0xff]
        %v2515 = vld [vmem:[#allocation16 + $0x228] sm:$0xff]
        %v2516 = vld [vmem:[#allocation16 + $0x230] sm:$0xff]
        %v2517 = vld [vmem:[#allocation16 + $0x238] sm:$0xff]
        %v2518 = vld [vmem:[#allocation16 + $0x240] sm:$0xff]
        %v2519 = vld [vmem:[#allocation16 + $0x248] sm:$0xff]
        %v2520 = vld [vmem:[#allocation16 + $0x250] sm:$0xff]
        %v2521 = vld [vmem:[#allocation16 + $0x258] sm:$0xff]
        %v2522 = vld [vmem:[#allocation16 + $0x260] sm:$0xff]
        %v2523 = vld [vmem:[#allocation16 + $0x268] sm:$0xff]
        %v2524 = vld [vmem:[#allocation16 + $0x270] sm:$0xff]
        %v2525 = vld [vmem:[#allocation16 + $0x278] sm:$0xff]
        %v2526 = vld [vmem:[#allocation16 + $0x280] sm:$0xff]
        %v2527 = vld [vmem:[#allocation16 + $0x288] sm:$0xff]
        %v2528 = vld [vmem:[#allocation16 + $0x290] sm:$0xff]
        %v2529 = vld [vmem:[#allocation16 + $0x298] sm:$0xff]
        %v2530 = vld [vmem:[#allocation16 + $0x2a0] sm:$0xff]
        %v2531 = vld [vmem:[#allocation16 + $0x2a8] sm:$0xff]
        %v2532 = vld [vmem:[#allocation16 + $0x2b0] sm:$0xff]
        %v2533 = vld [vmem:[#allocation16 + $0x2b8] sm:$0xff]
        %v2534 = vld [vmem:[#allocation16 + $0x2c0] sm:$0xff]
        %v2535 = vld [vmem:[#allocation16 + $0x2c8] sm:$0xff]
        %v2536 = vld [vmem:[#allocation16 + $0x2d0] sm:$0xff]
        %v2537 = vld [vmem:[#allocation16 + $0x2d8] sm:$0xff]
        %v2538 = vld [vmem:[#allocation16 + $0x2e0] sm:$0xff]
        %v2539 = vld [vmem:[#allocation16 + $0x2e8] sm:$0xff]
        %v2540 = vld [vmem:[#allocation16 + $0x2f0] sm:$0xff]
        %v2541 = vld [vmem:[#allocation16 + $0x2f8] sm:$0xff]
        %v2542 = vld [vmem:[#allocation16 + $0x300] sm:$0xff]
        %v2543 = vld [vmem:[#allocation16 + $0x308] sm:$0xff]
        %v2544 = vld [vmem:[#allocation16 + $0x310] sm:$0xff]
        %v2545 = vld [vmem:[#allocation16 + $0x318] sm:$0xff]
        %v2546 = vld [vmem:[#allocation16 + $0x320] sm:$0xff]
        %v2547 = vld [vmem:[#allocation16 + $0x328] sm:$0xff]
        %v2548 = vld [vmem:[#allocation16 + $0x330] sm:$0xff]
        %v2549 = vld [vmem:[#allocation16 + $0x338] sm:$0xff]
        %v2550 = vld [vmem:[#allocation16 + $0x340] sm:$0xff]
        %v2551 = vld [vmem:[#allocation16 + $0x348] sm:$0xff]
        %v2552 = vld [vmem:[#allocation16 + $0x350] sm:$0xff]
        %v2553 = vld [vmem:[#allocation16 + $0x358] sm:$0xff]
        %v2554 = vld [vmem:[#allocation16 + $0x360] sm:$0xff]
        %v2555 = vld [vmem:[#allocation16 + $0x368] sm:$0xff]
        %v2556 = vld [vmem:[#allocation16 + $0x370] sm:$0xff]
        %v2557 = vld [vmem:[#allocation16 + $0x378] sm:$0xff]
        %v2558 = vld [vmem:[#allocation16 + $0x380] sm:$0xff]
        %v2559 = vld [vmem:[#allocation16 + $0x388] sm:$0xff]
        %v2560 = vld [vmem:[#allocation16 + $0x390] sm:$0xff]
        %v2561 = vld [vmem:[#allocation16 + $0x398] sm:$0xff]
        %v2562 = vld [vmem:[#allocation16 + $0x3a0] sm:$0xff]
        %v2563 = vld [vmem:[#allocation16 + $0x3a8] sm:$0xff]
        %v2564 = vld [vmem:[#allocation16 + $0x3b0] sm:$0xff]
        %v2565 = vld [vmem:[#allocation16 + $0x3b8] sm:$0xff]
        %v2566 = vld [vmem:[#allocation16 + $0x3c0] sm:$0xff]
        %v2567 = vld [vmem:[#allocation16 + $0x3c8] sm:$0xff]
        %v2568 = vld [vmem:[#allocation16 + $0x3d0] sm:$0xff]
        %v2569 = vld [vmem:[#allocation16 + $0x3d8] sm:$0xff]
        %v2570 = vld [vmem:[#allocation16 + $0x3e0] sm:$0xff]
        %v2571 = vld [vmem:[#allocation16 + $0x3e8] sm:$0xff]
        %v2572 = vld [vmem:[#allocation16 + $0x3f0] sm:$0xff]
        %v2573 = vld [vmem:[#allocation16 + $0x3f8] sm:$0xff]
        %v2574 = vld [vmem:[#allocation4 + $0x10] sm:$0xff]
        %v2575 = vld [vmem:[#allocation4 + $0x18] sm:$0xff]
        %s2576 = scalar_lea.vmem [#allocation16], 1024
        %v2577 = vld [vmem:[%s2576] sm:$0xff]
        %v2578 = vld [vmem:[%s2576 + $0x8] sm:$0xff]
        %v2579 = vld [vmem:[%s2576 + $0x10] sm:$0xff]
        %v2580 = vld [vmem:[%s2576 + $0x18] sm:$0xff]
        %v2581 = vld [vmem:[%s2576 + $0x20] sm:$0xff]
        %v2582 = vld [vmem:[%s2576 + $0x28] sm:$0xff]
        %v2583 = vld [vmem:[%s2576 + $0x30] sm:$0xff]
        %v2584 = vld [vmem:[%s2576 + $0x38] sm:$0xff]
        %v2585 = vld [vmem:[%s2576 + $0x40] sm:$0xff]
        %v2586 = vld [vmem:[%s2576 + $0x48] sm:$0xff]
        %v2587 = vld [vmem:[%s2576 + $0x50] sm:$0xff]
        %v2588 = vld [vmem:[%s2576 + $0x58] sm:$0xff]
        %v2589 = vld [vmem:[%s2576 + $0x60] sm:$0xff]
        %v2590 = vld [vmem:[%s2576 + $0x68] sm:$0xff]
        %v2591 = vld [vmem:[%s2576 + $0x70] sm:$0xff]
        %v2592 = vld [vmem:[%s2576 + $0x78] sm:$0xff]
        %v2593 = vld [vmem:[%s2576 + $0x80] sm:$0xff]
        %v2594 = vld [vmem:[%s2576 + $0x88] sm:$0xff]
        %v2595 = vld [vmem:[%s2576 + $0x90] sm:$0xff]
        %v2596 = vld [vmem:[%s2576 + $0x98] sm:$0xff]
        %v2597 = vld [vmem:[%s2576 + $0xa0] sm:$0xff]
        %v2598 = vld [vmem:[%s2576 + $0xa8] sm:$0xff]
        %v2599 = vld [vmem:[%s2576 + $0xb0] sm:$0xff]
        %v2600 = vld [vmem:[%s2576 + $0xb8] sm:$0xff]
        %v2601 = vld [vmem:[%s2576 + $0xc0] sm:$0xff]
        %v2602 = vld [vmem:[%s2576 + $0xc8] sm:$0xff]
        %v2603 = vld [vmem:[%s2576 + $0xd0] sm:$0xff]
        %v2604 = vld [vmem:[%s2576 + $0xd8] sm:$0xff]
        %v2605 = vld [vmem:[%s2576 + $0xe0] sm:$0xff]
        %v2606 = vld [vmem:[%s2576 + $0xe8] sm:$0xff]
        %v2607 = vld [vmem:[%s2576 + $0xf0] sm:$0xff]
        %v2608 = vld [vmem:[%s2576 + $0xf8] sm:$0xff]
        %v2609 = vld [vmem:[%s2576 + $0x100] sm:$0xff]
        %v2610 = vld [vmem:[%s2576 + $0x108] sm:$0xff]
        %v2611 = vld [vmem:[%s2576 + $0x110] sm:$0xff]
        %v2612 = vld [vmem:[%s2576 + $0x118] sm:$0xff]
        %v2613 = vld [vmem:[%s2576 + $0x120] sm:$0xff]
        %v2614 = vld [vmem:[%s2576 + $0x128] sm:$0xff]
        %v2615 = vld [vmem:[%s2576 + $0x130] sm:$0xff]
        %v2616 = vld [vmem:[%s2576 + $0x138] sm:$0xff]
        %v2617 = vld [vmem:[%s2576 + $0x140] sm:$0xff]
        %v2618 = vld [vmem:[%s2576 + $0x148] sm:$0xff]
        %v2619 = vld [vmem:[%s2576 + $0x150] sm:$0xff]
        %v2620 = vld [vmem:[%s2576 + $0x158] sm:$0xff]
        %v2621 = vld [vmem:[%s2576 + $0x160] sm:$0xff]
        %v2622 = vld [vmem:[%s2576 + $0x168] sm:$0xff]
        %v2623 = vld [vmem:[%s2576 + $0x170] sm:$0xff]
        %v2624 = vld [vmem:[%s2576 + $0x178] sm:$0xff]
        %v2625 = vld [vmem:[%s2576 + $0x180] sm:$0xff]
        %v2626 = vld [vmem:[%s2576 + $0x188] sm:$0xff]
        %v2627 = vld [vmem:[%s2576 + $0x190] sm:$0xff]
        %v2628 = vld [vmem:[%s2576 + $0x198] sm:$0xff]
        %v2629 = vld [vmem:[%s2576 + $0x1a0] sm:$0xff]
        %v2630 = vld [vmem:[%s2576 + $0x1a8] sm:$0xff]
        %v2631 = vld [vmem:[%s2576 + $0x1b0] sm:$0xff]
        %v2632 = vld [vmem:[%s2576 + $0x1b8] sm:$0xff]
        %v2633 = vld [vmem:[%s2576 + $0x1c0] sm:$0xff]
        %v2634 = vld [vmem:[%s2576 + $0x1c8] sm:$0xff]
        %v2635 = vld [vmem:[%s2576 + $0x1d0] sm:$0xff]
        %v2636 = vld [vmem:[%s2576 + $0x1d8] sm:$0xff]
        %v2637 = vld [vmem:[%s2576 + $0x1e0] sm:$0xff]
        %v2638 = vld [vmem:[%s2576 + $0x1e8] sm:$0xff]
        %v2639 = vld [vmem:[%s2576 + $0x1f0] sm:$0xff]
        %v2640 = vld [vmem:[%s2576 + $0x1f8] sm:$0xff]
        %v2641 = vld [vmem:[%s2576 + $0x200] sm:$0xff]
        %v2642 = vld [vmem:[%s2576 + $0x208] sm:$0xff]
        %v2643 = vld [vmem:[%s2576 + $0x210] sm:$0xff]
        %v2644 = vld [vmem:[%s2576 + $0x218] sm:$0xff]
        %v2645 = vld [vmem:[%s2576 + $0x220] sm:$0xff]
        %v2646 = vld [vmem:[%s2576 + $0x228] sm:$0xff]
        %v2647 = vld [vmem:[%s2576 + $0x230] sm:$0xff]
        %v2648 = vld [vmem:[%s2576 + $0x238] sm:$0xff]
        %v2649 = vld [vmem:[%s2576 + $0x240] sm:$0xff]
        %v2650 = vld [vmem:[%s2576 + $0x248] sm:$0xff]
        %v2651 = vld [vmem:[%s2576 + $0x250] sm:$0xff]
        %v2652 = vld [vmem:[%s2576 + $0x258] sm:$0xff]
        %v2653 = vld [vmem:[%s2576 + $0x260] sm:$0xff]
        %v2654 = vld [vmem:[%s2576 + $0x268] sm:$0xff]
        %v2655 = vld [vmem:[%s2576 + $0x270] sm:$0xff]
        %v2656 = vld [vmem:[%s2576 + $0x278] sm:$0xff]
        %v2657 = vld [vmem:[%s2576 + $0x280] sm:$0xff]
        %v2658 = vld [vmem:[%s2576 + $0x288] sm:$0xff]
        %v2659 = vld [vmem:[%s2576 + $0x290] sm:$0xff]
        %v2660 = vld [vmem:[%s2576 + $0x298] sm:$0xff]
        %v2661 = vld [vmem:[%s2576 + $0x2a0] sm:$0xff]
        %v2662 = vld [vmem:[%s2576 + $0x2a8] sm:$0xff]
        %v2663 = vld [vmem:[%s2576 + $0x2b0] sm:$0xff]
        %v2664 = vld [vmem:[%s2576 + $0x2b8] sm:$0xff]
        %v2665 = vld [vmem:[%s2576 + $0x2c0] sm:$0xff]
        %v2666 = vld [vmem:[%s2576 + $0x2c8] sm:$0xff]
        %v2667 = vld [vmem:[%s2576 + $0x2d0] sm:$0xff]
        %v2668 = vld [vmem:[%s2576 + $0x2d8] sm:$0xff]
        %v2669 = vld [vmem:[%s2576 + $0x2e0] sm:$0xff]
        %v2670 = vld [vmem:[%s2576 + $0x2e8] sm:$0xff]
        %v2671 = vld [vmem:[%s2576 + $0x2f0] sm:$0xff]
        %v2672 = vld [vmem:[%s2576 + $0x2f8] sm:$0xff]
        %v2673 = vld [vmem:[%s2576 + $0x300] sm:$0xff]
        %v2674 = vld [vmem:[%s2576 + $0x308] sm:$0xff]
        %v2675 = vld [vmem:[%s2576 + $0x310] sm:$0xff]
        %v2676 = vld [vmem:[%s2576 + $0x318] sm:$0xff]
        %v2677 = vld [vmem:[%s2576 + $0x320] sm:$0xff]
        %v2678 = vld [vmem:[%s2576 + $0x328] sm:$0xff]
        %v2679 = vld [vmem:[%s2576 + $0x330] sm:$0xff]
        %v2680 = vld [vmem:[%s2576 + $0x338] sm:$0xff]
        %v2681 = vld [vmem:[%s2576 + $0x340] sm:$0xff]
        %v2682 = vld [vmem:[%s2576 + $0x348] sm:$0xff]
        %v2683 = vld [vmem:[%s2576 + $0x350] sm:$0xff]
        %v2684 = vld [vmem:[%s2576 + $0x358] sm:$0xff]
        %v2685 = vld [vmem:[%s2576 + $0x360] sm:$0xff]
        %v2686 = vld [vmem:[%s2576 + $0x368] sm:$0xff]
        %v2687 = vld [vmem:[%s2576 + $0x370] sm:$0xff]
        %v2688 = vld [vmem:[%s2576 + $0x378] sm:$0xff]
        %v2689 = vld [vmem:[%s2576 + $0x380] sm:$0xff]
        %v2690 = vld [vmem:[%s2576 + $0x388] sm:$0xff]
        %v2691 = vld [vmem:[%s2576 + $0x390] sm:$0xff]
        %v2692 = vld [vmem:[%s2576 + $0x398] sm:$0xff]
        %v2693 = vld [vmem:[%s2576 + $0x3a0] sm:$0xff]
        %v2694 = vld [vmem:[%s2576 + $0x3a8] sm:$0xff]
        %v2695 = vld [vmem:[%s2576 + $0x3b0] sm:$0xff]
        %v2696 = vld [vmem:[%s2576 + $0x3b8] sm:$0xff]
        %v2697 = vld [vmem:[%s2576 + $0x3c0] sm:$0xff]
        %v2698 = vld [vmem:[%s2576 + $0x3c8] sm:$0xff]
        %v2699 = vld [vmem:[%s2576 + $0x3d0] sm:$0xff]
        %v2700 = vld [vmem:[%s2576 + $0x3d8] sm:$0xff]
        %v2701 = vld [vmem:[%s2576 + $0x3e0] sm:$0xff]
        %v2702 = vld [vmem:[%s2576 + $0x3e8] sm:$0xff]
        %v2703 = vld [vmem:[%s2576 + $0x3f0] sm:$0xff]
        %v2704 = vld [vmem:[%s2576 + $0x3f8] sm:$0xff]
        %2705 = vmatprep.subr.mxu0 %v2638
        %2706 = vmatpush1.msra.mxu0 %v2637
        %2707 = vmatprep.subr.mxu0 %v2634
        %2708 = vmatpush1.msra.mxu0 %v2633
        %2709 = vmatprep.subr.mxu0 %v2630
        %2710 = vmatpush1.msra.mxu0 %v2629
        %2711 = vmatprep.subr.mxu0 %v2626
        %2712 = vmatpush1.msra.mxu0 %v2625
        %2713 = vmatprep.subr.mxu0 %v2622
        %2714 = vmatpush1.msra.mxu0 %v2621
        %2715 = vmatprep.subr.mxu0 %v2618
        %2716 = vmatpush1.msra.mxu0 %v2617
        %2717 = vmatprep.subr.mxu0 %v2614
        %2718 = vmatpush1.msra.mxu0 %v2613
        %2719 = vmatprep.subr.mxu0 %v2610
        %2720 = vmatpush1.msra.mxu0 %v2609
        %2721 = vmatprep.subr.mxu0 %v2606
        %2722 = vmatpush1.msra.mxu0 %v2605
        %2723 = vmatprep.subr.mxu0 %v2602
        %2724 = vmatpush1.msra.mxu0 %v2601
        %2725 = vmatprep.subr.mxu0 %v2598
        %2726 = vmatpush1.msra.mxu0 %v2597
        %2727 = vmatprep.subr.mxu0 %v2594
        %2728 = vmatpush1.msra.mxu0 %v2593
        %2729 = vmatprep.subr.mxu0 %v2590
        %2730 = vmatpush1.msra.mxu0 %v2589
        %2731 = vmatprep.subr.mxu0 %v2586
        %2732 = vmatpush1.msra.mxu0 %v2585
        %2733 = vmatprep.subr.mxu0 %v2582
        %2734 = vmatpush1.msra.mxu0 %v2581
        %2735 = vmatprep.subr.mxu0 %v2578
        %2736 = vmatpush1.msra.mxu0 %v2577
        %2737 = vmatprep.subr.mxu0 %v2702
        %2738 = vmatpush2.msra.mxu0 %v2701
        %2739 = vmatprep.subr.mxu0 %v2698
        %2740 = vmatpush2.msra.mxu0 %v2697
        %2741 = vmatprep.subr.mxu0 %v2694
        %2742 = vmatpush2.msra.mxu0 %v2693
        %2743 = vmatprep.subr.mxu0 %v2690
        %2744 = vmatpush2.msra.mxu0 %v2689
        %2745 = vmatprep.subr.mxu0 %v2686
        %2746 = vmatpush2.msra.mxu0 %v2685
        %2747 = vmatprep.subr.mxu0 %v2682
        %2748 = vmatpush2.msra.mxu0 %v2681
        %2749 = vmatprep.subr.mxu0 %v2678
        %2750 = vmatpush2.msra.mxu0 %v2677
        %2751 = vmatprep.subr.mxu0 %v2674
        %2752 = vmatpush2.msra.mxu0 %v2673
        %2753 = vmatprep.subr.mxu0 %v2670
        %2754 = vmatpush2.msra.mxu0 %v2669
        %2755 = vmatprep.subr.mxu0 %v2666
        %2756 = vmatpush2.msra.mxu0 %v2665
        %2757 = vmatprep.subr.mxu0 %v2662
        %2758 = vmatpush2.msra.mxu0 %v2661
        %2759 = vmatprep.subr.mxu0 %v2658
        %2760 = vmatpush2.msra.mxu0 %v2657
        %2761 = vmatprep.subr.mxu0 %v2654
        %2762 = vmatpush2.msra.mxu0 %v2653
        %2763 = vmatprep.subr.mxu0 %v2650
        %2764 = vmatpush2.msra.mxu0 %v2649
        %2765 = vmatprep.subr.mxu0 %v2646
        %2766 = vmatpush2.msra.mxu0 %v2645
        %2767 = vmatprep.subr.mxu0 %v2642
        %2768 = vmatpush2.msra.mxu0 %v2641
        %2769 = vmatprep.mubr.f32.mxu0 %v2575
        %2770 = vmatmul.mubr.f32.gmra.mxu0 %v2574
        %v2771 = vpop.f32.mrf.mxu0
        %v2772 = vadd.f32 0.0, %v2771
        %v2773 = vpop.f32.mrf.mxu0
        %v2774 = vadd.f32 0.0, %v2773
        %2775 = vdwg.mxu0
        %2776 = vmatprep.subr.mxu0 %v2640
        %2777 = vmatpush1.msra.mxu0 %v2639
        %2778 = vmatprep.subr.mxu0 %v2636
        %2779 = vmatpush1.msra.mxu0 %v2635
        %2780 = vmatprep.subr.mxu0 %v2632
        %2781 = vmatpush1.msra.mxu0 %v2631
        %2782 = vmatprep.subr.mxu0 %v2628
        %2783 = vmatpush1.msra.mxu0 %v2627
        %2784 = vmatprep.subr.mxu0 %v2624
        %2785 = vmatpush1.msra.mxu0 %v2623
        %2786 = vmatprep.subr.mxu0 %v2620
        %2787 = vmatpush1.msra.mxu0 %v2619
        %2788 = vmatprep.subr.mxu0 %v2616
        %2789 = vmatpush1.msra.mxu0 %v2615
        %2790 = vmatprep.subr.mxu0 %v2612
        %2791 = vmatpush1.msra.mxu0 %v2611
        %2792 = vmatprep.subr.mxu0 %v2608
        %2793 = vmatpush1.msra.mxu0 %v2607
        %2794 = vmatprep.subr.mxu0 %v2604
        %2795 = vmatpush1.msra.mxu0 %v2603
        %2796 = vmatprep.subr.mxu0 %v2600
        %2797 = vmatpush1.msra.mxu0 %v2599
        %2798 = vmatprep.subr.mxu0 %v2596
        %2799 = vmatpush1.msra.mxu0 %v2595
        %2800 = vmatprep.subr.mxu0 %v2592
        %2801 = vmatpush1.msra.mxu0 %v2591
        %2802 = vmatprep.subr.mxu0 %v2588
        %2803 = vmatpush1.msra.mxu0 %v2587
        %2804 = vmatprep.subr.mxu0 %v2584
        %2805 = vmatpush1.msra.mxu0 %v2583
        %2806 = vmatprep.subr.mxu0 %v2580
        %2807 = vmatpush1.msra.mxu0 %v2579
        %2808 = vmatprep.subr.mxu0 %v2704
        %2809 = vmatpush2.msra.mxu0 %v2703
        %2810 = vmatprep.subr.mxu0 %v2700
        %2811 = vmatpush2.msra.mxu0 %v2699
        %2812 = vmatprep.subr.mxu0 %v2696
        %2813 = vmatpush2.msra.mxu0 %v2695
        %2814 = vmatprep.subr.mxu0 %v2692
        %2815 = vmatpush2.msra.mxu0 %v2691
        %2816 = vmatprep.subr.mxu0 %v2688
        %2817 = vmatpush2.msra.mxu0 %v2687
        %2818 = vmatprep.subr.mxu0 %v2684
        %2819 = vmatpush2.msra.mxu0 %v2683
        %2820 = vmatprep.subr.mxu0 %v2680
        %2821 = vmatpush2.msra.mxu0 %v2679
        %2822 = vmatprep.subr.mxu0 %v2676
        %2823 = vmatpush2.msra.mxu0 %v2675
        %2824 = vmatprep.subr.mxu0 %v2672
        %2825 = vmatpush2.msra.mxu0 %v2671
        %2826 = vmatprep.subr.mxu0 %v2668
        %2827 = vmatpush2.msra.mxu0 %v2667
        %2828 = vmatprep.subr.mxu0 %v2664
        %2829 = vmatpush2.msra.mxu0 %v2663
        %2830 = vmatprep.subr.mxu0 %v2660
        %2831 = vmatpush2.msra.mxu0 %v2659
        %2832 = vmatprep.subr.mxu0 %v2656
        %2833 = vmatpush2.msra.mxu0 %v2655
        %2834 = vmatprep.subr.mxu0 %v2652
        %2835 = vmatpush2.msra.mxu0 %v2651
        %2836 = vmatprep.subr.mxu0 %v2648
        %2837 = vmatpush2.msra.mxu0 %v2647
        %2838 = vmatprep.subr.mxu0 %v2644
        %2839 = vmatpush2.msra.mxu0 %v2643
        %2840 = vmatprep.mubr.f32.mxu0 %v2575
        %2841 = vmatmul.mubr.f32.gmra.mxu0 %v2574
        %v2842 = vpop.f32.mrf.mxu0
        %v2843 = vadd.f32 0.0, %v2842
        %v2844 = vpop.f32.mrf.mxu0
        %v2845 = vadd.f32 0.0, %v2844
        %2846 = vdwg.mxu0
        %v2851 = vrot.slane %v2442, 7
        %v2852 = vrot.slane %v2444, 7
        %v2853 = vsel %vm1630, %v2851, %v2852
        %v2854 = vrot.slane %v2443, 7
        %v2855 = vrot.slane %v2445, 7
        %v2856 = vsel %vm1630, %v2854, %v2855
        %2859 = vmatprep.subr.mxu0 %v2507
        %2860 = vmatpush1.msra.mxu0 %v2506
        %2861 = vmatprep.subr.mxu0 %v2503
        %2862 = vmatpush1.msra.mxu0 %v2502
        %2863 = vmatprep.subr.mxu0 %v2499
        %2864 = vmatpush1.msra.mxu0 %v2498
        %2865 = vmatprep.subr.mxu0 %v2495
        %2866 = vmatpush1.msra.mxu0 %v2494
        %2867 = vmatprep.subr.mxu0 %v2491
        %2868 = vmatpush1.msra.mxu0 %v2490
        %2869 = vmatprep.subr.mxu0 %v2487
        %2870 = vmatpush1.msra.mxu0 %v2486
        %2871 = vmatprep.subr.mxu0 %v2483
        %2872 = vmatpush1.msra.mxu0 %v2482
        %2873 = vmatprep.subr.mxu0 %v2479
        %2874 = vmatpush1.msra.mxu0 %v2478
        %2875 = vmatprep.subr.mxu0 %v2475
        %2876 = vmatpush1.msra.mxu0 %v2474
        %2877 = vmatprep.subr.mxu0 %v2471
        %2878 = vmatpush1.msra.mxu0 %v2470
        %2879 = vmatprep.subr.mxu0 %v2467
        %2880 = vmatpush1.msra.mxu0 %v2466
        %2881 = vmatprep.subr.mxu0 %v2463
        %2882 = vmatpush1.msra.mxu0 %v2462
        %2883 = vmatprep.subr.mxu0 %v2459
        %2884 = vmatpush1.msra.mxu0 %v2458
        %2885 = vmatprep.subr.mxu0 %v2455
        %2886 = vmatpush1.msra.mxu0 %v2454
        %2887 = vmatprep.subr.mxu0 %v2451
        %2888 = vmatpush1.msra.mxu0 %v2450
        %2889 = vmatprep.subr.mxu0 %v2447
        %2890 = vmatpush1.msra.mxu0 %v2446
        %2891 = vmatprep.subr.mxu0 %v2571
        %2892 = vmatpush2.msra.mxu0 %v2570
        %2893 = vmatprep.subr.mxu0 %v2567
        %2894 = vmatpush2.msra.mxu0 %v2566
        %2895 = vmatprep.subr.mxu0 %v2563
        %2896 = vmatpush2.msra.mxu0 %v2562
        %2897 = vmatprep.subr.mxu0 %v2559
        %2898 = vmatpush2.msra.mxu0 %v2558
        %2899 = vmatprep.subr.mxu0 %v2555
        %2900 = vmatpush2.msra.mxu0 %v2554
        %2901 = vmatprep.subr.mxu0 %v2551
        %2902 = vmatpush2.msra.mxu0 %v2550
        %2903 = vmatprep.subr.mxu0 %v2547
        %2904 = vmatpush2.msra.mxu0 %v2546
        %2905 = vmatprep.subr.mxu0 %v2543
        %2906 = vmatpush2.msra.mxu0 %v2542
        %2907 = vmatprep.subr.mxu0 %v2539
        %2908 = vmatpush2.msra.mxu0 %v2538
        %2909 = vmatprep.subr.mxu0 %v2535
        %2910 = vmatpush2.msra.mxu0 %v2534
        %2911 = vmatprep.subr.mxu0 %v2531
        %2912 = vmatpush2.msra.mxu0 %v2530
        %2913 = vmatprep.subr.mxu0 %v2527
        %2914 = vmatpush2.msra.mxu0 %v2526
        %2915 = vmatprep.subr.mxu0 %v2523
        %2916 = vmatpush2.msra.mxu0 %v2522
        %2917 = vmatprep.subr.mxu0 %v2519
        %2918 = vmatpush2.msra.mxu0 %v2518
        %2919 = vmatprep.subr.mxu0 %v2515
        %2920 = vmatpush2.msra.mxu0 %v2514
        %2921 = vmatprep.subr.mxu0 %v2511
        %2922 = vmatpush2.msra.mxu0 %v2510
        %2923 = vmatprep.mubr.f32.mxu0 %v2856
        %2924 = vmatmul.mubr.f32.gmra.mxu0 %v2853
        %v2925 = vpop.f32.mrf.mxu0
        %v2926 = vadd.f32 %v2772, %v2925
        %v2927 = vpop.f32.mrf.mxu0
        %v2928 = vadd.f32 %v2774, %v2927
        %2929 = vdwg.mxu0
        %2930 = vmatprep.subr.mxu0 %v2509
        %2931 = vmatpush1.msra.mxu0 %v2508
        %2932 = vmatprep.subr.mxu0 %v2505
        %2933 = vmatpush1.msra.mxu0 %v2504
        %2934 = vmatprep.subr.mxu0 %v2501
        %2935 = vmatpush1.msra.mxu0 %v2500
        %2936 = vmatprep.subr.mxu0 %v2497
        %2937 = vmatpush1.msra.mxu0 %v2496
        %2938 = vmatprep.subr.mxu0 %v2493
        %2939 = vmatpush1.msra.mxu0 %v2492
        %2940 = vmatprep.subr.mxu0 %v2489
        %2941 = vmatpush1.msra.mxu0 %v2488
        %2942 = vmatprep.subr.mxu0 %v2485
        %2943 = vmatpush1.msra.mxu0 %v2484
        %2944 = vmatprep.subr.mxu0 %v2481
        %2945 = vmatpush1.msra.mxu0 %v2480
        %2946 = vmatprep.subr.mxu0 %v2477
        %2947 = vmatpush1.msra.mxu0 %v2476
        %2948 = vmatprep.subr.mxu0 %v2473
        %2949 = vmatpush1.msra.mxu0 %v2472
        %2950 = vmatprep.subr.mxu0 %v2469
        %2951 = vmatpush1.msra.mxu0 %v2468
        %2952 = vmatprep.subr.mxu0 %v2465
        %2953 = vmatpush1.msra.mxu0 %v2464
        %2954 = vmatprep.subr.mxu0 %v2461
        %2955 = vmatpush1.msra.mxu0 %v2460
        %2956 = vmatprep.subr.mxu0 %v2457
        %2957 = vmatpush1.msra.mxu0 %v2456
        %2958 = vmatprep.subr.mxu0 %v2453
        %2959 = vmatpush1.msra.mxu0 %v2452
        %2960 = vmatprep.subr.mxu0 %v2449
        %2961 = vmatpush1.msra.mxu0 %v2448
        %2962 = vmatprep.subr.mxu0 %v2573
        %2963 = vmatpush2.msra.mxu0 %v2572
        %2964 = vmatprep.subr.mxu0 %v2569
        %2965 = vmatpush2.msra.mxu0 %v2568
        %2966 = vmatprep.subr.mxu0 %v2565
        %2967 = vmatpush2.msra.mxu0 %v2564
        %2968 = vmatprep.subr.mxu0 %v2561
        %2969 = vmatpush2.msra.mxu0 %v2560
        %2970 = vmatprep.subr.mxu0 %v2557
        %2971 = vmatpush2.msra.mxu0 %v2556
        %2972 = vmatprep.subr.mxu0 %v2553
        %2973 = vmatpush2.msra.mxu0 %v2552
        %2974 = vmatprep.subr.mxu0 %v2549
        %2975 = vmatpush2.msra.mxu0 %v2548
        %2976 = vmatprep.subr.mxu0 %v2545
        %2977 = vmatpush2.msra.mxu0 %v2544
        %2978 = vmatprep.subr.mxu0 %v2541
        %2979 = vmatpush2.msra.mxu0 %v2540
        %2980 = vmatprep.subr.mxu0 %v2537
        %2981 = vmatpush2.msra.mxu0 %v2536
        %2982 = vmatprep.subr.mxu0 %v2533
        %2983 = vmatpush2.msra.mxu0 %v2532
        %2984 = vmatprep.subr.mxu0 %v2529
        %2985 = vmatpush2.msra.mxu0 %v2528
        %2986 = vmatprep.subr.mxu0 %v2525
        %2987 = vmatpush2.msra.mxu0 %v2524
        %2988 = vmatprep.subr.mxu0 %v2521
        %2989 = vmatpush2.msra.mxu0 %v2520
        %2990 = vmatprep.subr.mxu0 %v2517
        %2991 = vmatpush2.msra.mxu0 %v2516
        %2992 = vmatprep.subr.mxu0 %v2513
        %2993 = vmatpush2.msra.mxu0 %v2512
        %2994 = vmatprep.mubr.f32.mxu0 %v2856
        %2995 = vmatmul.mubr.f32.gmra.mxu0 %v2853
        %v2996 = vpop.f32.mrf.mxu0
        %v2997 = vadd.f32 %v2843, %v2996
        %v2998 = vpop.f32.mrf.mxu0
        %v2999 = vadd.f32 %v2845, %v2998
        %3000 = vdwg.mxu0
        %v3001 = vld [vmem:[#allocation4 + $0x10] sm:$0xfe]
        %v3002 = vld [vmem:[#allocation4 + $0x18] sm:$0xfe]
        %v3003 = vld [vmem:[#allocation4 + $0x20] sm:$0x1]
        %v3004 = vld [vmem:[#allocation4 + $0x28] sm:$0x1]
        %s3005 = scalar_lea.vmem [#allocation16], 2048
        %v3006 = vld [vmem:[%s3005] sm:$0xff]
        %v3007 = vld [vmem:[%s3005 + $0x8] sm:$0xff]
        %v3008 = vld [vmem:[%s3005 + $0x10] sm:$0xff]
        %v3009 = vld [vmem:[%s3005 + $0x18] sm:$0xff]
        %v3010 = vld [vmem:[%s3005 + $0x20] sm:$0xff]
        %v3011 = vld [vmem:[%s3005 + $0x28] sm:$0xff]
        %v3012 = vld [vmem:[%s3005 + $0x30] sm:$0xff]
        %v3013 = vld [vmem:[%s3005 + $0x38] sm:$0xff]
        %v3014 = vld [vmem:[%s3005 + $0x40] sm:$0xff]
        %v3015 = vld [vmem:[%s3005 + $0x48] sm:$0xff]
        %v3016 = vld [vmem:[%s3005 + $0x50] sm:$0xff]
        %v3017 = vld [vmem:[%s3005 + $0x58] sm:$0xff]
        %v3018 = vld [vmem:[%s3005 + $0x60] sm:$0xff]
        %v3019 = vld [vmem:[%s3005 + $0x68] sm:$0xff]
        %v3020 = vld [vmem:[%s3005 + $0x70] sm:$0xff]
        %v3021 = vld [vmem:[%s3005 + $0x78] sm:$0xff]
        %v3022 = vld [vmem:[%s3005 + $0x80] sm:$0xff]
        %v3023 = vld [vmem:[%s3005 + $0x88] sm:$0xff]
        %v3024 = vld [vmem:[%s3005 + $0x90] sm:$0xff]
        %v3025 = vld [vmem:[%s3005 + $0x98] sm:$0xff]
        %v3026 = vld [vmem:[%s3005 + $0xa0] sm:$0xff]
        %v3027 = vld [vmem:[%s3005 + $0xa8] sm:$0xff]
        %v3028 = vld [vmem:[%s3005 + $0xb0] sm:$0xff]
        %v3029 = vld [vmem:[%s3005 + $0xb8] sm:$0xff]
        %v3030 = vld [vmem:[%s3005 + $0xc0] sm:$0xff]
        %v3031 = vld [vmem:[%s3005 + $0xc8] sm:$0xff]
        %v3032 = vld [vmem:[%s3005 + $0xd0] sm:$0xff]
        %v3033 = vld [vmem:[%s3005 + $0xd8] sm:$0xff]
        %v3034 = vld [vmem:[%s3005 + $0xe0] sm:$0xff]
        %v3035 = vld [vmem:[%s3005 + $0xe8] sm:$0xff]
        %v3036 = vld [vmem:[%s3005 + $0xf0] sm:$0xff]
        %v3037 = vld [vmem:[%s3005 + $0xf8] sm:$0xff]
        %v3038 = vld [vmem:[%s3005 + $0x100] sm:$0xff]
        %v3039 = vld [vmem:[%s3005 + $0x108] sm:$0xff]
        %v3040 = vld [vmem:[%s3005 + $0x110] sm:$0xff]
        %v3041 = vld [vmem:[%s3005 + $0x118] sm:$0xff]
        %v3042 = vld [vmem:[%s3005 + $0x120] sm:$0xff]
        %v3043 = vld [vmem:[%s3005 + $0x128] sm:$0xff]
        %v3044 = vld [vmem:[%s3005 + $0x130] sm:$0xff]
        %v3045 = vld [vmem:[%s3005 + $0x138] sm:$0xff]
        %v3046 = vld [vmem:[%s3005 + $0x140] sm:$0xff]
        %v3047 = vld [vmem:[%s3005 + $0x148] sm:$0xff]
        %v3048 = vld [vmem:[%s3005 + $0x150] sm:$0xff]
        %v3049 = vld [vmem:[%s3005 + $0x158] sm:$0xff]
        %v3050 = vld [vmem:[%s3005 + $0x160] sm:$0xff]
        %v3051 = vld [vmem:[%s3005 + $0x168] sm:$0xff]
        %v3052 = vld [vmem:[%s3005 + $0x170] sm:$0xff]
        %v3053 = vld [vmem:[%s3005 + $0x178] sm:$0xff]
        %v3054 = vld [vmem:[%s3005 + $0x180] sm:$0xff]
        %v3055 = vld [vmem:[%s3005 + $0x188] sm:$0xff]
        %v3056 = vld [vmem:[%s3005 + $0x190] sm:$0xff]
        %v3057 = vld [vmem:[%s3005 + $0x198] sm:$0xff]
        %v3058 = vld [vmem:[%s3005 + $0x1a0] sm:$0xff]
        %v3059 = vld [vmem:[%s3005 + $0x1a8] sm:$0xff]
        %v3060 = vld [vmem:[%s3005 + $0x1b0] sm:$0xff]
        %v3061 = vld [vmem:[%s3005 + $0x1b8] sm:$0xff]
        %v3062 = vld [vmem:[%s3005 + $0x1c0] sm:$0xff]
        %v3063 = vld [vmem:[%s3005 + $0x1c8] sm:$0xff]
        %v3064 = vld [vmem:[%s3005 + $0x1d0] sm:$0xff]
        %v3065 = vld [vmem:[%s3005 + $0x1d8] sm:$0xff]
        %v3066 = vld [vmem:[%s3005 + $0x1e0] sm:$0xff]
        %v3067 = vld [vmem:[%s3005 + $0x1e8] sm:$0xff]
        %v3068 = vld [vmem:[%s3005 + $0x1f0] sm:$0xff]
        %v3069 = vld [vmem:[%s3005 + $0x1f8] sm:$0xff]
        %v3070 = vld [vmem:[%s3005 + $0x200] sm:$0xff]
        %v3071 = vld [vmem:[%s3005 + $0x208] sm:$0xff]
        %v3072 = vld [vmem:[%s3005 + $0x210] sm:$0xff]
        %v3073 = vld [vmem:[%s3005 + $0x218] sm:$0xff]
        %v3074 = vld [vmem:[%s3005 + $0x220] sm:$0xff]
        %v3075 = vld [vmem:[%s3005 + $0x228] sm:$0xff]
        %v3076 = vld [vmem:[%s3005 + $0x230] sm:$0xff]
        %v3077 = vld [vmem:[%s3005 + $0x238] sm:$0xff]
        %v3078 = vld [vmem:[%s3005 + $0x240] sm:$0xff]
        %v3079 = vld [vmem:[%s3005 + $0x248] sm:$0xff]
        %v3080 = vld [vmem:[%s3005 + $0x250] sm:$0xff]
        %v3081 = vld [vmem:[%s3005 + $0x258] sm:$0xff]
        %v3082 = vld [vmem:[%s3005 + $0x260] sm:$0xff]
        %v3083 = vld [vmem:[%s3005 + $0x268] sm:$0xff]
        %v3084 = vld [vmem:[%s3005 + $0x270] sm:$0xff]
        %v3085 = vld [vmem:[%s3005 + $0x278] sm:$0xff]
        %v3086 = vld [vmem:[%s3005 + $0x280] sm:$0xff]
        %v3087 = vld [vmem:[%s3005 + $0x288] sm:$0xff]
        %v3088 = vld [vmem:[%s3005 + $0x290] sm:$0xff]
        %v3089 = vld [vmem:[%s3005 + $0x298] sm:$0xff]
        %v3090 = vld [vmem:[%s3005 + $0x2a0] sm:$0xff]
        %v3091 = vld [vmem:[%s3005 + $0x2a8] sm:$0xff]
        %v3092 = vld [vmem:[%s3005 + $0x2b0] sm:$0xff]
        %v3093 = vld [vmem:[%s3005 + $0x2b8] sm:$0xff]
        %v3094 = vld [vmem:[%s3005 + $0x2c0] sm:$0xff]
        %v3095 = vld [vmem:[%s3005 + $0x2c8] sm:$0xff]
        %v3096 = vld [vmem:[%s3005 + $0x2d0] sm:$0xff]
        %v3097 = vld [vmem:[%s3005 + $0x2d8] sm:$0xff]
        %v3098 = vld [vmem:[%s3005 + $0x2e0] sm:$0xff]
        %v3099 = vld [vmem:[%s3005 + $0x2e8] sm:$0xff]
        %v3100 = vld [vmem:[%s3005 + $0x2f0] sm:$0xff]
        %v3101 = vld [vmem:[%s3005 + $0x2f8] sm:$0xff]
        %v3102 = vld [vmem:[%s3005 + $0x300] sm:$0xff]
        %v3103 = vld [vmem:[%s3005 + $0x308] sm:$0xff]
        %v3104 = vld [vmem:[%s3005 + $0x310] sm:$0xff]
        %v3105 = vld [vmem:[%s3005 + $0x318] sm:$0xff]
        %v3106 = vld [vmem:[%s3005 + $0x320] sm:$0xff]
        %v3107 = vld [vmem:[%s3005 + $0x328] sm:$0xff]
        %v3108 = vld [vmem:[%s3005 + $0x330] sm:$0xff]
        %v3109 = vld [vmem:[%s3005 + $0x338] sm:$0xff]
        %v3110 = vld [vmem:[%s3005 + $0x340] sm:$0xff]
        %v3111 = vld [vmem:[%s3005 + $0x348] sm:$0xff]
        %v3112 = vld [vmem:[%s3005 + $0x350] sm:$0xff]
        %v3113 = vld [vmem:[%s3005 + $0x358] sm:$0xff]
        %v3114 = vld [vmem:[%s3005 + $0x360] sm:$0xff]
        %v3115 = vld [vmem:[%s3005 + $0x368] sm:$0xff]
        %v3116 = vld [vmem:[%s3005 + $0x370] sm:$0xff]
        %v3117 = vld [vmem:[%s3005 + $0x378] sm:$0xff]
        %v3118 = vld [vmem:[%s3005 + $0x380] sm:$0xff]
        %v3119 = vld [vmem:[%s3005 + $0x388] sm:$0xff]
        %v3120 = vld [vmem:[%s3005 + $0x390] sm:$0xff]
        %v3121 = vld [vmem:[%s3005 + $0x398] sm:$0xff]
        %v3122 = vld [vmem:[%s3005 + $0x3a0] sm:$0xff]
        %v3123 = vld [vmem:[%s3005 + $0x3a8] sm:$0xff]
        %v3124 = vld [vmem:[%s3005 + $0x3b0] sm:$0xff]
        %v3125 = vld [vmem:[%s3005 + $0x3b8] sm:$0xff]
        %v3126 = vld [vmem:[%s3005 + $0x3c0] sm:$0xff]
        %v3127 = vld [vmem:[%s3005 + $0x3c8] sm:$0xff]
        %v3128 = vld [vmem:[%s3005 + $0x3d0] sm:$0xff]
        %v3129 = vld [vmem:[%s3005 + $0x3d8] sm:$0xff]
        %v3130 = vld [vmem:[%s3005 + $0x3e0] sm:$0xff]
        %v3131 = vld [vmem:[%s3005 + $0x3e8] sm:$0xff]
        %v3132 = vld [vmem:[%s3005 + $0x3f0] sm:$0xff]
        %v3133 = vld [vmem:[%s3005 + $0x3f8] sm:$0xff]
        %v3138 = vrot.slane %v3001, 1
        %v3139 = vrot.slane %v3003, 1
        %v3140 = vsel %vm2018, %v3138, %v3139
        %v3141 = vrot.slane %v3002, 1
        %v3142 = vrot.slane %v3004, 1
        %v3143 = vsel %vm2018, %v3141, %v3142
        %3146 = vmatprep.subr.mxu0 %v3067
        %3147 = vmatpush1.msra.mxu0 %v3066
        %3148 = vmatprep.subr.mxu0 %v3063
        %3149 = vmatpush1.msra.mxu0 %v3062
        %3150 = vmatprep.subr.mxu0 %v3059
        %3151 = vmatpush1.msra.mxu0 %v3058
        %3152 = vmatprep.subr.mxu0 %v3055
        %3153 = vmatpush1.msra.mxu0 %v3054
        %3154 = vmatprep.subr.mxu0 %v3051
        %3155 = vmatpush1.msra.mxu0 %v3050
        %3156 = vmatprep.subr.mxu0 %v3047
        %3157 = vmatpush1.msra.mxu0 %v3046
        %3158 = vmatprep.subr.mxu0 %v3043
        %3159 = vmatpush1.msra.mxu0 %v3042
        %3160 = vmatprep.subr.mxu0 %v3039
        %3161 = vmatpush1.msra.mxu0 %v3038
        %3162 = vmatprep.subr.mxu0 %v3035
        %3163 = vmatpush1.msra.mxu0 %v3034
        %3164 = vmatprep.subr.mxu0 %v3031
        %3165 = vmatpush1.msra.mxu0 %v3030
        %3166 = vmatprep.subr.mxu0 %v3027
        %3167 = vmatpush1.msra.mxu0 %v3026
        %3168 = vmatprep.subr.mxu0 %v3023
        %3169 = vmatpush1.msra.mxu0 %v3022
        %3170 = vmatprep.subr.mxu0 %v3019
        %3171 = vmatpush1.msra.mxu0 %v3018
        %3172 = vmatprep.subr.mxu0 %v3015
        %3173 = vmatpush1.msra.mxu0 %v3014
        %3174 = vmatprep.subr.mxu0 %v3011
        %3175 = vmatpush1.msra.mxu0 %v3010
        %3176 = vmatprep.subr.mxu0 %v3007
        %3177 = vmatpush1.msra.mxu0 %v3006
        %3178 = vmatprep.subr.mxu0 %v3131
        %3179 = vmatpush2.msra.mxu0 %v3130
        %3180 = vmatprep.subr.mxu0 %v3127
        %3181 = vmatpush2.msra.mxu0 %v3126
        %3182 = vmatprep.subr.mxu0 %v3123
        %3183 = vmatpush2.msra.mxu0 %v3122
        %3184 = vmatprep.subr.mxu0 %v3119
        %3185 = vmatpush2.msra.mxu0 %v3118
        %3186 = vmatprep.subr.mxu0 %v3115
        %3187 = vmatpush2.msra.mxu0 %v3114
        %3188 = vmatprep.subr.mxu0 %v3111
        %3189 = vmatpush2.msra.mxu0 %v3110
        %3190 = vmatprep.subr.mxu0 %v3107
        %3191 = vmatpush2.msra.mxu0 %v3106
        %3192 = vmatprep.subr.mxu0 %v3103
        %3193 = vmatpush2.msra.mxu0 %v3102
        %3194 = vmatprep.subr.mxu0 %v3099
        %3195 = vmatpush2.msra.mxu0 %v3098
        %3196 = vmatprep.subr.mxu0 %v3095
        %3197 = vmatpush2.msra.mxu0 %v3094
        %3198 = vmatprep.subr.mxu0 %v3091
        %3199 = vmatpush2.msra.mxu0 %v3090
        %3200 = vmatprep.subr.mxu0 %v3087
        %3201 = vmatpush2.msra.mxu0 %v3086
        %3202 = vmatprep.subr.mxu0 %v3083
        %3203 = vmatpush2.msra.mxu0 %v3082
        %3204 = vmatprep.subr.mxu0 %v3079
        %3205 = vmatpush2.msra.mxu0 %v3078
        %3206 = vmatprep.subr.mxu0 %v3075
        %3207 = vmatpush2.msra.mxu0 %v3074
        %3208 = vmatprep.subr.mxu0 %v3071
        %3209 = vmatpush2.msra.mxu0 %v3070
        %3210 = vmatprep.mubr.f32.mxu0 %v3143
        %3211 = vmatmul.mubr.f32.gmra.mxu0 %v3140
        %v3212 = vpop.f32.mrf.mxu0
        %v3213 = vadd.f32 0.0, %v3212
        %v3214 = vpop.f32.mrf.mxu0
        %v3215 = vadd.f32 0.0, %v3214
        %3216 = vdwg.mxu0
        %3217 = vmatprep.subr.mxu0 %v3069
        %3218 = vmatpush1.msra.mxu0 %v3068
        %3219 = vmatprep.subr.mxu0 %v3065
        %3220 = vmatpush1.msra.mxu0 %v3064
        %3221 = vmatprep.subr.mxu0 %v3061
        %3222 = vmatpush1.msra.mxu0 %v3060
        %3223 = vmatprep.subr.mxu0 %v3057
        %3224 = vmatpush1.msra.mxu0 %v3056
        %3225 = vmatprep.subr.mxu0 %v3053
        %3226 = vmatpush1.msra.mxu0 %v3052
        %3227 = vmatprep.subr.mxu0 %v3049
        %3228 = vmatpush1.msra.mxu0 %v3048
        %3229 = vmatprep.subr.mxu0 %v3045
        %3230 = vmatpush1.msra.mxu0 %v3044
        %3231 = vmatprep.subr.mxu0 %v3041
        %3232 = vmatpush1.msra.mxu0 %v3040
        %3233 = vmatprep.subr.mxu0 %v3037
        %3234 = vmatpush1.msra.mxu0 %v3036
        %3235 = vmatprep.subr.mxu0 %v3033
        %3236 = vmatpush1.msra.mxu0 %v3032
        %3237 = vmatprep.subr.mxu0 %v3029
        %3238 = vmatpush1.msra.mxu0 %v3028
        %3239 = vmatprep.subr.mxu0 %v3025
        %3240 = vmatpush1.msra.mxu0 %v3024
        %3241 = vmatprep.subr.mxu0 %v3021
        %3242 = vmatpush1.msra.mxu0 %v3020
        %3243 = vmatprep.subr.mxu0 %v3017
        %3244 = vmatpush1.msra.mxu0 %v3016
        %3245 = vmatprep.subr.mxu0 %v3013
        %3246 = vmatpush1.msra.mxu0 %v3012
        %3247 = vmatprep.subr.mxu0 %v3009
        %3248 = vmatpush1.msra.mxu0 %v3008
        %3249 = vmatprep.subr.mxu0 %v3133
        %3250 = vmatpush2.msra.mxu0 %v3132
        %3251 = vmatprep.subr.mxu0 %v3129
        %3252 = vmatpush2.msra.mxu0 %v3128
        %3253 = vmatprep.subr.mxu0 %v3125
        %3254 = vmatpush2.msra.mxu0 %v3124
        %3255 = vmatprep.subr.mxu0 %v3121
        %3256 = vmatpush2.msra.mxu0 %v3120
        %3257 = vmatprep.subr.mxu0 %v3117
        %3258 = vmatpush2.msra.mxu0 %v3116
        %3259 = vmatprep.subr.mxu0 %v3113
        %3260 = vmatpush2.msra.mxu0 %v3112
        %3261 = vmatprep.subr.mxu0 %v3109
        %3262 = vmatpush2.msra.mxu0 %v3108
        %3263 = vmatprep.subr.mxu0 %v3105
        %3264 = vmatpush2.msra.mxu0 %v3104
        %3265 = vmatprep.subr.mxu0 %v3101
        %3266 = vmatpush2.msra.mxu0 %v3100
        %3267 = vmatprep.subr.mxu0 %v3097
        %3268 = vmatpush2.msra.mxu0 %v3096
        %3269 = vmatprep.subr.mxu0 %v3093
        %3270 = vmatpush2.msra.mxu0 %v3092
        %3271 = vmatprep.subr.mxu0 %v3089
        %3272 = vmatpush2.msra.mxu0 %v3088
        %3273 = vmatprep.subr.mxu0 %v3085
        %3274 = vmatpush2.msra.mxu0 %v3084
        %3275 = vmatprep.subr.mxu0 %v3081
        %3276 = vmatpush2.msra.mxu0 %v3080
        %3277 = vmatprep.subr.mxu0 %v3077
        %3278 = vmatpush2.msra.mxu0 %v3076
        %3279 = vmatprep.subr.mxu0 %v3073
        %3280 = vmatpush2.msra.mxu0 %v3072
        %3281 = vmatprep.mubr.f32.mxu0 %v3143
        %3282 = vmatmul.mubr.f32.gmra.mxu0 %v3140
        %v3283 = vpop.f32.mrf.mxu0
        %v3284 = vadd.f32 0.0, %v3283
        %v3285 = vpop.f32.mrf.mxu0
        %v3286 = vadd.f32 0.0, %v3285
        %3287 = vdwg.mxu0
        %v3288 = vadd.f32 %v2926, %v3213
        %v3289 = vadd.f32 %v2928, %v3215
        %v3290 = vadd.f32 %v2997, %v3284
        %v3291 = vadd.f32 %v2999, %v3286
        %v3292 = vld [vmem:[#allocation18] sm:$0xf]
        %v3294 = vlaneseq
        %v3295 = vshrl.u32 %v3294, 7
        %v3296 = vsub.s32 0, %v3295
        %v3297 = vrot.slane %v3292, %v3296
        %v3298 = vlaneseq
        %v3299 = vshrl.u32 %v3298, 7
        %v3300 = vsub.s32 1, %v3299
        %v3301 = vrot.slane %v3292, %v3300
        %v3302 = vlaneseq
        %v3303 = vshrl.u32 %v3302, 7
        %v3304 = vsub.s32 2, %v3303
        %v3305 = vrot.slane %v3292, %v3304
        %v3306 = vlaneseq
        %v3307 = vshrl.u32 %v3306, 7
        %v3308 = vsub.s32 3, %v3307
        %v3309 = vrot.slane %v3292, %v3308
        %v3314 = vadd.f32 %v3288, %v3297
        %v3315 = vadd.f32 %v3289, %v3301
        %v3316 = vadd.f32 %v3290, %v3305
        %v3317 = vadd.f32 %v3291, %v3309
        %v3318 = vmax.f32 %v3314, 0.0
        %v3319 = vmax.f32 %v3315, 0.0
        %v3320 = vmax.f32 %v3316, 0.0
        %v3321 = vmax.f32 %v3317, 0.0
        %3322 = vst [vmem:[%s462] sm:$0xff] %v3318
        %3323 = vst [vmem:[%s462 + $0x8] sm:$0xff] %v3319
        %3324 = vst [vmem:[%s462 + $0x10] sm:$0xff] %v3320
        %3325 = vst [vmem:[%s462 + $0x18] sm:$0xff] %v3321
        %p3326 = scmp.lt.s32.totalorder %s27, 1
        %s3327 = scalar_select %p3326, %s27, 1
        %s3328 = smul.addr %s3327, 4
        %s3329 = smul.addr %s3328, 8
        %s3330 = scalar_lea.vmem %s9, %s3329
        // Predicated region
        $region93: #{encode_net_forward.1} parent=55 // pred_check
          %p3331 = pneg %p239
        $region94: #{encode_net_forward.1} parent=55 // pred_check_branch
          %3333 = sbr.rel (%p3331) target = $region96
        $region95: #{encode_net_forward.1} parent=55 // pred_region
          _
        $region96: #{encode_net_forward.1} parent=55 // pred_fallthru
          _
      $region56: #{encode_net_forward.1} parent=5 // pred_fallthru
        _
      %p3334 = scmp.le.s32.totalorder 2, %s22
      // Predicated region
      $region97: #{encode_net_forward.1} parent=5 // pred_check
        %p3335 = pneg %p3334
      $region98: #{encode_net_forward.1} parent=5 // pred_check_branch
        %3337 = sbr.rel (%p3335) target = $region100
      $region99: #{encode_net_forward.1} parent=5 // pred_region
        %s3338 = ssub.s32 %s22, 2
        // Predicated region
        $region101: #{encode_net_forward.1} parent=99 // pred_check
          %p3339 = pneg %p245
        $region102: #{encode_net_forward.1} parent=99 // pred_check_branch
          %3341 = sbr.rel (%p3339) target = $region104
        $region103: #{encode_net_forward.1} parent=99 // pred_region
          %p3342 = scmp.lt.s32.totalorder %s28, 1
          %s3343 = scalar_select %p3342, %s28, 1
          %s3344 = smul.addr %s3343, 4
          %s3345 = smul.addr %s3344, 8
          %s3346 = scalar_lea.vmem %s9, %s3345
        $region104: #{encode_net_forward.1} parent=99 // pred_fallthru
          _
      $region100: #{encode_net_forward.1} parent=5 // pred_fallthru
        _
    $region6: #{encode_net_forward.1} parent=1 // loop_footer
      %s26 = sadd.s32 1, %s22
    $region7: #{encode_net_forward.1} parent=1 // loop_footer_branch
      %21 = sbr.rel target = $region3
    $region8: #{encode_net_forward.1} parent=1 // loop_exit
      _
    %3347 = vsyncpa [#allocation6], 1
    %s3348 = scalar_lea.sflag [#allocation6], 1
    %3349 = vsyncpa %s3348, 1
    %3350 = vsyncpa [#allocation8], 1
    %3351 = vsyncpa [#allocation11], 1
    %3352 = vsyncpa [#allocation14], 1
    %3353 = vsyncpa [#allocation17], 1

</llo_original>
